<compile_context>
chip_gen: v5e
topology: v5e:2x2
jax: 0.10.0
libtpu: 0.0.40
codegen_flags: <defaults>
</compile_context>

<pallas_src>
import functools

import jax
import jax.numpy as jnp
from jax import lax
from jax.experimental import pallas as pl
from jax.experimental.pallas import tpu as pltpu


def _round_up(n, m):
    return ((n + m - 1) // m) * m


def _largest_divisor_leq(n, target):
    t = max(1, min(n, target))
    while n % t:
        t -= 1
    return t


def _rnn_predictor_kernel(x_ref, h0_ref, c0_ref,
                          enc_w_ref, enc_b_ref,
                          wcat_ref, lstm_b_ref,
                          dec_w_ref, dec_b_ref,
                          dec_ref, h_out_ref, c_out_ref,
                          xproj_scr, out_scr,
                          *, t_chunk, res_connection, unroll):
    nlayers, Bp, Hp = h0_ref.shape
    Gp = 4 * Hp
    wdt = enc_w_ref.dtype                    # matmul operand dtype (f32 or bf16)

    # ---- chunk 0: seed the resident h/c output blocks from the initial state --
    @pl.when(pl.program_id(0) == 0)
    def _():
        h_out_ref[...] = h0_ref[...]
        c_out_ref[...] = c0_ref[...]

    # ---- per-chunk prologue: non-recurrent matmuls batched over Tc*Bp rows ----
    emb = jnp.dot(x_ref[...].astype(wdt), enc_w_ref[...],
                  preferred_element_type=jnp.float32) + enc_b_ref[...]
    xproj_scr[...] = (jnp.dot(emb.astype(wdt), wcat_ref[0, pl.ds(0, Hp), :],
                              preferred_element_type=jnp.float32)
                      + lstm_b_ref[0])

    # hoist layer>=1 bias broadcasts out of the recurrence (no CSE for broadcasts)
    b_rest = [jnp.broadcast_to(lstm_b_ref[l], (Bp, Gp)) for l in range(1, nlayers)]

    def _sigmoid(v):
        # single EUP tanh + cheap VPU mul/add instead of exp + reciprocal
        return 0.5 * jnp.tanh(0.5 * v) + 0.5

    def _cell(gates, c_prev):
        i_g = _sigmoid(gates[:, 0 * Hp:1 * Hp])
        f_g = _sigmoid(gates[:, 1 * Hp:2 * Hp])
        g_g = jnp.tanh(gates[:, 2 * Hp:3 * Hp])
        o_g = _sigmoid(gates[:, 3 * Hp:4 * Hp])
        c_new = f_g * c_prev + i_g * g_g
        h_new = o_g * jnp.tanh(c_new)
        return h_new, c_new

    # ---- time recurrence: h/c carried as fori_loop (register) values ----------
    h_init = tuple(h_out_ref[l] for l in range(nlayers))
    c_init = tuple(c_out_ref[l] for l in range(nlayers))

    def step(t, carry):
        h, c = carry
        base = pl.multiple_of(t * Bp, Bp)
        rows = pl.ds(base, Bp)
        # layer 0: input projection precomputed; only the h-dependent matmul here
        gates0 = xproj_scr[rows, :] + jnp.dot(
            h[0].astype(wdt), wcat_ref[0, pl.ds(Hp, Hp), :],
            preferred_element_type=jnp.float32)
        hl, cl = _cell(gates0, c[0])
        h_new, c_new = [hl], [cl]
        layer_in = hl
        # layers >= 1: fused [W_ih; W_hh] matmul on concat([layer_in, h_prev])
        for l in range(1, nlayers):
            inp = jnp.concatenate([layer_in, h[l]], axis=-1).astype(wdt)
            gates = jnp.dot(inp, wcat_ref[l],
                            preferred_element_type=jnp.float32) + b_rest[l - 1]
            hl, cl = _cell(gates, c[l])
            h_new.append(hl)
            c_new.append(cl)
            layer_in = hl
            # (inter-layer dropout: identity in eval mode)
        out_scr[rows, :] = layer_in          # single lane-dense store per step
        return tuple(h_new), tuple(c_new)

    h_fin, c_fin = lax.fori_loop(0, t_chunk, step, (h_init, c_init),
                                 unroll=unroll)

    # write the resident state blocks once per chunk (HBM writeback at grid end)
    for l in range(nlayers):
        h_out_ref[l] = h_fin[l]
        c_out_ref[l] = c_fin[l]

    # ---- per-chunk epilogue: decoder over all chunk rows, one dense store -----
    decoded = (jnp.dot(out_scr[...].astype(wdt), dec_w_ref[...],
                       preferred_element_type=jnp.float32) + dec_b_ref[...])
    if res_connection:
        decoded = decoded + x_ref[...]       # requires enc_inp_size == dec_out_size
    dec_ref[...] = decoded


def rnn_predictor_forward(x, h0, c0, enc_w_t, enc_b, w_ih_t, w_hh_t, lstm_b,
                          dec_w_t, dec_b, *, res_connection=False,
                          weight_dtype=jnp.float32, t_chunk_target=32):
    """x: (T, B, enc_in) f32; h0/c0: (nlayers, B, hid); weights pre-transposed."""
    T, B, enc_in = x.shape
    nlayers, _, hid = h0.shape
    dec_out = dec_w_t.shape[1]
    if res_connection and enc_in != dec_out:
        raise ValueError("res_connection requires enc_inp_size == dec_out_size")

    f32 = jnp.float32
    Bp = _round_up(B, 8)
    Ep = _round_up(enc_in, 128)
    Hp = _round_up(hid, 128)
    Dp = _round_up(dec_out, 128)
    Gp = 4 * Hp

    Tc = _largest_divisor_leq(T, t_chunk_target)     # time-chunk length
    num_chunks = T // Tc
    unroll = Tc if Tc <= 8 else 8

    # ---- pad activations / state (zero padding is exact for this model) -------
    xp = jnp.zeros((T, Bp, Ep), f32).at[:, :B, :enc_in].set(x)
    x2d = xp.reshape(T * Bp, Ep)                     # flatten wrapper-side (no in-kernel reshape)
    h0p = jnp.zeros((nlayers, Bp, Hp), f32).at[:, :B, :hid].set(h0)
    c0p = jnp.zeros((nlayers, Bp, Hp), f32).at[:, :B, :hid].set(c0)

    # ---- pad weights; gate blocks scattered to lane-aligned 4*Hp slots --------
    def _pad_gate_cols(w):                           # (..., 4*hid) -> (..., 4*Hp)
        pads = [(0, 0)] * (w.ndim - 1) + [(0, Hp - hid)]
        parts = [jnp.pad(w[..., g * hid:(g + 1) * hid], pads) for g in range(4)]
        return jnp.concatenate(parts, axis=-1)

    enc_w_p = jnp.zeros((Ep, Hp), f32).at[:enc_in, :hid].set(enc_w_t).astype(weight_dtype)
    enc_b_p = jnp.zeros((1, Hp), f32).at[:, :hid].set(enc_b)

    wih_p = jnp.zeros((nlayers, Hp, Gp), f32).at[:, :hid, :].set(_pad_gate_cols(w_ih_t))
    whh_p = jnp.zeros((nlayers, Hp, Gp), f32).at[:, :hid, :].set(_pad_gate_cols(w_hh_t))
    wcat_p = jnp.concatenate([wih_p, whh_p], axis=1).astype(weight_dtype)  # (nl, 2Hp, Gp)
    lstm_b_p = _pad_gate_cols(lstm_b)                # (nlayers, 1, Gp), stays f32

    dec_w_p = jnp.zeros((Hp, Dp), f32).at[:hid, :dec_out].set(dec_w_t).astype(weight_dtype)
    dec_b_p = jnp.zeros((1, Dp), f32).at[:, :dec_out].set(dec_b)

    in_arrays = (x2d, h0p, c0p, enc_w_p, enc_b_p, wcat_p, lstm_b_p, dec_w_p, dec_b_p)

    # ---- VMEM budget computed from actual resident sizes (keep < 64 MiB on v7x)
    wsz = jnp.dtype(weight_dtype).itemsize
    per_block = (Tc * Bp * Ep * 4 + Tc * Bp * Dp * 4            # x / decoded chunks
                 + 4 * nlayers * Bp * Hp * 4                    # h0, c0, h_out, c_out
                 + Ep * Hp * wsz + Hp * 4                       # encoder
                 + nlayers * 2 * Hp * Gp * wsz + nlayers * Gp * 4  # LSTM weights + bias
                 + Hp * Dp * wsz + Dp * 4)                      # decoder
    scratch_bytes = Tc * Bp * (Gp + Hp) * 4
    vmem_needed = 2 * per_block + scratch_bytes                 # conservative: 2x-buffer all
    vmem_limit = int(min(max(vmem_needed + (4 << 20), 8 << 20), 96 << 20))

    # ---- advisory cost estimate ------------------------------------------------
    flops = int(2 * T * Bp * Ep * Hp                 # encoder
                + 2 * T * Bp * Hp * Gp               # hoisted layer-0 input proj
                + 2 * T * Bp * Hp * Gp               # layer-0 recurrence
                + 2 * T * (nlayers - 1) * Bp * (2 * Hp) * Gp
                + 2 * T * Bp * Hp * Dp)              # decoder
    transcendentals = int(5 * T * nlayers * Bp * Hp)
    out_bytes = 4 * (T * Bp * Dp + 2 * nlayers * Bp * Hp)
    bytes_accessed = int(sum(a.size * a.dtype.itemsize for a in in_arrays) + out_bytes)

    kernel = functools.partial(_rnn_predictor_kernel, t_chunk=Tc,
                               res_connection=res_connection, unroll=unroll)

    decoded2d, hT_p, cT_p = pl.pallas_call(
        kernel,
        out_shape=(
            jax.ShapeDtypeStruct((T * Bp, Dp), f32),
            jax.ShapeDtypeStruct((nlayers, Bp, Hp), f32),
            jax.ShapeDtypeStruct((nlayers, Bp, Hp), f32),
        ),
        grid_spec=pltpu.PrefetchScalarGridSpec(
            num_scalar_prefetch=0,
            grid=(num_chunks,),
            in_specs=[
                pl.BlockSpec((Tc * Bp, Ep), lambda t: (t, 0)),             # x chunk (streamed)
                pl.BlockSpec((nlayers, Bp, Hp), lambda t: (0, 0, 0)),      # h0 (resident)
                pl.BlockSpec((nlayers, Bp, Hp), lambda t: (0, 0, 0)),      # c0 (resident)
                pl.BlockSpec((Ep, Hp), lambda t: (0, 0)),                  # enc_w
                pl.BlockSpec((1, Hp), lambda t: (0, 0)),                   # enc_b
                pl.BlockSpec((nlayers, 2 * Hp, Gp), lambda t: (0, 0, 0)),  # wcat
                pl.BlockSpec((nlayers, 1, Gp), lambda t: (0, 0, 0)),       # lstm_b
                pl.BlockSpec((Hp, Dp), lambda t: (0, 0)),                  # dec_w
                pl.BlockSpec((1, Dp), lambda t: (0, 0)),                   # dec_b
            ],
            out_specs=[
                pl.BlockSpec((Tc * Bp, Dp), lambda t: (t, 0)),             # decoded chunk
                pl.BlockSpec((nlayers, Bp, Hp), lambda t: (0, 0, 0)),      # h_T (resident acc)
                pl.BlockSpec((nlayers, Bp, Hp), lambda t: (0, 0, 0)),      # c_T (resident acc)
            ],
            scratch_shapes=[
                pltpu.VMEM((Tc * Bp, Gp), f32),   # hoisted layer-0 input projections
                pltpu.VMEM((Tc * Bp, Hp), f32),   # top-layer hidden, all chunk rows
            ],
        ),
        compiler_params=pltpu.CompilerParams(
            dimension_semantics=("arbitrary",),
            vmem_limit_bytes=vmem_limit),
        cost_estimate=pl.CostEstimate(flops=flops,
                                      transcendentals=transcendentals,
                                      bytes_accessed=bytes_accessed),
    )(*in_arrays)

    decoded = decoded2d.reshape(T, Bp, Dp)[:, :B, :dec_out]
    h_T = hT_p[:, :B, :hid]
    c_T = cT_p[:, :B, :hid]
    return decoded, (h_T, c_T)


def ref_forward(x, h0, c0, enc_w_t, enc_b, w_ih_t, w_hh_t, lstm_b, dec_w_t, dec_b):
    """Pure-JAX reference reproducing the PyTorch forward (eval mode)."""
    T, B, E = x.shape
    nlayers, _, hid = h0.shape
    emb = (x.reshape(-1, E) @ enc_w_t + enc_b).reshape(T, B, hid)
    h = [h0[l] for l in range(nlayers)]
    c = [c0[l] for l in range(nlayers)]
    outs = []
    for t in range(T):
        xin = emb[t]
        for l in range(nlayers):
            gates = xin @ w_ih_t[l] + h[l] @ w_hh_t[l] + lstm_b[l]
            i_g = jax.nn.sigmoid(gates[:, :hid])
            f_g = jax.nn.sigmoid(gates[:, hid:2 * hid])
            g_g = jnp.tanh(gates[:, 2 * hid:3 * hid])
            o_g = jax.nn.sigmoid(gates[:, 3 * hid:])
            c[l] = f_g * c[l] + i_g * g_g
            h[l] = o_g * jnp.tanh(c[l])
            xin = h[l]
        outs.append(xin)
    out = jnp.stack(outs)
    dec = (out.reshape(-1, hid) @ dec_w_t + dec_b).reshape(T, B, -1)
    return dec, (jnp.stack(h), jnp.stack(c))


if __name__ == "__main__":
    # Small shapes consistent with the module: input (seq_len=T, batch=B, enc_inp_size)
    T, B = 8, 2
    ENC_IN = 4
    HID = 32          # rnn_inp_size == rnn_hid_size
    DEC_OUT = 4
    NLAYERS = 2
    initrange = 0.1

    key = jax.random.PRNGKey(0)
    ks = jax.random.split(key, 8)

    x = jax.random.normal(ks[0], (T, B, ENC_IN), jnp.float32)
    h0 = jnp.zeros((NLAYERS, B, HID), jnp.float32)
    c0 = jnp.zeros((NLAYERS, B, HID), jnp.float32)

    # encoder: weight ~ U(-0.1, 0.1) (init_weights), bias default Linear init
    enc_w_t = jax.random.uniform(ks[1], (ENC_IN, HID), jnp.float32, -initrange, initrange)
    enc_b = jax.random.uniform(ks[2], (1, HID), jnp.float32,
                               -1.0 / jnp.sqrt(ENC_IN), 1.0 / jnp.sqrt(ENC_IN))

    # LSTM weights: PyTorch default U(-1/sqrt(hid), 1/sqrt(hid)); gate order (i,f,g,o)
    k_lstm = 1.0 / jnp.sqrt(HID)
    w_ih_t = jax.random.uniform(ks[3], (NLAYERS, HID, 4 * HID), jnp.float32, -k_lstm, k_lstm)
    w_hh_t = jax.random.uniform(ks[4], (NLAYERS, HID, 4 * HID), jnp.float32, -k_lstm, k_lstm)
    b_ih = jax.random.uniform(ks[5], (NLAYERS, 1, 4 * HID), jnp.float32, -k_lstm, k_lstm)
    b_hh = jax.random.uniform(ks[6], (NLAYERS, 1, 4 * HID), jnp.float32, -k_lstm, k_lstm)
    lstm_b = b_ih + b_hh

    # decoder: weight ~ U(-0.1, 0.1), bias = 0 (init_weights)
    dec_w_t = jax.random.uniform(ks[7], (HID, DEC_OUT), jnp.float32, -initrange, initrange)
    dec_b = jnp.zeros((1, DEC_OUT), jnp.float32)

    dec_ref, (h_ref, c_ref) = ref_forward(
        x, h0, c0, enc_w_t, enc_b, w_ih_t, w_hh_t, lstm_b, dec_w_t, dec_b)

    # f32-weight path (tight tolerance); t_chunk_target=4 exercises 2 time chunks
    decoded, (h_T, c_T) = rnn_predictor_forward(
        x, h0, c0, enc_w_t, enc_b, w_ih_t, w_hh_t, lstm_b, dec_w_t, dec_b,
        weight_dtype=jnp.float32, t_chunk_target=4)
    jax.block_until_ready((decoded, h_T, c_T))
    assert jnp.allclose(decoded, dec_ref, rtol=1e-4, atol=1e-4)
    assert jnp.allclose(h_T, h_ref, rtol=1e-4, atol=1e-4)
    assert jnp.allclose(c_T, c_ref, rtol=1e-4, atol=1e-4)

    # bf16-weight path (MXU-native operands, f32 accumulate) — relaxed tolerance
    decoded_bf, (h_bf, c_bf) = rnn_predictor_forward(
        x, h0, c0, enc_w_t, enc_b, w_ih_t, w_hh_t, lstm_b, dec_w_t, dec_b,
        weight_dtype=jnp.bfloat16, t_chunk_target=4)
    jax.block_until_ready((decoded_bf, h_bf, c_bf))
    assert jnp.allclose(decoded_bf, dec_ref, rtol=5e-2, atol=5e-2)
    assert jnp.allclose(h_bf, h_ref, rtol=5e-2, atol=5e-2)
    assert jnp.allclose(c_bf, c_ref, rtol=5e-2, atol=5e-2)

    print("KERNEL_OK")
</pallas_src>

<mosaic_0001>
module attributes {stable_mosaic.version = 11 : i64} {
  func.func @_rnn_predictor_kernel(%arg0: i32, %arg1: memref<32x128xf32, #tpu.memory_space<vmem>>, %arg2: memref<2x8x128xf32, #tpu.memory_space<vmem>>, %arg3: memref<2x8x128xf32, #tpu.memory_space<vmem>>, %arg4: memref<128x128xf32, #tpu.memory_space<vmem>>, %arg5: memref<1x128xf32, #tpu.memory_space<vmem>>, %arg6: memref<2x256x512xf32, #tpu.memory_space<vmem>>, %arg7: memref<2x1x512xf32, #tpu.memory_space<vmem>>, %arg8: memref<128x128xf32, #tpu.memory_space<vmem>>, %arg9: memref<1x128xf32, #tpu.memory_space<vmem>>, %arg10: memref<32x128xf32, #tpu.memory_space<vmem>>, %arg11: memref<2x8x128xf32, #tpu.memory_space<vmem>>, %arg12: memref<2x8x128xf32, #tpu.memory_space<vmem>>, %arg13: memref<32x512xf32, #tpu.memory_space<vmem>>, %arg14: memref<32x128xf32, #tpu.memory_space<vmem>>) attributes {dimension_semantics = [#tpu.dimension_semantics<arbitrary>], iteration_bounds = array<i64: 2>, scalar_prefetch = 0 : i64, scratch_operands = 2 : i64, tpu.core_type = #tpu.core_type<tc>, window_params = [{transform_indices = @transform_0, window_bounds = array<i64: 32, 128>}, {pipeline_mode = #tpu.pipeline_mode<synchronous>, transform_indices = @transform_1, window_bounds = array<i64: 2, 8, 128>}, {pipeline_mode = #tpu.pipeline_mode<synchronous>, transform_indices = @transform_2, window_bounds = array<i64: 2, 8, 128>}, {pipeline_mode = #tpu.pipeline_mode<synchronous>, transform_indices = @transform_3, window_bounds = array<i64: 128, 128>}, {pipeline_mode = #tpu.pipeline_mode<synchronous>, transform_indices = @transform_4, window_bounds = array<i64: 1, 128>}, {pipeline_mode = #tpu.pipeline_mode<synchronous>, transform_indices = @transform_5, window_bounds = array<i64: 2, 256, 512>}, {pipeline_mode = #tpu.pipeline_mode<synchronous>, transform_indices = @transform_6, window_bounds = array<i64: 2, 1, 512>}, {pipeline_mode = #tpu.pipeline_mode<synchronous>, transform_indices = @transform_7, window_bounds = array<i64: 128, 128>}, {pipeline_mode = #tpu.pipeline_mode<synchronous>, transform_indices = @transform_8, window_bounds = array<i64: 1, 128>}, {transform_indices = @transform_9, window_bounds = array<i64: 32, 128>}, {pipeline_mode = #tpu.pipeline_mode<synchronous>, transform_indices = @transform_10, window_bounds = array<i64: 2, 8, 128>}, {pipeline_mode = #tpu.pipeline_mode<synchronous>, transform_indices = @transform_11, window_bounds = array<i64: 2, 8, 128>}]} {
    %c0_i32 = arith.constant 0 : i32
    %0 = arith.cmpi eq, %arg0, %c0_i32 : i32
    %1 = arith.extui %0 : i1 to i32
    %c0_i32_0 = arith.constant 0 : i32
    %2 = arith.cmpi ne, %1, %c0_i32_0 : i32
    scf.if %2 {
      %c0_165 = arith.constant 0 : index
      %c0_166 = arith.constant 0 : index
      %c0_167 = arith.constant 0 : index
      %356 = vector.load %arg2[%c0_165, %c0_166, %c0_167] : memref<2x8x128xf32, #tpu.memory_space<vmem>>, vector<2x8x128xf32>
      %c0_168 = arith.constant 0 : index
      %c0_169 = arith.constant 0 : index
      %c0_170 = arith.constant 0 : index
      %357 = vector.load %arg11[%c0_168, %c0_169, %c0_170] : memref<2x8x128xf32, #tpu.memory_space<vmem>>, vector<2x8x128xf32>
      tpu.vector_store %arg11[%c0_168, %c0_169, %c0_170], %356 {strides = array<i32>} : memref<2x8x128xf32, #tpu.memory_space<vmem>>, vector<2x8x128xf32>,
      %c0_171 = arith.constant 0 : index
      %c0_172 = arith.constant 0 : index
      %c0_173 = arith.constant 0 : index
      %358 = vector.load %arg3[%c0_171, %c0_172, %c0_173] : memref<2x8x128xf32, #tpu.memory_space<vmem>>, vector<2x8x128xf32>
      %c0_174 = arith.constant 0 : index
      %c0_175 = arith.constant 0 : index
      %c0_176 = arith.constant 0 : index
      %359 = vector.load %arg12[%c0_174, %c0_175, %c0_176] : memref<2x8x128xf32, #tpu.memory_space<vmem>>, vector<2x8x128xf32>
      tpu.vector_store %arg12[%c0_174, %c0_175, %c0_176], %358 {strides = array<i32>} : memref<2x8x128xf32, #tpu.memory_space<vmem>>, vector<2x8x128xf32>,
    } else {
    }
    %c0 = arith.constant 0 : index
    %c0_1 = arith.constant 0 : index
    %3 = vector.load %arg1[%c0, %c0_1] : memref<32x128xf32, #tpu.memory_space<vmem>>, vector<32x128xf32>
    %c0_2 = arith.constant 0 : index
    %c0_3 = arith.constant 0 : index
    %4 = vector.load %arg4[%c0_2, %c0_3] : memref<128x128xf32, #tpu.memory_space<vmem>>, vector<128x128xf32>
    %cst = arith.constant dense<0.000000e+00> : vector<32x128xf32>
    %5 = tpu.matmul %3, %4, %cst {dimension_numbers = #tpu.dot_dimension_numbers<[1], [0], [0], [1], [0, 0, 1, 1], [], []>} : vector<32x128xf32>, vector<128x128xf32>, vector<32x128xf32> -> vector<32x128xf32>
    %c0_4 = arith.constant 0 : index
    %c0_5 = arith.constant 0 : index
    %6 = vector.load %arg5[%c0_4, %c0_5] : memref<1x128xf32, #tpu.memory_space<vmem>>, vector<1x128xf32>
    %7 = vector.broadcast %6 : vector<1x128xf32> to vector<32x128xf32>
    %8 = arith.addf %5, %7 : vector<32x128xf32>
    %c0_6 = arith.constant 0 : index
    %c0_7 = arith.constant 0 : index
    %c0_8 = arith.constant 0 : index
    %9 = vector.load %arg6[%c0_6, %c0_7, %c0_8] : memref<2x256x512xf32, #tpu.memory_space<vmem>>, vector<1x128x512xf32>
    %10 = vector.shape_cast %9 : vector<1x128x512xf32> to vector<128x512xf32>
    %cst_9 = arith.constant dense<0.000000e+00> : vector<32x512xf32>
    %11 = tpu.matmul %8, %10, %cst_9 {dimension_numbers = #tpu.dot_dimension_numbers<[1], [0], [0], [1], [0, 0, 1, 1], [], []>} : vector<32x128xf32>, vector<128x512xf32>, vector<32x512xf32> -> vector<32x512xf32>
    %c0_10 = arith.constant 0 : index
    %c0_11 = arith.constant 0 : index
    %c0_12 = arith.constant 0 : index
    %12 = vector.load %arg7[%c0_10, %c0_11, %c0_12] : memref<2x1x512xf32, #tpu.memory_space<vmem>>, vector<1x1x512xf32>
    %13 = vector.shape_cast %12 : vector<1x1x512xf32> to vector<1x512xf32>
    %14 = vector.broadcast %13 : vector<1x512xf32> to vector<32x512xf32>
    %15 = arith.addf %11, %14 : vector<32x512xf32>
    %c0_13 = arith.constant 0 : index
    %c0_14 = arith.constant 0 : index
    %16 = vector.load %arg13[%c0_13, %c0_14] : memref<32x512xf32, #tpu.memory_space<vmem>>, vector<32x512xf32>
    tpu.vector_store %arg13[%c0_13, %c0_14], %15 {strides = array<i32>} : memref<32x512xf32, #tpu.memory_space<vmem>>, vector<32x512xf32>,
    %c1 = arith.constant 1 : index
    %c0_15 = arith.constant 0 : index
    %c0_16 = arith.constant 0 : index
    %17 = vector.load %arg7[%c1, %c0_15, %c0_16] : memref<2x1x512xf32, #tpu.memory_space<vmem>>, vector<1x1x512xf32>
    %18 = vector.shape_cast %17 : vector<1x1x512xf32> to vector<1x512xf32>
    %19 = vector.shape_cast %18 : vector<1x512xf32> to vector<1x512xf32>
    %20 = vector.broadcast %19 : vector<1x512xf32> to vector<8x512xf32>
    %c0_17 = arith.constant 0 : index
    %c0_18 = arith.constant 0 : index
    %c0_19 = arith.constant 0 : index
    %21 = vector.load %arg11[%c0_17, %c0_18, %c0_19] : memref<2x8x128xf32, #tpu.memory_space<vmem>>, vector<1x8x128xf32>
    %22 = vector.shape_cast %21 : vector<1x8x128xf32> to vector<8x128xf32>
    %c1_20 = arith.constant 1 : index
    %c0_21 = arith.constant 0 : index
    %c0_22 = arith.constant 0 : index
    %23 = vector.load %arg11[%c1_20, %c0_21, %c0_22] : memref<2x8x128xf32, #tpu.memory_space<vmem>>, vector<1x8x128xf32>
    %24 = vector.shape_cast %23 : vector<1x8x128xf32> to vector<8x128xf32>
    %c0_23 = arith.constant 0 : index
    %c0_24 = arith.constant 0 : index
    %c0_25 = arith.constant 0 : index
    %25 = vector.load %arg12[%c0_23, %c0_24, %c0_25] : memref<2x8x128xf32, #tpu.memory_space<vmem>>, vector<1x8x128xf32>
    %26 = vector.shape_cast %25 : vector<1x8x128xf32> to vector<8x128xf32>
    %c1_26 = arith.constant 1 : index
    %c0_27 = arith.constant 0 : index
    %c0_28 = arith.constant 0 : index
    %27 = vector.load %arg12[%c1_26, %c0_27, %c0_28] : memref<2x8x128xf32, #tpu.memory_space<vmem>>, vector<1x8x128xf32>
    %28 = vector.shape_cast %27 : vector<1x8x128xf32> to vector<8x128xf32>
    %c0_i32_29 = arith.constant 0 : i32
    %c8_i32 = arith.constant 8 : i32
    %29 = arith.muli %c0_i32_29, %c8_i32 : i32
    %30 = tpu.assume_multiple %29, 8 : i32
    %31 = arith.index_cast %30 : i32 to index
    %c0_30 = arith.constant 0 : index
    %32 = vector.load %arg13[%31, %c0_30] : memref<32x512xf32, #tpu.memory_space<vmem>>, vector<8x512xf32>
    %c0_31 = arith.constant 0 : index
    %c128 = arith.constant 128 : index
    %c0_32 = arith.constant 0 : index
    %33 = vector.load %arg6[%c0_31, %c128, %c0_32] : memref<2x256x512xf32, #tpu.memory_space<vmem>>, vector<1x128x512xf32>
    %34 = vector.shape_cast %33 : vector<1x128x512xf32> to vector<128x512xf32>
    %cst_33 = arith.constant dense<0.000000e+00> : vector<8x512xf32>
    %35 = tpu.matmul %22, %34, %cst_33 {dimension_numbers = #tpu.dot_dimension_numbers<[1], [0], [0], [1], [0, 0, 1, 1], [], []>} : vector<8x128xf32>, vector<128x512xf32>, vector<8x512xf32> -> vector<8x512xf32>
    %36 = arith.addf %32, %35 : vector<8x512xf32>
    %37 = vector.extract_strided_slice %36 {offsets = [0, 0], sizes = [8, 128], strides = [1, 1]} : vector<8x512xf32> to vector<8x128xf32>
    %cst_34 = arith.constant 5.000000e-01 : f32
    %38 = vector.broadcast %cst_34 : f32 to vector<8x128xf32>
    %39 = arith.mulf %38, %37 : vector<8x128xf32>
    %40 = math.tanh %39 : vector<8x128xf32>
    %cst_35 = arith.constant 5.000000e-01 : f32
    %41 = vector.broadcast %cst_35 : f32 to vector<8x128xf32>
    %42 = arith.mulf %41, %40 : vector<8x128xf32>
    %cst_36 = arith.constant 5.000000e-01 : f32
    %43 = vector.broadcast %cst_36 : f32 to vector<8x128xf32>
    %44 = arith.addf %42, %43 : vector<8x128xf32>
    %45 = vector.extract_strided_slice %36 {offsets = [0, 128], sizes = [8, 128], strides = [1, 1]} : vector<8x512xf32> to vector<8x128xf32>
    %cst_37 = arith.constant 5.000000e-01 : f32
    %46 = vector.broadcast %cst_37 : f32 to vector<8x128xf32>
    %47 = arith.mulf %46, %45 : vector<8x128xf32>
    %48 = math.tanh %47 : vector<8x128xf32>
    %cst_38 = arith.constant 5.000000e-01 : f32
    %49 = vector.broadcast %cst_38 : f32 to vector<8x128xf32>
    %50 = arith.mulf %49, %48 : vector<8x128xf32>
    %cst_39 = arith.constant 5.000000e-01 : f32
    %51 = vector.broadcast %cst_39 : f32 to vector<8x128xf32>
    %52 = arith.addf %50, %51 : vector<8x128xf32>
    %53 = vector.extract_strided_slice %36 {offsets = [0, 256], sizes = [8, 128], strides = [1, 1]} : vector<8x512xf32> to vector<8x128xf32>
    %54 = math.tanh %53 : vector<8x128xf32>
    %55 = vector.extract_strided_slice %36 {offsets = [0, 384], sizes = [8, 128], strides = [1, 1]} : vector<8x512xf32> to vector<8x128xf32>
    %cst_40 = arith.constant 5.000000e-01 : f32
    %56 = vector.broadcast %cst_40 : f32 to vector<8x128xf32>
    %57 = arith.mulf %56, %55 : vector<8x128xf32>
    %58 = math.tanh %57 : vector<8x128xf32>
    %cst_41 = arith.constant 5.000000e-01 : f32
    %59 = vector.broadcast %cst_41 : f32 to vector<8x128xf32>
    %60 = arith.mulf %59, %58 : vector<8x128xf32>
    %cst_42 = arith.constant 5.000000e-01 : f32
    %61 = vector.broadcast %cst_42 : f32 to vector<8x128xf32>
    %62 = arith.addf %60, %61 : vector<8x128xf32>
    %63 = arith.mulf %52, %26 : vector<8x128xf32>
    %64 = arith.mulf %44, %54 : vector<8x128xf32>
    %65 = arith.addf %63, %64 : vector<8x128xf32>
    %66 = math.tanh %65 : vector<8x128xf32>
    %67 = arith.mulf %62, %66 : vector<8x128xf32>
    %68 = tpu.concatenate %67, %24 in 1 : vector<8x128xf32>, vector<8x128xf32> -> vector<8x256xf32>
    %c1_43 = arith.constant 1 : index
    %c0_44 = arith.constant 0 : index
    %c0_45 = arith.constant 0 : index
    %69 = vector.load %arg6[%c1_43, %c0_44, %c0_45] : memref<2x256x512xf32, #tpu.memory_space<vmem>>, vector<1x256x512xf32>
    %70 = vector.shape_cast %69 : vector<1x256x512xf32> to vector<256x512xf32>
    %cst_46 = arith.constant dense<0.000000e+00> : vector<8x512xf32>
    %71 = tpu.matmul %68, %70, %cst_46 {dimension_numbers = #tpu.dot_dimension_numbers<[1], [0], [0], [1], [0, 0, 1, 1], [], []>} : vector<8x256xf32>, vector<256x512xf32>, vector<8x512xf32> -> vector<8x512xf32>
    %72 = arith.addf %71, %20 : vector<8x512xf32>
    %73 = vector.extract_strided_slice %72 {offsets = [0, 0], sizes = [8, 128], strides = [1, 1]} : vector<8x512xf32> to vector<8x128xf32>
    %cst_47 = arith.constant 5.000000e-01 : f32
    %74 = vector.broadcast %cst_47 : f32 to vector<8x128xf32>
    %75 = arith.mulf %74, %73 : vector<8x128xf32>
    %76 = math.tanh %75 : vector<8x128xf32>
    %cst_48 = arith.constant 5.000000e-01 : f32
    %77 = vector.broadcast %cst_48 : f32 to vector<8x128xf32>
    %78 = arith.mulf %77, %76 : vector<8x128xf32>
    %cst_49 = arith.constant 5.000000e-01 : f32
    %79 = vector.broadcast %cst_49 : f32 to vector<8x128xf32>
    %80 = arith.addf %78, %79 : vector<8x128xf32>
    %81 = vector.extract_strided_slice %72 {offsets = [0, 128], sizes = [8, 128], strides = [1, 1]} : vector<8x512xf32> to vector<8x128xf32>
    %cst_50 = arith.constant 5.000000e-01 : f32
    %82 = vector.broadcast %cst_50 : f32 to vector<8x128xf32>
    %83 = arith.mulf %82, %81 : vector<8x128xf32>
    %84 = math.tanh %83 : vector<8x128xf32>
    %cst_51 = arith.constant 5.000000e-01 : f32
    %85 = vector.broadcast %cst_51 : f32 to vector<8x128xf32>
    %86 = arith.mulf %85, %84 : vector<8x128xf32>
    %cst_52 = arith.constant 5.000000e-01 : f32
    %87 = vector.broadcast %cst_52 : f32 to vector<8x128xf32>
    %88 = arith.addf %86, %87 : vector<8x128xf32>
    %89 = vector.extract_strided_slice %72 {offsets = [0, 256], sizes = [8, 128], strides = [1, 1]} : vector<8x512xf32> to vector<8x128xf32>
    %90 = math.tanh %89 : vector<8x128xf32>
    %91 = vector.extract_strided_slice %72 {offsets = [0, 384], sizes = [8, 128], strides = [1, 1]} : vector<8x512xf32> to vector<8x128xf32>
    %cst_53 = arith.constant 5.000000e-01 : f32
    %92 = vector.broadcast %cst_53 : f32 to vector<8x128xf32>
    %93 = arith.mulf %92, %91 : vector<8x128xf32>
    %94 = math.tanh %93 : vector<8x128xf32>
    %cst_54 = arith.constant 5.000000e-01 : f32
    %95 = vector.broadcast %cst_54 : f32 to vector<8x128xf32>
    %96 = arith.mulf %95, %94 : vector<8x128xf32>
    %cst_55 = arith.constant 5.000000e-01 : f32
    %97 = vector.broadcast %cst_55 : f32 to vector<8x128xf32>
    %98 = arith.addf %96, %97 : vector<8x128xf32>
    %99 = arith.mulf %88, %28 : vector<8x128xf32>
    %100 = arith.mulf %80, %90 : vector<8x128xf32>
    %101 = arith.addf %99, %100 : vector<8x128xf32>
    %102 = math.tanh %101 : vector<8x128xf32>
    %103 = arith.mulf %98, %102 : vector<8x128xf32>
    %104 = arith.index_cast %30 : i32 to index
    %c0_56 = arith.constant 0 : index
    %105 = vector.load %arg14[%104, %c0_56] : memref<32x128xf32, #tpu.memory_space<vmem>>, vector<8x128xf32>
    tpu.vector_store %arg14[%104, %c0_56], %103 {strides = array<i32>} : memref<32x128xf32, #tpu.memory_space<vmem>>, vector<8x128xf32>,
    %c1_i32 = arith.constant 1 : i32
    %c8_i32_57 = arith.constant 8 : i32
    %106 = arith.muli %c1_i32, %c8_i32_57 : i32
    %107 = tpu.assume_multiple %106, 8 : i32
    %108 = arith.index_cast %107 : i32 to index
    %c0_58 = arith.constant 0 : index
    %109 = vector.load %arg13[%108, %c0_58] : memref<32x512xf32, #tpu.memory_space<vmem>>, vector<8x512xf32>
    %c0_59 = arith.constant 0 : index
    %c128_60 = arith.constant 128 : index
    %c0_61 = arith.constant 0 : index
    %110 = vector.load %arg6[%c0_59, %c128_60, %c0_61] : memref<2x256x512xf32, #tpu.memory_space<vmem>>, vector<1x128x512xf32>
    %111 = vector.shape_cast %110 : vector<1x128x512xf32> to vector<128x512xf32>
    %cst_62 = arith.constant dense<0.000000e+00> : vector<8x512xf32>
    %112 = tpu.matmul %67, %111, %cst_62 {dimension_numbers = #tpu.dot_dimension_numbers<[1], [0], [0], [1], [0, 0, 1, 1], [], []>} : vector<8x128xf32>, vector<128x512xf32>, vector<8x512xf32> -> vector<8x512xf32>
    %113 = arith.addf %109, %112 : vector<8x512xf32>
    %114 = vector.extract_strided_slice %113 {offsets = [0, 0], sizes = [8, 128], strides = [1, 1]} : vector<8x512xf32> to vector<8x128xf32>
    %cst_63 = arith.constant 5.000000e-01 : f32
    %115 = vector.broadcast %cst_63 : f32 to vector<8x128xf32>
    %116 = arith.mulf %115, %114 : vector<8x128xf32>
    %117 = math.tanh %116 : vector<8x128xf32>
    %cst_64 = arith.constant 5.000000e-01 : f32
    %118 = vector.broadcast %cst_64 : f32 to vector<8x128xf32>
    %119 = arith.mulf %118, %117 : vector<8x128xf32>
    %cst_65 = arith.constant 5.000000e-01 : f32
    %120 = vector.broadcast %cst_65 : f32 to vector<8x128xf32>
    %121 = arith.addf %119, %120 : vector<8x128xf32>
    %122 = vector.extract_strided_slice %113 {offsets = [0, 128], sizes = [8, 128], strides = [1, 1]} : vector<8x512xf32> to vector<8x128xf32>
    %cst_66 = arith.constant 5.000000e-01 : f32
    %123 = vector.broadcast %cst_66 : f32 to vector<8x128xf32>
    %124 = arith.mulf %123, %122 : vector<8x128xf32>
    %125 = math.tanh %124 : vector<8x128xf32>
    %cst_67 = arith.constant 5.000000e-01 : f32
    %126 = vector.broadcast %cst_67 : f32 to vector<8x128xf32>
    %127 = arith.mulf %126, %125 : vector<8x128xf32>
    %cst_68 = arith.constant 5.000000e-01 : f32
    %128 = vector.broadcast %cst_68 : f32 to vector<8x128xf32>
    %129 = arith.addf %127, %128 : vector<8x128xf32>
    %130 = vector.extract_strided_slice %113 {offsets = [0, 256], sizes = [8, 128], strides = [1, 1]} : vector<8x512xf32> to vector<8x128xf32>
    %131 = math.tanh %130 : vector<8x128xf32>
    %132 = vector.extract_strided_slice %113 {offsets = [0, 384], sizes = [8, 128], strides = [1, 1]} : vector<8x512xf32> to vector<8x128xf32>
    %cst_69 = arith.constant 5.000000e-01 : f32
    %133 = vector.broadcast %cst_69 : f32 to vector<8x128xf32>
    %134 = arith.mulf %133, %132 : vector<8x128xf32>
    %135 = math.tanh %134 : vector<8x128xf32>
    %cst_70 = arith.constant 5.000000e-01 : f32
    %136 = vector.broadcast %cst_70 : f32 to vector<8x128xf32>
    %137 = arith.mulf %136, %135 : vector<8x128xf32>
    %cst_71 = arith.constant 5.000000e-01 : f32
    %138 = vector.broadcast %cst_71 : f32 to vector<8x128xf32>
    %139 = arith.addf %137, %138 : vector<8x128xf32>
    %140 = arith.mulf %129, %65 : vector<8x128xf32>
    %141 = arith.mulf %121, %131 : vector<8x128xf32>
    %142 = arith.addf %140, %141 : vector<8x128xf32>
    %143 = math.tanh %142 : vector<8x128xf32>
    %144 = arith.mulf %139, %143 : vector<8x128xf32>
    %145 = tpu.concatenate %144, %103 in 1 : vector<8x128xf32>, vector<8x128xf32> -> vector<8x256xf32>
    %c1_72 = arith.constant 1 : index
    %c0_73 = arith.constant 0 : index
    %c0_74 = arith.constant 0 : index
    %146 = vector.load %arg6[%c1_72, %c0_73, %c0_74] : memref<2x256x512xf32, #tpu.memory_space<vmem>>, vector<1x256x512xf32>
    %147 = vector.shape_cast %146 : vector<1x256x512xf32> to vector<256x512xf32>
    %cst_75 = arith.constant dense<0.000000e+00> : vector<8x512xf32>
    %148 = tpu.matmul %145, %147, %cst_75 {dimension_numbers = #tpu.dot_dimension_numbers<[1], [0], [0], [1], [0, 0, 1, 1], [], []>} : vector<8x256xf32>, vector<256x512xf32>, vector<8x512xf32> -> vector<8x512xf32>
    %149 = arith.addf %148, %20 : vector<8x512xf32>
    %150 = vector.extract_strided_slice %149 {offsets = [0, 0], sizes = [8, 128], strides = [1, 1]} : vector<8x512xf32> to vector<8x128xf32>
    %cst_76 = arith.constant 5.000000e-01 : f32
    %151 = vector.broadcast %cst_76 : f32 to vector<8x128xf32>
    %152 = arith.mulf %151, %150 : vector<8x128xf32>
    %153 = math.tanh %152 : vector<8x128xf32>
    %cst_77 = arith.constant 5.000000e-01 : f32
    %154 = vector.broadcast %cst_77 : f32 to vector<8x128xf32>
    %155 = arith.mulf %154, %153 : vector<8x128xf32>
    %cst_78 = arith.constant 5.000000e-01 : f32
    %156 = vector.broadcast %cst_78 : f32 to vector<8x128xf32>
    %157 = arith.addf %155, %156 : vector<8x128xf32>
    %158 = vector.extract_strided_slice %149 {offsets = [0, 128], sizes = [8, 128], strides = [1, 1]} : vector<8x512xf32> to vector<8x128xf32>
    %cst_79 = arith.constant 5.000000e-01 : f32
    %159 = vector.broadcast %cst_79 : f32 to vector<8x128xf32>
    %160 = arith.mulf %159, %158 : vector<8x128xf32>
    %161 = math.tanh %160 : vector<8x128xf32>
    %cst_80 = arith.constant 5.000000e-01 : f32
    %162 = vector.broadcast %cst_80 : f32 to vector<8x128xf32>
    %163 = arith.mulf %162, %161 : vector<8x128xf32>
    %cst_81 = arith.constant 5.000000e-01 : f32
    %164 = vector.broadcast %cst_81 : f32 to vector<8x128xf32>
    %165 = arith.addf %163, %164 : vector<8x128xf32>
    %166 = vector.extract_strided_slice %149 {offsets = [0, 256], sizes = [8, 128], strides = [1, 1]} : vector<8x512xf32> to vector<8x128xf32>
    %167 = math.tanh %166 : vector<8x128xf32>
    %168 = vector.extract_strided_slice %149 {offsets = [0, 384], sizes = [8, 128], strides = [1, 1]} : vector<8x512xf32> to vector<8x128xf32>
    %cst_82 = arith.constant 5.000000e-01 : f32
    %169 = vector.broadcast %cst_82 : f32 to vector<8x128xf32>
    %170 = arith.mulf %169, %168 : vector<8x128xf32>
    %171 = math.tanh %170 : vector<8x128xf32>
    %cst_83 = arith.constant 5.000000e-01 : f32
    %172 = vector.broadcast %cst_83 : f32 to vector<8x128xf32>
    %173 = arith.mulf %172, %171 : vector<8x128xf32>
    %cst_84 = arith.constant 5.000000e-01 : f32
    %174 = vector.broadcast %cst_84 : f32 to vector<8x128xf32>
    %175 = arith.addf %173, %174 : vector<8x128xf32>
    %176 = arith.mulf %165, %101 : vector<8x128xf32>
    %177 = arith.mulf %157, %167 : vector<8x128xf32>
    %178 = arith.addf %176, %177 : vector<8x128xf32>
    %179 = math.tanh %178 : vector<8x128xf32>
    %180 = arith.mulf %175, %179 : vector<8x128xf32>
    %181 = arith.index_cast %107 : i32 to index
    %c0_85 = arith.constant 0 : index
    %182 = vector.load %arg14[%181, %c0_85] : memref<32x128xf32, #tpu.memory_space<vmem>>, vector<8x128xf32>
    tpu.vector_store %arg14[%181, %c0_85], %180 {strides = array<i32>} : memref<32x128xf32, #tpu.memory_space<vmem>>, vector<8x128xf32>,
    %c2_i32 = arith.constant 2 : i32
    %c8_i32_86 = arith.constant 8 : i32
    %183 = arith.muli %c2_i32, %c8_i32_86 : i32
    %184 = tpu.assume_multiple %183, 8 : i32
    %185 = arith.index_cast %184 : i32 to index
    %c0_87 = arith.constant 0 : index
    %186 = vector.load %arg13[%185, %c0_87] : memref<32x512xf32, #tpu.memory_space<vmem>>, vector<8x512xf32>
    %c0_88 = arith.constant 0 : index
    %c128_89 = arith.constant 128 : index
    %c0_90 = arith.constant 0 : index
    %187 = vector.load %arg6[%c0_88, %c128_89, %c0_90] : memref<2x256x512xf32, #tpu.memory_space<vmem>>, vector<1x128x512xf32>
    %188 = vector.shape_cast %187 : vector<1x128x512xf32> to vector<128x512xf32>
    %cst_91 = arith.constant dense<0.000000e+00> : vector<8x512xf32>
    %189 = tpu.matmul %144, %188, %cst_91 {dimension_numbers = #tpu.dot_dimension_numbers<[1], [0], [0], [1], [0, 0, 1, 1], [], []>} : vector<8x128xf32>, vector<128x512xf32>, vector<8x512xf32> -> vector<8x512xf32>
    %190 = arith.addf %186, %189 : vector<8x512xf32>
    %191 = vector.extract_strided_slice %190 {offsets = [0, 0], sizes = [8, 128], strides = [1, 1]} : vector<8x512xf32> to vector<8x128xf32>
    %cst_92 = arith.constant 5.000000e-01 : f32
    %192 = vector.broadcast %cst_92 : f32 to vector<8x128xf32>
    %193 = arith.mulf %192, %191 : vector<8x128xf32>
    %194 = math.tanh %193 : vector<8x128xf32>
    %cst_93 = arith.constant 5.000000e-01 : f32
    %195 = vector.broadcast %cst_93 : f32 to vector<8x128xf32>
    %196 = arith.mulf %195, %194 : vector<8x128xf32>
    %cst_94 = arith.constant 5.000000e-01 : f32
    %197 = vector.broadcast %cst_94 : f32 to vector<8x128xf32>
    %198 = arith.addf %196, %197 : vector<8x128xf32>
    %199 = vector.extract_strided_slice %190 {offsets = [0, 128], sizes = [8, 128], strides = [1, 1]} : vector<8x512xf32> to vector<8x128xf32>
    %cst_95 = arith.constant 5.000000e-01 : f32
    %200 = vector.broadcast %cst_95 : f32 to vector<8x128xf32>
    %201 = arith.mulf %200, %199 : vector<8x128xf32>
    %202 = math.tanh %201 : vector<8x128xf32>
    %cst_96 = arith.constant 5.000000e-01 : f32
    %203 = vector.broadcast %cst_96 : f32 to vector<8x128xf32>
    %204 = arith.mulf %203, %202 : vector<8x128xf32>
    %cst_97 = arith.constant 5.000000e-01 : f32
    %205 = vector.broadcast %cst_97 : f32 to vector<8x128xf32>
    %206 = arith.addf %204, %205 : vector<8x128xf32>
    %207 = vector.extract_strided_slice %190 {offsets = [0, 256], sizes = [8, 128], strides = [1, 1]} : vector<8x512xf32> to vector<8x128xf32>
    %208 = math.tanh %207 : vector<8x128xf32>
    %209 = vector.extract_strided_slice %190 {offsets = [0, 384], sizes = [8, 128], strides = [1, 1]} : vector<8x512xf32> to vector<8x128xf32>
    %cst_98 = arith.constant 5.000000e-01 : f32
    %210 = vector.broadcast %cst_98 : f32 to vector<8x128xf32>
    %211 = arith.mulf %210, %209 : vector<8x128xf32>
    %212 = math.tanh %211 : vector<8x128xf32>
    %cst_99 = arith.constant 5.000000e-01 : f32
    %213 = vector.broadcast %cst_99 : f32 to vector<8x128xf32>
    %214 = arith.mulf %213, %212 : vector<8x128xf32>
    %cst_100 = arith.constant 5.000000e-01 : f32
    %215 = vector.broadcast %cst_100 : f32 to vector<8x128xf32>
    %216 = arith.addf %214, %215 : vector<8x128xf32>
    %217 = arith.mulf %206, %142 : vector<8x128xf32>
    %218 = arith.mulf %198, %208 : vector<8x128xf32>
    %219 = arith.addf %217, %218 : vector<8x128xf32>
    %220 = math.tanh %219 : vector<8x128xf32>
    %221 = arith.mulf %216, %220 : vector<8x128xf32>
    %222 = tpu.concatenate %221, %180 in 1 : vector<8x128xf32>, vector<8x128xf32> -> vector<8x256xf32>
    %c1_101 = arith.constant 1 : index
    %c0_102 = arith.constant 0 : index
    %c0_103 = arith.constant 0 : index
    %223 = vector.load %arg6[%c1_101, %c0_102, %c0_103] : memref<2x256x512xf32, #tpu.memory_space<vmem>>, vector<1x256x512xf32>
    %224 = vector.shape_cast %223 : vector<1x256x512xf32> to vector<256x512xf32>
    %cst_104 = arith.constant dense<0.000000e+00> : vector<8x512xf32>
    %225 = tpu.matmul %222, %224, %cst_104 {dimension_numbers = #tpu.dot_dimension_numbers<[1], [0], [0], [1], [0, 0, 1, 1], [], []>} : vector<8x256xf32>, vector<256x512xf32>, vector<8x512xf32> -> vector<8x512xf32>
    %226 = arith.addf %225, %20 : vector<8x512xf32>
    %227 = vector.extract_strided_slice %226 {offsets = [0, 0], sizes = [8, 128], strides = [1, 1]} : vector<8x512xf32> to vector<8x128xf32>
    %cst_105 = arith.constant 5.000000e-01 : f32
    %228 = vector.broadcast %cst_105 : f32 to vector<8x128xf32>
    %229 = arith.mulf %228, %227 : vector<8x128xf32>
    %230 = math.tanh %229 : vector<8x128xf32>
    %cst_106 = arith.constant 5.000000e-01 : f32
    %231 = vector.broadcast %cst_106 : f32 to vector<8x128xf32>
    %232 = arith.mulf %231, %230 : vector<8x128xf32>
    %cst_107 = arith.constant 5.000000e-01 : f32
    %233 = vector.broadcast %cst_107 : f32 to vector<8x128xf32>
    %234 = arith.addf %232, %233 : vector<8x128xf32>
    %235 = vector.extract_strided_slice %226 {offsets = [0, 128], sizes = [8, 128], strides = [1, 1]} : vector<8x512xf32> to vector<8x128xf32>
    %cst_108 = arith.constant 5.000000e-01 : f32
    %236 = vector.broadcast %cst_108 : f32 to vector<8x128xf32>
    %237 = arith.mulf %236, %235 : vector<8x128xf32>
    %238 = math.tanh %237 : vector<8x128xf32>
    %cst_109 = arith.constant 5.000000e-01 : f32
    %239 = vector.broadcast %cst_109 : f32 to vector<8x128xf32>
    %240 = arith.mulf %239, %238 : vector<8x128xf32>
    %cst_110 = arith.constant 5.000000e-01 : f32
    %241 = vector.broadcast %cst_110 : f32 to vector<8x128xf32>
    %242 = arith.addf %240, %241 : vector<8x128xf32>
    %243 = vector.extract_strided_slice %226 {offsets = [0, 256], sizes = [8, 128], strides = [1, 1]} : vector<8x512xf32> to vector<8x128xf32>
    %244 = math.tanh %243 : vector<8x128xf32>
    %245 = vector.extract_strided_slice %226 {offsets = [0, 384], sizes = [8, 128], strides = [1, 1]} : vector<8x512xf32> to vector<8x128xf32>
    %cst_111 = arith.constant 5.000000e-01 : f32
    %246 = vector.broadcast %cst_111 : f32 to vector<8x128xf32>
    %247 = arith.mulf %246, %245 : vector<8x128xf32>
    %248 = math.tanh %247 : vector<8x128xf32>
    %cst_112 = arith.constant 5.000000e-01 : f32
    %249 = vector.broadcast %cst_112 : f32 to vector<8x128xf32>
    %250 = arith.mulf %249, %248 : vector<8x128xf32>
    %cst_113 = arith.constant 5.000000e-01 : f32
    %251 = vector.broadcast %cst_113 : f32 to vector<8x128xf32>
    %252 = arith.addf %250, %251 : vector<8x128xf32>
    %253 = arith.mulf %242, %178 : vector<8x128xf32>
    %254 = arith.mulf %234, %244 : vector<8x128xf32>
    %255 = arith.addf %253, %254 : vector<8x128xf32>
    %256 = math.tanh %255 : vector<8x128xf32>
    %257 = arith.mulf %252, %256 : vector<8x128xf32>
    %258 = arith.index_cast %184 : i32 to index
    %c0_114 = arith.constant 0 : index
    %259 = vector.load %arg14[%258, %c0_114] : memref<32x128xf32, #tpu.memory_space<vmem>>, vector<8x128xf32>
    tpu.vector_store %arg14[%258, %c0_114], %257 {strides = array<i32>} : memref<32x128xf32, #tpu.memory_space<vmem>>, vector<8x128xf32>,
    %c3_i32 = arith.constant 3 : i32
    %c8_i32_115 = arith.constant 8 : i32
    %260 = arith.muli %c3_i32, %c8_i32_115 : i32
    %261 = tpu.assume_multiple %260, 8 : i32
    %262 = arith.index_cast %261 : i32 to index
    %c0_116 = arith.constant 0 : index
    %263 = vector.load %arg13[%262, %c0_116] : memref<32x512xf32, #tpu.memory_space<vmem>>, vector<8x512xf32>
    %c0_117 = arith.constant 0 : index
    %c128_118 = arith.constant 128 : index
    %c0_119 = arith.constant 0 : index
    %264 = vector.load %arg6[%c0_117, %c128_118, %c0_119] : memref<2x256x512xf32, #tpu.memory_space<vmem>>, vector<1x128x512xf32>
    %265 = vector.shape_cast %264 : vector<1x128x512xf32> to vector<128x512xf32>
    %cst_120 = arith.constant dense<0.000000e+00> : vector<8x512xf32>
    %266 = tpu.matmul %221, %265, %cst_120 {dimension_numbers = #tpu.dot_dimension_numbers<[1], [0], [0], [1], [0, 0, 1, 1], [], []>} : vector<8x128xf32>, vector<128x512xf32>, vector<8x512xf32> -> vector<8x512xf32>
    %267 = arith.addf %263, %266 : vector<8x512xf32>
    %268 = vector.extract_strided_slice %267 {offsets = [0, 0], sizes = [8, 128], strides = [1, 1]} : vector<8x512xf32> to vector<8x128xf32>
    %cst_121 = arith.constant 5.000000e-01 : f32
    %269 = vector.broadcast %cst_121 : f32 to vector<8x128xf32>
    %270 = arith.mulf %269, %268 : vector<8x128xf32>
    %271 = math.tanh %270 : vector<8x128xf32>
    %cst_122 = arith.constant 5.000000e-01 : f32
    %272 = vector.broadcast %cst_122 : f32 to vector<8x128xf32>
    %273 = arith.mulf %272, %271 : vector<8x128xf32>
    %cst_123 = arith.constant 5.000000e-01 : f32
    %274 = vector.broadcast %cst_123 : f32 to vector<8x128xf32>
    %275 = arith.addf %273, %274 : vector<8x128xf32>
    %276 = vector.extract_strided_slice %267 {offsets = [0, 128], sizes = [8, 128], strides = [1, 1]} : vector<8x512xf32> to vector<8x128xf32>
    %cst_124 = arith.constant 5.000000e-01 : f32
    %277 = vector.broadcast %cst_124 : f32 to vector<8x128xf32>
    %278 = arith.mulf %277, %276 : vector<8x128xf32>
    %279 = math.tanh %278 : vector<8x128xf32>
    %cst_125 = arith.constant 5.000000e-01 : f32
    %280 = vector.broadcast %cst_125 : f32 to vector<8x128xf32>
    %281 = arith.mulf %280, %279 : vector<8x128xf32>
    %cst_126 = arith.constant 5.000000e-01 : f32
    %282 = vector.broadcast %cst_126 : f32 to vector<8x128xf32>
    %283 = arith.addf %281, %282 : vector<8x128xf32>
    %284 = vector.extract_strided_slice %267 {offsets = [0, 256], sizes = [8, 128], strides = [1, 1]} : vector<8x512xf32> to vector<8x128xf32>
    %285 = math.tanh %284 : vector<8x128xf32>
    %286 = vector.extract_strided_slice %267 {offsets = [0, 384], sizes = [8, 128], strides = [1, 1]} : vector<8x512xf32> to vector<8x128xf32>
    %cst_127 = arith.constant 5.000000e-01 : f32
    %287 = vector.broadcast %cst_127 : f32 to vector<8x128xf32>
    %288 = arith.mulf %287, %286 : vector<8x128xf32>
    %289 = math.tanh %288 : vector<8x128xf32>
    %cst_128 = arith.constant 5.000000e-01 : f32
    %290 = vector.broadcast %cst_128 : f32 to vector<8x128xf32>
    %291 = arith.mulf %290, %289 : vector<8x128xf32>
    %cst_129 = arith.constant 5.000000e-01 : f32
    %292 = vector.broadcast %cst_129 : f32 to vector<8x128xf32>
    %293 = arith.addf %291, %292 : vector<8x128xf32>
    %294 = arith.mulf %283, %219 : vector<8x128xf32>
    %295 = arith.mulf %275, %285 : vector<8x128xf32>
    %296 = arith.addf %294, %295 : vector<8x128xf32>
    %297 = math.tanh %296 : vector<8x128xf32>
    %298 = arith.mulf %293, %297 : vector<8x128xf32>
    %299 = tpu.concatenate %298, %257 in 1 : vector<8x128xf32>, vector<8x128xf32> -> vector<8x256xf32>
    %c1_130 = arith.constant 1 : index
    %c0_131 = arith.constant 0 : index
    %c0_132 = arith.constant 0 : index
    %300 = vector.load %arg6[%c1_130, %c0_131, %c0_132] : memref<2x256x512xf32, #tpu.memory_space<vmem>>, vector<1x256x512xf32>
    %301 = vector.shape_cast %300 : vector<1x256x512xf32> to vector<256x512xf32>
    %cst_133 = arith.constant dense<0.000000e+00> : vector<8x512xf32>
    %302 = tpu.matmul %299, %301, %cst_133 {dimension_numbers = #tpu.dot_dimension_numbers<[1], [0], [0], [1], [0, 0, 1, 1], [], []>} : vector<8x256xf32>, vector<256x512xf32>, vector<8x512xf32> -> vector<8x512xf32>
    %303 = arith.addf %302, %20 : vector<8x512xf32>
    %304 = vector.extract_strided_slice %303 {offsets = [0, 0], sizes = [8, 128], strides = [1, 1]} : vector<8x512xf32> to vector<8x128xf32>
    %cst_134 = arith.constant 5.000000e-01 : f32
    %305 = vector.broadcast %cst_134 : f32 to vector<8x128xf32>
    %306 = arith.mulf %305, %304 : vector<8x128xf32>
    %307 = math.tanh %306 : vector<8x128xf32>
    %cst_135 = arith.constant 5.000000e-01 : f32
    %308 = vector.broadcast %cst_135 : f32 to vector<8x128xf32>
    %309 = arith.mulf %308, %307 : vector<8x128xf32>
    %cst_136 = arith.constant 5.000000e-01 : f32
    %310 = vector.broadcast %cst_136 : f32 to vector<8x128xf32>
    %311 = arith.addf %309, %310 : vector<8x128xf32>
    %312 = vector.extract_strided_slice %303 {offsets = [0, 128], sizes = [8, 128], strides = [1, 1]} : vector<8x512xf32> to vector<8x128xf32>
    %cst_137 = arith.constant 5.000000e-01 : f32
    %313 = vector.broadcast %cst_137 : f32 to vector<8x128xf32>
    %314 = arith.mulf %313, %312 : vector<8x128xf32>
    %315 = math.tanh %314 : vector<8x128xf32>
    %cst_138 = arith.constant 5.000000e-01 : f32
    %316 = vector.broadcast %cst_138 : f32 to vector<8x128xf32>
    %317 = arith.mulf %316, %315 : vector<8x128xf32>
    %cst_139 = arith.constant 5.000000e-01 : f32
    %318 = vector.broadcast %cst_139 : f32 to vector<8x128xf32>
    %319 = arith.addf %317, %318 : vector<8x128xf32>
    %320 = vector.extract_strided_slice %303 {offsets = [0, 256], sizes = [8, 128], strides = [1, 1]} : vector<8x512xf32> to vector<8x128xf32>
    %321 = math.tanh %320 : vector<8x128xf32>
    %322 = vector.extract_strided_slice %303 {offsets = [0, 384], sizes = [8, 128], strides = [1, 1]} : vector<8x512xf32> to vector<8x128xf32>
    %cst_140 = arith.constant 5.000000e-01 : f32
    %323 = vector.broadcast %cst_140 : f32 to vector<8x128xf32>
    %324 = arith.mulf %323, %322 : vector<8x128xf32>
    %325 = math.tanh %324 : vector<8x128xf32>
    %cst_141 = arith.constant 5.000000e-01 : f32
    %326 = vector.broadcast %cst_141 : f32 to vector<8x128xf32>
    %327 = arith.mulf %326, %325 : vector<8x128xf32>
    %cst_142 = arith.constant 5.000000e-01 : f32
    %328 = vector.broadcast %cst_142 : f32 to vector<8x128xf32>
    %329 = arith.addf %327, %328 : vector<8x128xf32>
    %330 = arith.mulf %319, %255 : vector<8x128xf32>
    %331 = arith.mulf %311, %321 : vector<8x128xf32>
    %332 = arith.addf %330, %331 : vector<8x128xf32>
    %333 = math.tanh %332 : vector<8x128xf32>
    %334 = arith.mulf %329, %333 : vector<8x128xf32>
    %335 = arith.index_cast %261 : i32 to index
    %c0_143 = arith.constant 0 : index
    %336 = vector.load %arg14[%335, %c0_143] : memref<32x128xf32, #tpu.memory_space<vmem>>, vector<8x128xf32>
    tpu.vector_store %arg14[%335, %c0_143], %334 {strides = array<i32>} : memref<32x128xf32, #tpu.memory_space<vmem>>, vector<8x128xf32>,
    %c4_i32 = arith.constant 4 : i32
    %c0_144 = arith.constant 0 : index
    %c0_145 = arith.constant 0 : index
    %c0_146 = arith.constant 0 : index
    %337 = vector.load %arg11[%c0_144, %c0_145, %c0_146] : memref<2x8x128xf32, #tpu.memory_space<vmem>>, vector<1x8x128xf32>
    %338 = vector.shape_cast %337 : vector<1x8x128xf32> to vector<8x128xf32>
    %339 = vector.shape_cast %298 : vector<8x128xf32> to vector<1x8x128xf32>
    tpu.vector_store %arg11[%c0_144, %c0_145, %c0_146], %339 {strides = array<i32>} : memref<2x8x128xf32, #tpu.memory_space<vmem>>, vector<1x8x128xf32>,
    %c0_147 = arith.constant 0 : index
    %c0_148 = arith.constant 0 : index
    %c0_149 = arith.constant 0 : index
    %340 = vector.load %arg12[%c0_147, %c0_148, %c0_149] : memref<2x8x128xf32, #tpu.memory_space<vmem>>, vector<1x8x128xf32>
    %341 = vector.shape_cast %340 : vector<1x8x128xf32> to vector<8x128xf32>
    %342 = vector.shape_cast %296 : vector<8x128xf32> to vector<1x8x128xf32>
    tpu.vector_store %arg12[%c0_147, %c0_148, %c0_149], %342 {strides = array<i32>} : memref<2x8x128xf32, #tpu.memory_space<vmem>>, vector<1x8x128xf32>,
    %c1_150 = arith.constant 1 : index
    %c0_151 = arith.constant 0 : index
    %c0_152 = arith.constant 0 : index
    %343 = vector.load %arg11[%c1_150, %c0_151, %c0_152] : memref<2x8x128xf32, #tpu.memory_space<vmem>>, vector<1x8x128xf32>
    %344 = vector.shape_cast %343 : vector<1x8x128xf32> to vector<8x128xf32>
    %345 = vector.shape_cast %334 : vector<8x128xf32> to vector<1x8x128xf32>
    tpu.vector_store %arg11[%c1_150, %c0_151, %c0_152], %345 {strides = array<i32>} : memref<2x8x128xf32, #tpu.memory_space<vmem>>, vector<1x8x128xf32>,
    %c1_153 = arith.constant 1 : index
    %c0_154 = arith.constant 0 : index
    %c0_155 = arith.constant 0 : index
    %346 = vector.load %arg12[%c1_153, %c0_154, %c0_155] : memref<2x8x128xf32, #tpu.memory_space<vmem>>, vector<1x8x128xf32>
    %347 = vector.shape_cast %346 : vector<1x8x128xf32> to vector<8x128xf32>
    %348 = vector.shape_cast %332 : vector<8x128xf32> to vector<1x8x128xf32>
    tpu.vector_store %arg12[%c1_153, %c0_154, %c0_155], %348 {strides = array<i32>} : memref<2x8x128xf32, #tpu.memory_space<vmem>>, vector<1x8x128xf32>,
    %c0_156 = arith.constant 0 : index
    %c0_157 = arith.constant 0 : index
    %349 = vector.load %arg14[%c0_156, %c0_157] : memref<32x128xf32, #tpu.memory_space<vmem>>, vector<32x128xf32>
    %c0_158 = arith.constant 0 : index
    %c0_159 = arith.constant 0 : index
    %350 = vector.load %arg8[%c0_158, %c0_159] : memref<128x128xf32, #tpu.memory_space<vmem>>, vector<128x128xf32>
    %cst_160 = arith.constant dense<0.000000e+00> : vector<32x128xf32>
    %351 = tpu.matmul %349, %350, %cst_160 {dimension_numbers = #tpu.dot_dimension_numbers<[1], [0], [0], [1], [0, 0, 1, 1], [], []>} : vector<32x128xf32>, vector<128x128xf32>, vector<32x128xf32> -> vector<32x128xf32>
    %c0_161 = arith.constant 0 : index
    %c0_162 = arith.constant 0 : index
    %352 = vector.load %arg9[%c0_161, %c0_162] : memref<1x128xf32, #tpu.memory_space<vmem>>, vector<1x128xf32>
    %353 = vector.broadcast %352 : vector<1x128xf32> to vector<32x128xf32>
    %354 = arith.addf %351, %353 : vector<32x128xf32>
    %c0_163 = arith.constant 0 : index
    %c0_164 = arith.constant 0 : index
    %355 = vector.load %arg10[%c0_163, %c0_164] : memref<32x128xf32, #tpu.memory_space<vmem>>, vector<32x128xf32>
    tpu.vector_store %arg10[%c0_163, %c0_164], %354 {strides = array<i32>} : memref<32x128xf32, #tpu.memory_space<vmem>>, vector<32x128xf32>,
    return
  }
  func.func @transform_0(%arg0: i32) -> (i32, i32) {
    %c0_i32 = arith.constant 0 : i32
    %c0_i32_0 = arith.constant 0 : i32
    return %arg0, %c0_i32 : i32, i32
  }
  func.func @transform_1(%arg0: i32) -> (i32, i32, i32) {
    %c0_i32 = arith.constant 0 : i32
    %c0_i32_0 = arith.constant 0 : i32
    %c0_i32_1 = arith.constant 0 : i32
    %c0_i32_2 = arith.constant 0 : i32
    return %c0_i32, %c0_i32_0, %c0_i32_1 : i32, i32, i32
  }
  func.func @transform_2(%arg0: i32) -> (i32, i32, i32) {
    %c0_i32 = arith.constant 0 : i32
    %c0_i32_0 = arith.constant 0 : i32
    %c0_i32_1 = arith.constant 0 : i32
    %c0_i32_2 = arith.constant 0 : i32
    return %c0_i32, %c0_i32_0, %c0_i32_1 : i32, i32, i32
  }
  func.func @transform_3(%arg0: i32) -> (i32, i32) {
    %c0_i32 = arith.constant 0 : i32
    %c0_i32_0 = arith.constant 0 : i32
    %c0_i32_1 = arith.constant 0 : i32
    return %c0_i32, %c0_i32_0 : i32, i32
  }
  func.func @transform_4(%arg0: i32) -> (i32, i32) {
    %c0_i32 = arith.constant 0 : i32
    %c0_i32_0 = arith.constant 0 : i32
    %c0_i32_1 = arith.constant 0 : i32
    return %c0_i32, %c0_i32_0 : i32, i32
  }
  func.func @transform_5(%arg0: i32) -> (i32, i32, i32) {
    %c0_i32 = arith.constant 0 : i32
    %c0_i32_0 = arith.constant 0 : i32
    %c0_i32_1 = arith.constant 0 : i32
    %c0_i32_2 = arith.constant 0 : i32
    return %c0_i32, %c0_i32_0, %c0_i32_1 : i32, i32, i32
  }
  func.func @transform_6(%arg0: i32) -> (i32, i32, i32) {
    %c0_i32 = arith.constant 0 : i32
    %c0_i32_0 = arith.constant 0 : i32
    %c0_i32_1 = arith.constant 0 : i32
    %c0_i32_2 = arith.constant 0 : i32
    return %c0_i32, %c0_i32_0, %c0_i32_1 : i32, i32, i32
  }
  func.func @transform_7(%arg0: i32) -> (i32, i32) {
    %c0_i32 = arith.constant 0 : i32
    %c0_i32_0 = arith.constant 0 : i32
    %c0_i32_1 = arith.constant 0 : i32
    return %c0_i32, %c0_i32_0 : i32, i32
  }
  func.func @transform_8(%arg0: i32) -> (i32, i32) {
    %c0_i32 = arith.constant 0 : i32
    %c0_i32_0 = arith.constant 0 : i32
    %c0_i32_1 = arith.constant 0 : i32
    return %c0_i32, %c0_i32_0 : i32, i32
  }
  func.func @transform_9(%arg0: i32) -> (i32, i32) {
    %c0_i32 = arith.constant 0 : i32
    %c0_i32_0 = arith.constant 0 : i32
    return %arg0, %c0_i32 : i32, i32
  }
  func.func @transform_10(%arg0: i32) -> (i32, i32, i32) {
    %c0_i32 = arith.constant 0 : i32
    %c0_i32_0 = arith.constant 0 : i32
    %c0_i32_1 = arith.constant 0 : i32
    %c0_i32_2 = arith.constant 0 : i32
    return %c0_i32, %c0_i32_0, %c0_i32_1 : i32, i32, i32
  }
  func.func @transform_11(%arg0: i32) -> (i32, i32, i32) {
    %c0_i32 = arith.constant 0 : i32
    %c0_i32_0 = arith.constant 0 : i32
    %c0_i32_1 = arith.constant 0 : i32
    %c0_i32_2 = arith.constant 0 : i32
    return %c0_i32, %c0_i32_0, %c0_i32_1 : i32, i32, i32
  }
}

</mosaic_0001>

<llo_original>
// kernel: tpu_custom_call.1
$region0: #{tpu_custom_call.1}
  #allocation0 [shape = 'u32[]', space=smem, size = 0x4, offset = 0x4, fixed_abs, tag = 'smem constant byte address 0x4 - core index']
  #allocation1 [shape = 'u32[72,128]{1,0:T(1,128)}', space=vmem, size = 0x9000, scoped, tag = 'internal scratch']
  #allocation2 [shape = 'f32[32,512]{1,0:T(8,128)}', space=vmem, size = 0x10000, scoped, tag = 'scratch operand']
  #allocation3 [shape = 'f32[32,128]{1,0:T(8,128)}', space=vmem, size = 0x4000, scoped, tag = 'scratch operand']
  %s0 = inlined_call_operand.hbm [shape: f32[64,128], index: 0, kind: input, shape index: {}]
  %s1 = inlined_call_operand.hbm [shape: f32[2,8,128], index: 1, kind: input, shape index: {}]
  %s2 = inlined_call_operand.hbm [shape: f32[2,8,128], index: 2, kind: input, shape index: {}]
  %s3 = inlined_call_operand.hbm [shape: f32[128,128], index: 3, kind: input, shape index: {}]
  %s4 = inlined_call_operand.vmem [shape: f32[1,128], index: 4, kind: input, shape index: {}]
  %s5 = inlined_call_operand.hbm [shape: f32[2,256,512], index: 5, kind: input, shape index: {}]
  %s6 = inlined_call_operand.hbm [shape: f32[2,1,512], index: 6, kind: input, shape index: {}]
  %s7 = inlined_call_operand.hbm [shape: f32[128,128], index: 7, kind: input, shape index: {}]
  %s8 = inlined_call_operand.vmem [shape: f32[1,128], index: 8, kind: input, shape index: {}]
  %s9 = inlined_call_operand.hbm [shape: f32[64,128], index: 9, kind: output, shape index: {0}]
  %s10 = inlined_call_operand.hbm [shape: f32[2,8,128], index: 10, kind: output, shape index: {1}]
  %s11 = inlined_call_operand.hbm [shape: f32[2,8,128], index: 11, kind: output, shape index: {2}]
  %12 = xla_tuple %s9, %s10, %s11
  %s13 = sld [smem:[#allocation0]]
  $region117: #{tpu_custom_call.1} parent=0
    _
  %s15 = ssub.s32 1, %s13
  %s16 = scalar_select 0, %s15, %s13
  $region1: #{tpu_custom_call.1} parent=0
    #allocation4 [shape = 'u8[32768]{0}', space=vmem, size = 0x8000, scoped, tag = 'input window, operand 0']
    #allocation5 [shape = 's32[2]{0}', space=sflag, size = 0x8, scoped, tag = 'scoped memory for tpu_custom_call.1']
    #allocation6 [shape = 's32[2]{0}', space=sflag, size = 0x8, scoped, tag = 'scoped memory for tpu_custom_call.1']
    #allocation7 [shape = 'u8[8192]{0}', space=vmem, size = 0x2000, scoped, tag = 'input window, operand 1, single buffered']
    #allocation8 [shape = 's32[1]{0}', space=sflag, size = 0x4, scoped, tag = 'scoped memory for tpu_custom_call.1']
    #allocation9 [shape = 'u8[8192]{0}', space=vmem, size = 0x2000, scoped, tag = 'input window, operand 2, single buffered']
    #allocation10 [shape = 'u8[65536]{0}', space=vmem, size = 0x10000, scoped, tag = 'input window, operand 3, single buffered']
    #allocation11 [shape = 's32[1]{0}', space=sflag, size = 0x4, scoped, tag = 'scoped memory for tpu_custom_call.1']
    #allocation12 [shape = 'u8[1048576]{0}', space=vmem, size = 0x100000, scoped, tag = 'input window, operand 5, single buffered']
    #allocation13 [shape = 'u8[4096]{0}', space=vmem, size = 0x1000, scoped, tag = 'input window, operand 6, single buffered']
    #allocation14 [shape = 's32[1]{0}', space=sflag, size = 0x4, scoped, tag = 'scoped memory for tpu_custom_call.1']
    #allocation15 [shape = 'u8[65536]{0}', space=vmem, size = 0x10000, scoped, tag = 'input window, operand 7, single buffered']
    #allocation16 [shape = 'u8[32768]{0}', space=vmem, size = 0x8000, scoped, tag = 'output window, operand 0']
    #allocation17 [shape = 'u8[8192]{0}', space=vmem, size = 0x2000, scoped, tag = 'output window, operand 1, single buffered']
    #allocation18 [shape = 's32[1]{0}', space=sflag, size = 0x4, scoped, tag = 'scoped memory for tpu_custom_call.1']
    #allocation19 [shape = 'u8[8192]{0}', space=vmem, size = 0x2000, scoped, tag = 'output window, operand 2, single buffered']
    %17 = vsyncpa [#allocation5], 0
    %s18 = scalar_lea.sflag [#allocation5], 1
    %19 = vsyncpa %s18, 0
    %20 = vsyncpa [#allocation8], 0
    %21 = vsyncpa [#allocation11], 0
    %22 = vsyncpa [#allocation14], 0
    %23 = vsyncpa [#allocation6], 0
    %s24 = scalar_lea.sflag [#allocation6], 1
    %25 = vsyncpa %s24, 0
    %26 = vsyncpa [#allocation18], 0
    loop: start=0, step=1, limit=4
    $region2: #{tpu_custom_call.1} parent=1 // loop_pre_header
      _
    $region3: #{tpu_custom_call.1} parent=1 // loop_header
      %s28 = sphi 0, %s32
      %p29 = scmp.ge.s32.totalorder %s28, 4
      %s38 = sphi 0, %s40
      %s41 = sphi 0, %s38
      %s42 = sphi 0, %s41
      %s58 = sphi 0, %s42
      %s62 = sphi 0, %s62
      %s64 = sphi 0, %s62
      %s65 = sphi 0, %s64
      %s79 = sphi 0, %s65
      %s83 = sphi 0, %s83
      %s85 = sphi 0, %s83
      %s86 = sphi 0, %s85
      %s100 = sphi 0, %s86
      %s104 = sphi 0, %s104
      %s106 = sphi 0, %s104
      %s107 = sphi 0, %s106
      %s121 = sphi 0, %s107
      %s125 = sphi 0, %s125
      %s127 = sphi 0, %s125
      %s128 = sphi 0, %s127
      %s142 = sphi 0, %s128
      %s146 = sphi 0, %s146
      %s148 = sphi 0, %s146
      %s149 = sphi 0, %s148
      %s163 = sphi 0, %s149
      %s167 = sphi 0, %s167
      %s169 = sphi 0, %s167
      %s170 = sphi 0, %s169
      %s184 = sphi 0, %s170
      %s188 = sphi 0, %s188
      %s190 = sphi 0, %s188
      %s191 = sphi 0, %s190
      %s205 = sphi 0, %s191
      %s209 = sphi 0, %s209
      %s211 = sphi 0, %s209
      %s212 = sphi 0, %s211
      %s226 = sphi 0, %s212
      %s232 = sphi 0, %s234
      %s235 = sphi 0, %s232
      %s236 = sphi 0, %s235
      %s252 = sphi 0, %s236
      %s256 = sphi 0, %s256
      %s258 = sphi 0, %s256
      %s259 = sphi 0, %s258
      %s273 = sphi 0, %s259
      %s277 = sphi 0, %s277
      %s279 = sphi 0, %s277
      %s280 = sphi 0, %s279
      %s294 = sphi 0, %s280
    $region4: #{tpu_custom_call.1} parent=1 // loop_header_branch
      %31 = sbr.rel (%p29) target = $region8
    $region5: #{tpu_custom_call.1} parent=1 // loop_body
      %s33 = ssub.s32 %s28, 1
      %s34 = ssub.s32 %s28, 2
      %s35 = sadd.s32 %s28, 1
      %s36 = ssub.s32 %s28, %s35
      %p37 = scmp.eq.s32.totalorder %s36, 0
      %s39 = sadd.s32 %s38, 1
      %s40 = scalar_select %p37, %s38, %s39
      %p43 = pneg %p37
      %p44 = scmp.eq.s32.totalorder %s28, 1
      %p45 = por %p43, %p44
      %p46 = scmp.ne.s32.totalorder %s38, %s41
      %p47 = scmp.eq.s32.totalorder %s28, 0
      %p48 = por %p46, %p47
      %p49 = scmp.ne.s32.totalorder %s38, %s41
      %p50 = scmp.eq.s32.totalorder %s33, 1
      %p51 = por %p49, %p50
      %p52 = scmp.ne.s32.totalorder %s41, %s42
      %p53 = scmp.eq.s32.totalorder %s33, 0
      %p54 = por %p52, %p53
      %p55 = scmp.ne.s32.totalorder %s41, %s42
      %p56 = scmp.eq.s32.totalorder %s34, 1
      %p57 = por %p55, %p56
      %p59 = scmp.ne.s32.totalorder %s42, %s58
      %p60 = scmp.eq.s32.totalorder %s34, 0
      %p61 = por %p59, %p60
      %s63 = sadd.s32 %s62, 1
      %p66 = scmp.eq.s32.totalorder %s28, 1
      %p67 = scmp.ne.s32.totalorder %s62, %s64
      %p68 = scmp.eq.s32.totalorder %s28, 0
      %p69 = por %p67, %p68
      %p70 = scmp.ne.s32.totalorder %s62, %s64
      %p71 = scmp.eq.s32.totalorder %s33, 1
      %p72 = por %p70, %p71
      %p73 = scmp.ne.s32.totalorder %s64, %s65
      %p74 = scmp.eq.s32.totalorder %s33, 0
      %p75 = por %p73, %p74
      %p76 = scmp.ne.s32.totalorder %s64, %s65
      %p77 = scmp.eq.s32.totalorder %s34, 1
      %p78 = por %p76, %p77
      %p80 = scmp.ne.s32.totalorder %s65, %s79
      %p81 = scmp.eq.s32.totalorder %s34, 0
      %p82 = por %p80, %p81
      %s84 = sadd.s32 %s83, 1
      %p87 = scmp.eq.s32.totalorder %s28, 1
      %p88 = scmp.ne.s32.totalorder %s83, %s85
      %p89 = scmp.eq.s32.totalorder %s28, 0
      %p90 = por %p88, %p89
      %p91 = scmp.ne.s32.totalorder %s83, %s85
      %p92 = scmp.eq.s32.totalorder %s33, 1
      %p93 = por %p91, %p92
      %p94 = scmp.ne.s32.totalorder %s85, %s86
      %p95 = scmp.eq.s32.totalorder %s33, 0
      %p96 = por %p94, %p95
      %p97 = scmp.ne.s32.totalorder %s85, %s86
      %p98 = scmp.eq.s32.totalorder %s34, 1
      %p99 = por %p97, %p98
      %p101 = scmp.ne.s32.totalorder %s86, %s100
      %p102 = scmp.eq.s32.totalorder %s34, 0
      %p103 = por %p101, %p102
      %s105 = sadd.s32 %s104, 1
      %p108 = scmp.eq.s32.totalorder %s28, 1
      %p109 = scmp.ne.s32.totalorder %s104, %s106
      %p110 = scmp.eq.s32.totalorder %s28, 0
      %p111 = por %p109, %p110
      %p112 = scmp.ne.s32.totalorder %s104, %s106
      %p113 = scmp.eq.s32.totalorder %s33, 1
      %p114 = por %p112, %p113
      %p115 = scmp.ne.s32.totalorder %s106, %s107
      %p116 = scmp.eq.s32.totalorder %s33, 0
      %p117 = por %p115, %p116
      %p118 = scmp.ne.s32.totalorder %s106, %s107
      %p119 = scmp.eq.s32.totalorder %s34, 1
      %p120 = por %p118, %p119
      %p122 = scmp.ne.s32.totalorder %s107, %s121
      %p123 = scmp.eq.s32.totalorder %s34, 0
      %p124 = por %p122, %p123
      %s126 = sadd.s32 %s125, 1
      %p129 = scmp.eq.s32.totalorder %s28, 1
      %p130 = scmp.ne.s32.totalorder %s125, %s127
      %p131 = scmp.eq.s32.totalorder %s28, 0
      %p132 = por %p130, %p131
      %p133 = scmp.ne.s32.totalorder %s125, %s127
      %p134 = scmp.eq.s32.totalorder %s33, 1
      %p135 = por %p133, %p134
      %p136 = scmp.ne.s32.totalorder %s127, %s128
      %p137 = scmp.eq.s32.totalorder %s33, 0
      %p138 = por %p136, %p137
      %p139 = scmp.ne.s32.totalorder %s127, %s128
      %p140 = scmp.eq.s32.totalorder %s34, 1
      %p141 = por %p139, %p140
      %p143 = scmp.ne.s32.totalorder %s128, %s142
      %p144 = scmp.eq.s32.totalorder %s34, 0
      %p145 = por %p143, %p144
      %s147 = sadd.s32 %s146, 1
      %p150 = scmp.eq.s32.totalorder %s28, 1
      %p151 = scmp.ne.s32.totalorder %s146, %s148
      %p152 = scmp.eq.s32.totalorder %s28, 0
      %p153 = por %p151, %p152
      %p154 = scmp.ne.s32.totalorder %s146, %s148
      %p155 = scmp.eq.s32.totalorder %s33, 1
      %p156 = por %p154, %p155
      %p157 = scmp.ne.s32.totalorder %s148, %s149
      %p158 = scmp.eq.s32.totalorder %s33, 0
      %p159 = por %p157, %p158
      %p160 = scmp.ne.s32.totalorder %s148, %s149
      %p161 = scmp.eq.s32.totalorder %s34, 1
      %p162 = por %p160, %p161
      %p164 = scmp.ne.s32.totalorder %s149, %s163
      %p165 = scmp.eq.s32.totalorder %s34, 0
      %p166 = por %p164, %p165
      %s168 = sadd.s32 %s167, 1
      %p171 = scmp.eq.s32.totalorder %s28, 1
      %p172 = scmp.ne.s32.totalorder %s167, %s169
      %p173 = scmp.eq.s32.totalorder %s28, 0
      %p174 = por %p172, %p173
      %p175 = scmp.ne.s32.totalorder %s167, %s169
      %p176 = scmp.eq.s32.totalorder %s33, 1
      %p177 = por %p175, %p176
      %p178 = scmp.ne.s32.totalorder %s169, %s170
      %p179 = scmp.eq.s32.totalorder %s33, 0
      %p180 = por %p178, %p179
      %p181 = scmp.ne.s32.totalorder %s169, %s170
      %p182 = scmp.eq.s32.totalorder %s34, 1
      %p183 = por %p181, %p182
      %p185 = scmp.ne.s32.totalorder %s170, %s184
      %p186 = scmp.eq.s32.totalorder %s34, 0
      %p187 = por %p185, %p186
      %s189 = sadd.s32 %s188, 1
      %p192 = scmp.eq.s32.totalorder %s28, 1
      %p193 = scmp.ne.s32.totalorder %s188, %s190
      %p194 = scmp.eq.s32.totalorder %s28, 0
      %p195 = por %p193, %p194
      %p196 = scmp.ne.s32.totalorder %s188, %s190
      %p197 = scmp.eq.s32.totalorder %s33, 1
      %p198 = por %p196, %p197
      %p199 = scmp.ne.s32.totalorder %s190, %s191
      %p200 = scmp.eq.s32.totalorder %s33, 0
      %p201 = por %p199, %p200
      %p202 = scmp.ne.s32.totalorder %s190, %s191
      %p203 = scmp.eq.s32.totalorder %s34, 1
      %p204 = por %p202, %p203
      %p206 = scmp.ne.s32.totalorder %s191, %s205
      %p207 = scmp.eq.s32.totalorder %s34, 0
      %p208 = por %p206, %p207
      %s210 = sadd.s32 %s209, 1
      %p213 = scmp.eq.s32.totalorder %s28, 1
      %p214 = scmp.ne.s32.totalorder %s209, %s211
      %p215 = scmp.eq.s32.totalorder %s28, 0
      %p216 = por %p214, %p215
      %p217 = scmp.ne.s32.totalorder %s209, %s211
      %p218 = scmp.eq.s32.totalorder %s33, 1
      %p219 = por %p217, %p218
      %p220 = scmp.ne.s32.totalorder %s211, %s212
      %p221 = scmp.eq.s32.totalorder %s33, 0
      %p222 = por %p220, %p221
      %p223 = scmp.ne.s32.totalorder %s211, %s212
      %p224 = scmp.eq.s32.totalorder %s34, 1
      %p225 = por %p223, %p224
      %p227 = scmp.ne.s32.totalorder %s212, %s226
      %p228 = scmp.eq.s32.totalorder %s34, 0
      %p229 = por %p227, %p228
      %s230 = ssub.s32 %s28, %s35
      %p231 = scmp.eq.s32.totalorder %s230, 0
      %s233 = sadd.s32 %s232, 1
      %s234 = scalar_select %p231, %s232, %s233
      %p237 = pneg %p231
      %p238 = scmp.eq.s32.totalorder %s28, 1
      %p239 = por %p237, %p238
      %p240 = scmp.ne.s32.totalorder %s232, %s235
      %p241 = scmp.eq.s32.totalorder %s28, 0
      %p242 = por %p240, %p241
      %p243 = scmp.ne.s32.totalorder %s232, %s235
      %p244 = scmp.eq.s32.totalorder %s33, 1
      %p245 = por %p243, %p244
      %p246 = scmp.ne.s32.totalorder %s235, %s236
      %p247 = scmp.eq.s32.totalorder %s33, 0
      %p248 = por %p246, %p247
      %p249 = scmp.ne.s32.totalorder %s235, %s236
      %p250 = scmp.eq.s32.totalorder %s34, 1
      %p251 = por %p249, %p250
      %p253 = scmp.ne.s32.totalorder %s236, %s252
      %p254 = scmp.eq.s32.totalorder %s34, 0
      %p255 = por %p253, %p254
      %s257 = sadd.s32 %s256, 1
      %p260 = scmp.eq.s32.totalorder %s28, 1
      %p261 = scmp.ne.s32.totalorder %s256, %s258
      %p262 = scmp.eq.s32.totalorder %s28, 0
      %p263 = por %p261, %p262
      %p264 = scmp.ne.s32.totalorder %s256, %s258
      %p265 = scmp.eq.s32.totalorder %s33, 1
      %p266 = por %p264, %p265
      %p267 = scmp.ne.s32.totalorder %s258, %s259
      %p268 = scmp.eq.s32.totalorder %s33, 0
      %p269 = por %p267, %p268
      %p270 = scmp.ne.s32.totalorder %s258, %s259
      %p271 = scmp.eq.s32.totalorder %s34, 1
      %p272 = por %p270, %p271
      %p274 = scmp.ne.s32.totalorder %s259, %s273
      %p275 = scmp.eq.s32.totalorder %s34, 0
      %p276 = por %p274, %p275
      %s278 = sadd.s32 %s277, 1
      %p281 = scmp.eq.s32.totalorder %s28, 1
      %p282 = scmp.ne.s32.totalorder %s277, %s279
      %p283 = scmp.eq.s32.totalorder %s28, 0
      %p284 = por %p282, %p283
      %p285 = scmp.ne.s32.totalorder %s277, %s279
      %p286 = scmp.eq.s32.totalorder %s33, 1
      %p287 = por %p285, %p286
      %p288 = scmp.ne.s32.totalorder %s279, %s280
      %p289 = scmp.eq.s32.totalorder %s33, 0
      %p290 = por %p288, %p289
      %p291 = scmp.ne.s32.totalorder %s279, %s280
      %p292 = scmp.eq.s32.totalorder %s34, 1
      %p293 = por %p291, %p292
      %p295 = scmp.ne.s32.totalorder %s280, %s294
      %p296 = scmp.eq.s32.totalorder %s34, 0
      %p297 = por %p295, %p296
      %p298 = scmp.le.s32.totalorder 1, %s28
      %p299 = scmp.lt.s32.totalorder %s28, 3
      %p300 = pnand %p298, %p299
      %p301 = pneg %p300
      // Predicated region
      $region9: #{tpu_custom_call.1} parent=5 // pred_check
        _
      $region10: #{tpu_custom_call.1} parent=5 // pred_check_branch
        %303 = sbr.rel (%p300) target = $region12
      $region11: #{tpu_custom_call.1} parent=5 // pred_region
        %s304 = ssub.s32 %s28, 1
        // Predicated region
        $region13: #{tpu_custom_call.1} parent=11 // pred_check
          %p305 = pneg %p75
        $region14: #{tpu_custom_call.1} parent=11 // pred_check_branch
          %307 = sbr.rel (%p305) target = $region16
        $region15: #{tpu_custom_call.1} parent=11 // pred_region
          %309 = vsyncadd [#allocation8], 0
          %s310 = sshll.u32 %s1, 4
          %s311 = int_to_ptr.hbm [resolvable:$true] %s310
          %s312 = sshll.u32 [#allocation7], 4
          %s313 = int_to_ptr.vmem [resolvable:$true] %s312
          %318 = dma.hbm_to_vmem [thread:$0]  %s311, 256, %s313, [#allocation8], 128, 128, 8
        $region16: #{tpu_custom_call.1} parent=11 // pred_fallthru
          _
        // Predicated region
        $region17: #{tpu_custom_call.1} parent=11 // pred_check
          %p319 = pneg %p96
        $region18: #{tpu_custom_call.1} parent=11 // pred_check_branch
          %321 = sbr.rel (%p319) target = $region20
        $region19: #{tpu_custom_call.1} parent=11 // pred_region
          %323 = vsyncadd [#allocation8], 0
          %s324 = sshll.u32 %s2, 4
          %s325 = int_to_ptr.hbm [resolvable:$true] %s324
          %s326 = sshll.u32 [#allocation9], 4
          %s327 = int_to_ptr.vmem [resolvable:$true] %s326
          %332 = dma.hbm_to_vmem [thread:$0]  %s325, 256, %s327, [#allocation8], 128, 128, 8
        $region20: #{tpu_custom_call.1} parent=11 // pred_fallthru
          _
        // Predicated region
        $region21: #{tpu_custom_call.1} parent=11 // pred_check
          %p333 = pneg %p117
        $region22: #{tpu_custom_call.1} parent=11 // pred_check_branch
          %335 = sbr.rel (%p333) target = $region24
        $region23: #{tpu_custom_call.1} parent=11 // pred_region
          %337 = vsyncadd [#allocation11], 0
          %s338 = sshll.u32 %s3, 4
          %s339 = int_to_ptr.hbm [resolvable:$true] %s338
          %s340 = sshll.u32 [#allocation10], 4
          %s341 = int_to_ptr.vmem [resolvable:$true] %s340
          %346 = dma.hbm_to_vmem [thread:$0]  %s339, 2048, %s341, [#allocation11], 128, 128, 8
        $region24: #{tpu_custom_call.1} parent=11 // pred_fallthru
          _
        // Predicated region
        $region25: #{tpu_custom_call.1} parent=11 // pred_check
          %p347 = pneg %p138
        $region26: #{tpu_custom_call.1} parent=11 // pred_check_branch
          %349 = sbr.rel (%p347) target = $region28
        $region27: #{tpu_custom_call.1} parent=11 // pred_region
          _
        $region28: #{tpu_custom_call.1} parent=11 // pred_fallthru
          _
        // Predicated region
        $region29: #{tpu_custom_call.1} parent=11 // pred_check
          %p350 = pneg %p159
        $region30: #{tpu_custom_call.1} parent=11 // pred_check_branch
          %352 = sbr.rel (%p350) target = $region32
        $region31: #{tpu_custom_call.1} parent=11 // pred_region
          %354 = vsyncadd [#allocation11], 0
          %s355 = sshll.u32 %s5, 4
          %s356 = int_to_ptr.hbm [resolvable:$true] %s355
          %s357 = sshll.u32 [#allocation12], 4
          %s358 = int_to_ptr.vmem [resolvable:$true] %s357
          %363 = dma.hbm_to_vmem [thread:$0]  %s356, 32768, %s358, [#allocation11], 512, 512, 32
        $region32: #{tpu_custom_call.1} parent=11 // pred_fallthru
          _
        // Predicated region
        $region33: #{tpu_custom_call.1} parent=11 // pred_check
          %p364 = pneg %p180
        $region34: #{tpu_custom_call.1} parent=11 // pred_check_branch
          %366 = sbr.rel (%p364) target = $region36
        $region35: #{tpu_custom_call.1} parent=11 // pred_region
          %368 = vsyncadd [#allocation14], 0
          %s369 = sshll.u32 %s6, 4
          %s370 = int_to_ptr.hbm [resolvable:$true] %s369
          %s371 = sshll.u32 [#allocation13], 4
          %s372 = int_to_ptr.vmem [resolvable:$true] %s371
          %377 = dma.hbm_to_vmem [thread:$0]  %s370, 128, %s372, [#allocation14], 64, 64, 4
        $region36: #{tpu_custom_call.1} parent=11 // pred_fallthru
          _
        // Predicated region
        $region37: #{tpu_custom_call.1} parent=11 // pred_check
          %p378 = pneg %p201
        $region38: #{tpu_custom_call.1} parent=11 // pred_check_branch
          %380 = sbr.rel (%p378) target = $region40
        $region39: #{tpu_custom_call.1} parent=11 // pred_region
          %382 = vsyncadd [#allocation14], 0
          %s383 = sshll.u32 %s7, 4
          %s384 = int_to_ptr.hbm [resolvable:$true] %s383
          %s385 = sshll.u32 [#allocation15], 4
          %s386 = int_to_ptr.vmem [resolvable:$true] %s385
          %391 = dma.hbm_to_vmem [thread:$0]  %s384, 2048, %s386, [#allocation14], 128, 128, 8
        $region40: #{tpu_custom_call.1} parent=11 // pred_fallthru
          _
        // Predicated region
        $region41: #{tpu_custom_call.1} parent=11 // pred_check
          %p392 = pneg %p222
        $region42: #{tpu_custom_call.1} parent=11 // pred_check_branch
          %394 = sbr.rel (%p392) target = $region44
        $region43: #{tpu_custom_call.1} parent=11 // pred_region
          _
        $region44: #{tpu_custom_call.1} parent=11 // pred_fallthru
          _
      $region12: #{tpu_custom_call.1} parent=5 // pred_fallthru
        _
      %p395 = scmp.lt.s32.totalorder %s28, 2
      // Predicated region
      $region45: #{tpu_custom_call.1} parent=5 // pred_check
        %p396 = pneg %p395
      $region46: #{tpu_custom_call.1} parent=5 // pred_check_branch
        %398 = sbr.rel (%p396) target = $region48
      $region47: #{tpu_custom_call.1} parent=5 // pred_region
        // Predicated region
        $region49: #{tpu_custom_call.1} parent=47 // pred_check
          %p399 = pneg %p48
        $region50: #{tpu_custom_call.1} parent=47 // pred_check_branch
          %401 = sbr.rel (%p399) target = $region52
        $region51: #{tpu_custom_call.1} parent=47 // pred_region
          %s402 = sand.u32 %s38, 1
          %s403 = scalar_lea.sflag [#allocation5], %s402
          %s404 = sand.u32 %s38, 1
          %s405 = smul.addr %s404, 32
          %s406 = scalar_lea.vmem [#allocation4], %s405
          %s407 = smul.u32 4, %s28
          %409 = vsyncadd %s403, 0
          %s410 = smul.addr %s407, 8
          %s411 = scalar_lea.hbm %s0, %s410
          %s412 = sshll.u32 %s411, 4
          %s413 = int_to_ptr.hbm [resolvable:$true] %s412
          %s414 = sshll.u32 %s406, 4
          %s415 = int_to_ptr.vmem [resolvable:$true] %s414
          %420 = dma.hbm_to_vmem [thread:$0]  %s413, 512, %s415, %s403, 128, 128, 8
        $region52: #{tpu_custom_call.1} parent=47 // pred_fallthru
          _
      $region48: #{tpu_custom_call.1} parent=5 // pred_fallthru
        _
      %p421 = scmp.le.s32.totalorder 1, %s28
      %p422 = scmp.lt.s32.totalorder %s28, 3
      %p423 = pnand %p421, %p422
      %p424 = pneg %p423
      // Predicated region
      $region53: #{tpu_custom_call.1} parent=5 // pred_check
        _
      $region54: #{tpu_custom_call.1} parent=5 // pred_check_branch
        %426 = sbr.rel (%p423) target = $region56
      $region55: #{tpu_custom_call.1} parent=5 // pred_region
        %s427 = ssub.s32 %s28, 1
        %s428 = sand.u32 %s41, 1
        %s429 = scalar_lea.sflag [#allocation5], %s428
        %s430 = sand.u32 %s41, 1
        %s431 = smul.addr %s430, 32
        %s432 = scalar_lea.vmem [#allocation4], %s431
        // Predicated region
        $region57: #{tpu_custom_call.1} parent=55 // pred_check
          %p433 = pneg %p54
        $region58: #{tpu_custom_call.1} parent=55 // pred_check_branch
          %435 = sbr.rel (%p433) target = $region60
        $region59: #{tpu_custom_call.1} parent=55 // pred_region
          %437 = dma.done %s429, 512
        $region60: #{tpu_custom_call.1} parent=55 // pred_fallthru
          _
        // Predicated region
        $region61: #{tpu_custom_call.1} parent=55 // pred_check
          %p438 = pneg %p75
        $region62: #{tpu_custom_call.1} parent=55 // pred_check_branch
          %440 = sbr.rel (%p438) target = $region64
        $region63: #{tpu_custom_call.1} parent=55 // pred_region
          %442 = dma.done [#allocation8], 256
        $region64: #{tpu_custom_call.1} parent=55 // pred_fallthru
          _
        // Predicated region
        $region65: #{tpu_custom_call.1} parent=55 // pred_check
          %p443 = pneg %p96
        $region66: #{tpu_custom_call.1} parent=55 // pred_check_branch
          %445 = sbr.rel (%p443) target = $region68
        $region67: #{tpu_custom_call.1} parent=55 // pred_region
          %447 = dma.done [#allocation8], 256
        $region68: #{tpu_custom_call.1} parent=55 // pred_fallthru
          _
        // Predicated region
        $region69: #{tpu_custom_call.1} parent=55 // pred_check
          %p448 = pneg %p117
        $region70: #{tpu_custom_call.1} parent=55 // pred_check_branch
          %450 = sbr.rel (%p448) target = $region72
        $region71: #{tpu_custom_call.1} parent=55 // pred_region
          %452 = dma.done [#allocation11], 2048
        $region72: #{tpu_custom_call.1} parent=55 // pred_fallthru
          _
        // Predicated region
        $region73: #{tpu_custom_call.1} parent=55 // pred_check
          %p453 = pneg %p159
        $region74: #{tpu_custom_call.1} parent=55 // pred_check_branch
          %455 = sbr.rel (%p453) target = $region76
        $region75: #{tpu_custom_call.1} parent=55 // pred_region
          %457 = dma.done [#allocation11], 32768
        $region76: #{tpu_custom_call.1} parent=55 // pred_fallthru
          _
        // Predicated region
        $region77: #{tpu_custom_call.1} parent=55 // pred_check
          %p458 = pneg %p180
        $region78: #{tpu_custom_call.1} parent=55 // pred_check_branch
          %460 = sbr.rel (%p458) target = $region80
        $region79: #{tpu_custom_call.1} parent=55 // pred_region
          %462 = dma.done [#allocation14], 128
        $region80: #{tpu_custom_call.1} parent=55 // pred_fallthru
          _
        // Predicated region
        $region81: #{tpu_custom_call.1} parent=55 // pred_check
          %p463 = pneg %p201
        $region82: #{tpu_custom_call.1} parent=55 // pred_check_branch
          %465 = sbr.rel (%p463) target = $region84
        $region83: #{tpu_custom_call.1} parent=55 // pred_region
          %467 = dma.done [#allocation14], 2048
        $region84: #{tpu_custom_call.1} parent=55 // pred_fallthru
          _
        %s468 = sand.u32 %s41, 1
        %s469 = scalar_lea.sflag [#allocation5], %s468
        %s470 = sand.u32 %s41, 1
        %s471 = smul.addr %s470, 32
        %s472 = scalar_lea.vmem [#allocation4], %s471
        %p473 = pneg %p54
        %p474 = pneg %p51
        %p475 = pneg %p75
        %p476 = pneg %p72
        %p477 = pneg %p96
        %p478 = pneg %p93
        %p479 = pneg %p117
        %p480 = pneg %p114
        %p481 = pneg %p138
        %p482 = pneg %p135
        %p483 = pneg %p159
        %p484 = pneg %p156
        %p485 = pneg %p180
        %p486 = pneg %p177
        %p487 = pneg %p201
        %p488 = pneg %p198
        %p489 = pneg %p222
        %p490 = pneg %p219
        %p491 = pneg %p248
        %p492 = pneg %p245
        %s493 = sand.u32 %s235, 1
        %s494 = scalar_lea.sflag [#allocation6], %s493
        %s495 = sand.u32 %s235, 1
        %s496 = smul.addr %s495, 32
        %s497 = scalar_lea.vmem [#allocation16], %s496
        %p498 = pneg %p269
        %p499 = pneg %p266
        %p500 = pneg %p290
        %p501 = pneg %p287
        %s502 = smul.u32 4, %s33
        %s503 = smul.u32 4, %s33
        %p504 = scmp.eq.s32.totalorder %s33, 0
        // Predicated region
        $region85: #{tpu_custom_call.1} parent=55 // pred_check
          %p505 = pneg %p504
        $region86: #{tpu_custom_call.1} parent=55 // pred_check_branch
          %507 = sbr.rel (%p505) target = $region88
        $region87: #{tpu_custom_call.1} parent=55 // pred_region
          %v508 = vld [vmem:[#allocation7] sm:$0xff]
          %v509 = vld [vmem:[#allocation7 + $0x8] sm:$0xff]
          %510 = vst [vmem:[#allocation17] sm:$0xff] %v508
          %511 = vst [vmem:[#allocation17 + $0x8] sm:$0xff] %v509
          %v512 = vld [vmem:[#allocation9] sm:$0xff]
          %v513 = vld [vmem:[#allocation9 + $0x8] sm:$0xff]
          %514 = vst [vmem:[#allocation19] sm:$0xff] %v512
          %515 = vst [vmem:[#allocation19 + $0x8] sm:$0xff] %v513
        $region88: #{tpu_custom_call.1} parent=55 // pred_fallthru
          _
        %v516 = vld [vmem:[%s432] sm:$0xff]
        %v517 = vld [vmem:[%s432 + $0x8] sm:$0xff]
        %v518 = vld [vmem:[%s432 + $0x10] sm:$0xff]
        %v519 = vld [vmem:[%s432 + $0x18] sm:$0xff]
        %v520 = vld [vmem:[#allocation10] sm:$0xff]
        %v521 = vld [vmem:[#allocation10 + $0x8] sm:$0xff]
        %v522 = vld [vmem:[#allocation10 + $0x10] sm:$0xff]
        %v523 = vld [vmem:[#allocation10 + $0x18] sm:$0xff]
        %v524 = vld [vmem:[#allocation10 + $0x20] sm:$0xff]
        %v525 = vld [vmem:[#allocation10 + $0x28] sm:$0xff]
        %v526 = vld [vmem:[#allocation10 + $0x30] sm:$0xff]
        %v527 = vld [vmem:[#allocation10 + $0x38] sm:$0xff]
        %v528 = vld [vmem:[#allocation10 + $0x40] sm:$0xff]
        %v529 = vld [vmem:[#allocation10 + $0x48] sm:$0xff]
        %v530 = vld [vmem:[#allocation10 + $0x50] sm:$0xff]
        %v531 = vld [vmem:[#allocation10 + $0x58] sm:$0xff]
        %v532 = vld [vmem:[#allocation10 + $0x60] sm:$0xff]
        %v533 = vld [vmem:[#allocation10 + $0x68] sm:$0xff]
        %v534 = vld [vmem:[#allocation10 + $0x70] sm:$0xff]
        %v535 = vld [vmem:[#allocation10 + $0x78] sm:$0xff]
        %v536 = vld [vmem:[%s4] sm:$0x1]
        %v538 = vperm.slane %v536, 0
        %540 = vmatpush.msra.mxu0 %v535
        %541 = vmatpush.msra.mxu0 %v534
        %542 = vmatpush.msra.mxu0 %v533
        %543 = vmatpush.msra.mxu0 %v532
        %544 = vmatpush.msra.mxu0 %v531
        %545 = vmatpush.msra.mxu0 %v530
        %546 = vmatpush.msra.mxu0 %v529
        %547 = vmatpush.msra.mxu0 %v528
        %548 = vmatpush.msra.mxu0 %v527
        %549 = vmatpush.msra.mxu0 %v526
        %550 = vmatpush.msra.mxu0 %v525
        %551 = vmatpush.msra.mxu0 %v524
        %552 = vmatpush.msra.mxu0 %v523
        %553 = vmatpush.msra.mxu0 %v522
        %554 = vmatpush.msra.mxu0 %v521
        %555 = vmatpush.msra.mxu0 %v520
        %556 = vmatmul.f32.gmra.mxu0 %v516
        %v557 = vpop.f32.mrf.mxu0
        %v558 = vadd.f32 %v538, %v557
        %559 = vmatmul.f32.gmra.mxu0 %v517
        %v560 = vpop.f32.mrf.mxu0
        %v561 = vadd.f32 %v538, %v560
        %562 = vmatmul.f32.gmra.mxu0 %v518
        %v563 = vpop.f32.mrf.mxu0
        %v564 = vadd.f32 %v538, %v563
        %565 = vmatmul.f32.gmra.mxu0 %v519
        %v566 = vpop.f32.mrf.mxu0
        %v567 = vadd.f32 %v538, %v566
        %568 = vdwg.mxu0
        %v569 = vld [vmem:[#allocation12] sm:$0xff]
        %v570 = vld [vmem:[#allocation12 + $0x8] sm:$0xff]
        %v571 = vld [vmem:[#allocation12 + $0x10] sm:$0xff]
        %v572 = vld [vmem:[#allocation12 + $0x18] sm:$0xff]
        %v573 = vld [vmem:[#allocation12 + $0x20] sm:$0xff]
        %v574 = vld [vmem:[#allocation12 + $0x28] sm:$0xff]
        %v575 = vld [vmem:[#allocation12 + $0x30] sm:$0xff]
        %v576 = vld [vmem:[#allocation12 + $0x38] sm:$0xff]
        %v577 = vld [vmem:[#allocation12 + $0x40] sm:$0xff]
        %v578 = vld [vmem:[#allocation12 + $0x48] sm:$0xff]
        %v579 = vld [vmem:[#allocation12 + $0x50] sm:$0xff]
        %v580 = vld [vmem:[#allocation12 + $0x58] sm:$0xff]
        %v581 = vld [vmem:[#allocation12 + $0x60] sm:$0xff]
        %v582 = vld [vmem:[#allocation12 + $0x68] sm:$0xff]
        %v583 = vld [vmem:[#allocation12 + $0x70] sm:$0xff]
        %v584 = vld [vmem:[#allocation12 + $0x78] sm:$0xff]
        %v585 = vld [vmem:[#allocation12 + $0x80] sm:$0xff]
        %v586 = vld [vmem:[#allocation12 + $0x88] sm:$0xff]
        %v587 = vld [vmem:[#allocation12 + $0x90] sm:$0xff]
        %v588 = vld [vmem:[#allocation12 + $0x98] sm:$0xff]
        %v589 = vld [vmem:[#allocation12 + $0xa0] sm:$0xff]
        %v590 = vld [vmem:[#allocation12 + $0xa8] sm:$0xff]
        %v591 = vld [vmem:[#allocation12 + $0xb0] sm:$0xff]
        %v592 = vld [vmem:[#allocation12 + $0xb8] sm:$0xff]
        %v593 = vld [vmem:[#allocation12 + $0xc0] sm:$0xff]
        %v594 = vld [vmem:[#allocation12 + $0xc8] sm:$0xff]
        %v595 = vld [vmem:[#allocation12 + $0xd0] sm:$0xff]
        %v596 = vld [vmem:[#allocation12 + $0xd8] sm:$0xff]
        %v597 = vld [vmem:[#allocation12 + $0xe0] sm:$0xff]
        %v598 = vld [vmem:[#allocation12 + $0xe8] sm:$0xff]
        %v599 = vld [vmem:[#allocation12 + $0xf0] sm:$0xff]
        %v600 = vld [vmem:[#allocation12 + $0xf8] sm:$0xff]
        %v601 = vld [vmem:[#allocation12 + $0x100] sm:$0xff]
        %v602 = vld [vmem:[#allocation12 + $0x108] sm:$0xff]
        %v603 = vld [vmem:[#allocation12 + $0x110] sm:$0xff]
        %v604 = vld [vmem:[#allocation12 + $0x118] sm:$0xff]
        %v605 = vld [vmem:[#allocation12 + $0x120] sm:$0xff]
        %v606 = vld [vmem:[#allocation12 + $0x128] sm:$0xff]
        %v607 = vld [vmem:[#allocation12 + $0x130] sm:$0xff]
        %v608 = vld [vmem:[#allocation12 + $0x138] sm:$0xff]
        %v609 = vld [vmem:[#allocation12 + $0x140] sm:$0xff]
        %v610 = vld [vmem:[#allocation12 + $0x148] sm:$0xff]
        %v611 = vld [vmem:[#allocation12 + $0x150] sm:$0xff]
        %v612 = vld [vmem:[#allocation12 + $0x158] sm:$0xff]
        %v613 = vld [vmem:[#allocation12 + $0x160] sm:$0xff]
        %v614 = vld [vmem:[#allocation12 + $0x168] sm:$0xff]
        %v615 = vld [vmem:[#allocation12 + $0x170] sm:$0xff]
        %v616 = vld [vmem:[#allocation12 + $0x178] sm:$0xff]
        %v617 = vld [vmem:[#allocation12 + $0x180] sm:$0xff]
        %v618 = vld [vmem:[#allocation12 + $0x188] sm:$0xff]
        %v619 = vld [vmem:[#allocation12 + $0x190] sm:$0xff]
        %v620 = vld [vmem:[#allocation12 + $0x198] sm:$0xff]
        %v621 = vld [vmem:[#allocation12 + $0x1a0] sm:$0xff]
        %v622 = vld [vmem:[#allocation12 + $0x1a8] sm:$0xff]
        %v623 = vld [vmem:[#allocation12 + $0x1b0] sm:$0xff]
        %v624 = vld [vmem:[#allocation12 + $0x1b8] sm:$0xff]
        %v625 = vld [vmem:[#allocation12 + $0x1c0] sm:$0xff]
        %v626 = vld [vmem:[#allocation12 + $0x1c8] sm:$0xff]
        %v627 = vld [vmem:[#allocation12 + $0x1d0] sm:$0xff]
        %v628 = vld [vmem:[#allocation12 + $0x1d8] sm:$0xff]
        %v629 = vld [vmem:[#allocation12 + $0x1e0] sm:$0xff]
        %v630 = vld [vmem:[#allocation12 + $0x1e8] sm:$0xff]
        %v631 = vld [vmem:[#allocation12 + $0x1f0] sm:$0xff]
        %v632 = vld [vmem:[#allocation12 + $0x1f8] sm:$0xff]
        %v633 = vld [vmem:[#allocation13] sm:$0xf]
        %v635 = vperm.slane %v633, 0
        %v636 = vperm.slane %v633, 1
        %v637 = vperm.slane %v633, 2
        %v638 = vperm.slane %v633, 3
        %643 = vmatpush.msra.mxu0 %v629
        %644 = vmatpush.msra.mxu0 %v625
        %645 = vmatpush.msra.mxu0 %v621
        %646 = vmatpush.msra.mxu0 %v617
        %647 = vmatpush.msra.mxu0 %v613
        %648 = vmatpush.msra.mxu0 %v609
        %649 = vmatpush.msra.mxu0 %v605
        %650 = vmatpush.msra.mxu0 %v601
        %651 = vmatpush.msra.mxu0 %v597
        %652 = vmatpush.msra.mxu0 %v593
        %653 = vmatpush.msra.mxu0 %v589
        %654 = vmatpush.msra.mxu0 %v585
        %655 = vmatpush.msra.mxu0 %v581
        %656 = vmatpush.msra.mxu0 %v577
        %657 = vmatpush.msra.mxu0 %v573
        %658 = vmatpush.msra.mxu0 %v569
        %659 = vmatmul.f32.gmra.mxu0 %v558
        %v660 = vpop.f32.mrf.mxu0
        %v661 = vadd.f32 %v635, %v660
        %662 = vmatmul.f32.gmra.mxu0 %v561
        %v663 = vpop.f32.mrf.mxu0
        %v664 = vadd.f32 %v635, %v663
        %665 = vmatmul.f32.gmra.mxu0 %v564
        %v666 = vpop.f32.mrf.mxu0
        %v667 = vadd.f32 %v635, %v666
        %668 = vmatmul.f32.gmra.mxu0 %v567
        %v669 = vpop.f32.mrf.mxu0
        %v670 = vadd.f32 %v635, %v669
        %671 = vdwg.mxu0
        %672 = vmatpush.msra.mxu0 %v630
        %673 = vmatpush.msra.mxu0 %v626
        %674 = vmatpush.msra.mxu0 %v622
        %675 = vmatpush.msra.mxu0 %v618
        %676 = vmatpush.msra.mxu0 %v614
        %677 = vmatpush.msra.mxu0 %v610
        %678 = vmatpush.msra.mxu0 %v606
        %679 = vmatpush.msra.mxu0 %v602
        %680 = vmatpush.msra.mxu0 %v598
        %681 = vmatpush.msra.mxu0 %v594
        %682 = vmatpush.msra.mxu0 %v590
        %683 = vmatpush.msra.mxu0 %v586
        %684 = vmatpush.msra.mxu0 %v582
        %685 = vmatpush.msra.mxu0 %v578
        %686 = vmatpush.msra.mxu0 %v574
        %687 = vmatpush.msra.mxu0 %v570
        %688 = vmatmul.f32.gmra.mxu0 %v558
        %v689 = vpop.f32.mrf.mxu0
        %v690 = vadd.f32 %v636, %v689
        %691 = vmatmul.f32.gmra.mxu0 %v561
        %v692 = vpop.f32.mrf.mxu0
        %v693 = vadd.f32 %v636, %v692
        %694 = vmatmul.f32.gmra.mxu0 %v564
        %v695 = vpop.f32.mrf.mxu0
        %v696 = vadd.f32 %v636, %v695
        %697 = vmatmul.f32.gmra.mxu0 %v567
        %v698 = vpop.f32.mrf.mxu0
        %v699 = vadd.f32 %v636, %v698
        %700 = vdwg.mxu0
        %701 = vmatpush.msra.mxu0 %v631
        %702 = vmatpush.msra.mxu0 %v627
        %703 = vmatpush.msra.mxu0 %v623
        %704 = vmatpush.msra.mxu0 %v619
        %705 = vmatpush.msra.mxu0 %v615
        %706 = vmatpush.msra.mxu0 %v611
        %707 = vmatpush.msra.mxu0 %v607
        %708 = vmatpush.msra.mxu0 %v603
        %709 = vmatpush.msra.mxu0 %v599
        %710 = vmatpush.msra.mxu0 %v595
        %711 = vmatpush.msra.mxu0 %v591
        %712 = vmatpush.msra.mxu0 %v587
        %713 = vmatpush.msra.mxu0 %v583
        %714 = vmatpush.msra.mxu0 %v579
        %715 = vmatpush.msra.mxu0 %v575
        %716 = vmatpush.msra.mxu0 %v571
        %717 = vmatmul.f32.gmra.mxu0 %v558
        %v718 = vpop.f32.mrf.mxu0
        %v719 = vadd.f32 %v637, %v718
        %720 = vmatmul.f32.gmra.mxu0 %v561
        %v721 = vpop.f32.mrf.mxu0
        %v722 = vadd.f32 %v637, %v721
        %723 = vmatmul.f32.gmra.mxu0 %v564
        %v724 = vpop.f32.mrf.mxu0
        %v725 = vadd.f32 %v637, %v724
        %726 = vmatmul.f32.gmra.mxu0 %v567
        %v727 = vpop.f32.mrf.mxu0
        %v728 = vadd.f32 %v637, %v727
        %729 = vdwg.mxu0
        %730 = vmatpush.msra.mxu0 %v632
        %731 = vmatpush.msra.mxu0 %v628
        %732 = vmatpush.msra.mxu0 %v624
        %733 = vmatpush.msra.mxu0 %v620
        %734 = vmatpush.msra.mxu0 %v616
        %735 = vmatpush.msra.mxu0 %v612
        %736 = vmatpush.msra.mxu0 %v608
        %737 = vmatpush.msra.mxu0 %v604
        %738 = vmatpush.msra.mxu0 %v600
        %739 = vmatpush.msra.mxu0 %v596
        %740 = vmatpush.msra.mxu0 %v592
        %741 = vmatpush.msra.mxu0 %v588
        %742 = vmatpush.msra.mxu0 %v584
        %743 = vmatpush.msra.mxu0 %v580
        %744 = vmatpush.msra.mxu0 %v576
        %745 = vmatpush.msra.mxu0 %v572
        %746 = vmatmul.f32.gmra.mxu0 %v558
        %v747 = vpop.f32.mrf.mxu0
        %v748 = vadd.f32 %v638, %v747
        %749 = vmatmul.f32.gmra.mxu0 %v561
        %v750 = vpop.f32.mrf.mxu0
        %v751 = vadd.f32 %v638, %v750
        %752 = vmatmul.f32.gmra.mxu0 %v564
        %v753 = vpop.f32.mrf.mxu0
        %v754 = vadd.f32 %v638, %v753
        %755 = vmatmul.f32.gmra.mxu0 %v567
        %v756 = vpop.f32.mrf.mxu0
        %v757 = vadd.f32 %v638, %v756
        %758 = vdwg.mxu0
        %759 = vst [vmem:[#allocation2] sm:$0xff] %v661
        %760 = vst [vmem:[#allocation2 + $0x8] sm:$0xff] %v690
        %761 = vst [vmem:[#allocation2 + $0x10] sm:$0xff] %v719
        %762 = vst [vmem:[#allocation2 + $0x18] sm:$0xff] %v748
        %763 = vst [vmem:[#allocation2 + $0x20] sm:$0xff] %v664
        %764 = vst [vmem:[#allocation2 + $0x28] sm:$0xff] %v693
        %765 = vst [vmem:[#allocation2 + $0x30] sm:$0xff] %v722
        %766 = vst [vmem:[#allocation2 + $0x38] sm:$0xff] %v751
        %767 = vst [vmem:[#allocation2 + $0x40] sm:$0xff] %v667
        %768 = vst [vmem:[#allocation2 + $0x48] sm:$0xff] %v696
        %769 = vst [vmem:[#allocation2 + $0x50] sm:$0xff] %v725
        %770 = vst [vmem:[#allocation2 + $0x58] sm:$0xff] %v754
        %771 = vst [vmem:[#allocation2 + $0x60] sm:$0xff] %v670
        %772 = vst [vmem:[#allocation2 + $0x68] sm:$0xff] %v699
        %773 = vst [vmem:[#allocation2 + $0x70] sm:$0xff] %v728
        %774 = vst [vmem:[#allocation2 + $0x78] sm:$0xff] %v757
        %s775 = scalar_lea.vmem [#allocation13], 4
        %v776 = vld [vmem:[%s775] sm:$0xf]
        %v778 = vperm.slane %v776, 0
        %v779 = vperm.slane %v776, 1
        %v780 = vperm.slane %v776, 2
        %v781 = vperm.slane %v776, 3
        %v786 = vld [vmem:[#allocation17] sm:$0xff]
        %s787 = scalar_lea.vmem [#allocation17], 8
        %v788 = vld [vmem:[%s787] sm:$0xff]
        %v789 = vld [vmem:[#allocation19] sm:$0xff]
        %s790 = scalar_lea.vmem [#allocation19], 8
        %v791 = vld [vmem:[%s790] sm:$0xff]
        %s792 = smul.u32 0, 4
        %s793 = smul.addr %s792, 8
        %s794 = scalar_lea.vmem [#allocation2], %s793
        %v795 = vld [vmem:[%s794] sm:$0xff]
        %v796 = vld [vmem:[%s794 + $0x8] sm:$0xff]
        %v797 = vld [vmem:[%s794 + $0x10] sm:$0xff]
        %v798 = vld [vmem:[%s794 + $0x18] sm:$0xff]
        %v799 = vld [vmem:[#allocation12 + $0x200] sm:$0xff]
        %v800 = vld [vmem:[#allocation12 + $0x208] sm:$0xff]
        %v801 = vld [vmem:[#allocation12 + $0x210] sm:$0xff]
        %v802 = vld [vmem:[#allocation12 + $0x218] sm:$0xff]
        %v803 = vld [vmem:[#allocation12 + $0x220] sm:$0xff]
        %v804 = vld [vmem:[#allocation12 + $0x228] sm:$0xff]
        %v805 = vld [vmem:[#allocation12 + $0x230] sm:$0xff]
        %v806 = vld [vmem:[#allocation12 + $0x238] sm:$0xff]
        %v807 = vld [vmem:[#allocation12 + $0x240] sm:$0xff]
        %v808 = vld [vmem:[#allocation12 + $0x248] sm:$0xff]
        %v809 = vld [vmem:[#allocation12 + $0x250] sm:$0xff]
        %v810 = vld [vmem:[#allocation12 + $0x258] sm:$0xff]
        %v811 = vld [vmem:[#allocation12 + $0x260] sm:$0xff]
        %v812 = vld [vmem:[#allocation12 + $0x268] sm:$0xff]
        %v813 = vld [vmem:[#allocation12 + $0x270] sm:$0xff]
        %v814 = vld [vmem:[#allocation12 + $0x278] sm:$0xff]
        %v815 = vld [vmem:[#allocation12 + $0x280] sm:$0xff]
        %v816 = vld [vmem:[#allocation12 + $0x288] sm:$0xff]
        %v817 = vld [vmem:[#allocation12 + $0x290] sm:$0xff]
        %v818 = vld [vmem:[#allocation12 + $0x298] sm:$0xff]
        %v819 = vld [vmem:[#allocation12 + $0x2a0] sm:$0xff]
        %v820 = vld [vmem:[#allocation12 + $0x2a8] sm:$0xff]
        %v821 = vld [vmem:[#allocation12 + $0x2b0] sm:$0xff]
        %v822 = vld [vmem:[#allocation12 + $0x2b8] sm:$0xff]
        %v823 = vld [vmem:[#allocation12 + $0x2c0] sm:$0xff]
        %v824 = vld [vmem:[#allocation12 + $0x2c8] sm:$0xff]
        %v825 = vld [vmem:[#allocation12 + $0x2d0] sm:$0xff]
        %v826 = vld [vmem:[#allocation12 + $0x2d8] sm:$0xff]
        %v827 = vld [vmem:[#allocation12 + $0x2e0] sm:$0xff]
        %v828 = vld [vmem:[#allocation12 + $0x2e8] sm:$0xff]
        %v829 = vld [vmem:[#allocation12 + $0x2f0] sm:$0xff]
        %v830 = vld [vmem:[#allocation12 + $0x2f8] sm:$0xff]
        %v831 = vld [vmem:[#allocation12 + $0x300] sm:$0xff]
        %v832 = vld [vmem:[#allocation12 + $0x308] sm:$0xff]
        %v833 = vld [vmem:[#allocation12 + $0x310] sm:$0xff]
        %v834 = vld [vmem:[#allocation12 + $0x318] sm:$0xff]
        %v835 = vld [vmem:[#allocation12 + $0x320] sm:$0xff]
        %v836 = vld [vmem:[#allocation12 + $0x328] sm:$0xff]
        %v837 = vld [vmem:[#allocation12 + $0x330] sm:$0xff]
        %v838 = vld [vmem:[#allocation12 + $0x338] sm:$0xff]
        %v839 = vld [vmem:[#allocation12 + $0x340] sm:$0xff]
        %v840 = vld [vmem:[#allocation12 + $0x348] sm:$0xff]
        %v841 = vld [vmem:[#allocation12 + $0x350] sm:$0xff]
        %v842 = vld [vmem:[#allocation12 + $0x358] sm:$0xff]
        %v843 = vld [vmem:[#allocation12 + $0x360] sm:$0xff]
        %v844 = vld [vmem:[#allocation12 + $0x368] sm:$0xff]
        %v845 = vld [vmem:[#allocation12 + $0x370] sm:$0xff]
        %v846 = vld [vmem:[#allocation12 + $0x378] sm:$0xff]
        %v847 = vld [vmem:[#allocation12 + $0x380] sm:$0xff]
        %v848 = vld [vmem:[#allocation12 + $0x388] sm:$0xff]
        %v849 = vld [vmem:[#allocation12 + $0x390] sm:$0xff]
        %v850 = vld [vmem:[#allocation12 + $0x398] sm:$0xff]
        %v851 = vld [vmem:[#allocation12 + $0x3a0] sm:$0xff]
        %v852 = vld [vmem:[#allocation12 + $0x3a8] sm:$0xff]
        %v853 = vld [vmem:[#allocation12 + $0x3b0] sm:$0xff]
        %v854 = vld [vmem:[#allocation12 + $0x3b8] sm:$0xff]
        %v855 = vld [vmem:[#allocation12 + $0x3c0] sm:$0xff]
        %v856 = vld [vmem:[#allocation12 + $0x3c8] sm:$0xff]
        %v857 = vld [vmem:[#allocation12 + $0x3d0] sm:$0xff]
        %v858 = vld [vmem:[#allocation12 + $0x3d8] sm:$0xff]
        %v859 = vld [vmem:[#allocation12 + $0x3e0] sm:$0xff]
        %v860 = vld [vmem:[#allocation12 + $0x3e8] sm:$0xff]
        %v861 = vld [vmem:[#allocation12 + $0x3f0] sm:$0xff]
        %v862 = vld [vmem:[#allocation12 + $0x3f8] sm:$0xff]
        %863 = vmatpush.msra.mxu0 %v859
        %864 = vmatpush.msra.mxu0 %v855
        %865 = vmatpush.msra.mxu0 %v851
        %866 = vmatpush.msra.mxu0 %v847
        %867 = vmatpush.msra.mxu0 %v843
        %868 = vmatpush.msra.mxu0 %v839
        %869 = vmatpush.msra.mxu0 %v835
        %870 = vmatpush.msra.mxu0 %v831
        %871 = vmatpush.msra.mxu0 %v827
        %872 = vmatpush.msra.mxu0 %v823
        %873 = vmatpush.msra.mxu0 %v819
        %874 = vmatpush.msra.mxu0 %v815
        %875 = vmatpush.msra.mxu0 %v811
        %876 = vmatpush.msra.mxu0 %v807
        %877 = vmatpush.msra.mxu0 %v803
        %878 = vmatpush.msra.mxu0 %v799
        %879 = vmatmul.f32.gmra.mxu0 %v786
        %v880 = vpop.f32.mrf.mxu0
        %v881 = vadd.f32 0.0, %v880
        %882 = vdwg.mxu0
        %883 = vmatpush.msra.mxu0 %v860
        %884 = vmatpush.msra.mxu0 %v856
        %885 = vmatpush.msra.mxu0 %v852
        %886 = vmatpush.msra.mxu0 %v848
        %887 = vmatpush.msra.mxu0 %v844
        %888 = vmatpush.msra.mxu0 %v840
        %889 = vmatpush.msra.mxu0 %v836
        %890 = vmatpush.msra.mxu0 %v832
        %891 = vmatpush.msra.mxu0 %v828
        %892 = vmatpush.msra.mxu0 %v824
        %893 = vmatpush.msra.mxu0 %v820
        %894 = vmatpush.msra.mxu0 %v816
        %895 = vmatpush.msra.mxu0 %v812
        %896 = vmatpush.msra.mxu0 %v808
        %897 = vmatpush.msra.mxu0 %v804
        %898 = vmatpush.msra.mxu0 %v800
        %899 = vmatmul.f32.gmra.mxu0 %v786
        %v900 = vpop.f32.mrf.mxu0
        %v901 = vadd.f32 0.0, %v900
        %902 = vdwg.mxu0
        %903 = vmatpush.msra.mxu0 %v861
        %904 = vmatpush.msra.mxu0 %v857
        %905 = vmatpush.msra.mxu0 %v853
        %906 = vmatpush.msra.mxu0 %v849
        %907 = vmatpush.msra.mxu0 %v845
        %908 = vmatpush.msra.mxu0 %v841
        %909 = vmatpush.msra.mxu0 %v837
        %910 = vmatpush.msra.mxu0 %v833
        %911 = vmatpush.msra.mxu0 %v829
        %912 = vmatpush.msra.mxu0 %v825
        %913 = vmatpush.msra.mxu0 %v821
        %914 = vmatpush.msra.mxu0 %v817
        %915 = vmatpush.msra.mxu0 %v813
        %916 = vmatpush.msra.mxu0 %v809
        %917 = vmatpush.msra.mxu0 %v805
        %918 = vmatpush.msra.mxu0 %v801
        %919 = vmatmul.f32.gmra.mxu0 %v786
        %v920 = vpop.f32.mrf.mxu0
        %v921 = vadd.f32 0.0, %v920
        %922 = vdwg.mxu0
        %923 = vmatpush.msra.mxu0 %v862
        %924 = vmatpush.msra.mxu0 %v858
        %925 = vmatpush.msra.mxu0 %v854
        %926 = vmatpush.msra.mxu0 %v850
        %927 = vmatpush.msra.mxu0 %v846
        %928 = vmatpush.msra.mxu0 %v842
        %929 = vmatpush.msra.mxu0 %v838
        %930 = vmatpush.msra.mxu0 %v834
        %931 = vmatpush.msra.mxu0 %v830
        %932 = vmatpush.msra.mxu0 %v826
        %933 = vmatpush.msra.mxu0 %v822
        %934 = vmatpush.msra.mxu0 %v818
        %935 = vmatpush.msra.mxu0 %v814
        %936 = vmatpush.msra.mxu0 %v810
        %937 = vmatpush.msra.mxu0 %v806
        %938 = vmatpush.msra.mxu0 %v802
        %939 = vmatmul.f32.gmra.mxu0 %v786
        %v940 = vpop.f32.mrf.mxu0
        %v941 = vadd.f32 0.0, %v940
        %942 = vdwg.mxu0
        %v943 = vadd.f32 %v795, %v881
        %v944 = vadd.f32 %v796, %v901
        %v945 = vadd.f32 %v797, %v921
        %v946 = vadd.f32 %v798, %v941
        %v947 = vmul.f32 %v943, 0.5
        %v948 = vtanh.pop %v947
        %v949 = vmul.f32 %v948, 0.5
        %v950 = vadd.f32 %v949, 0.5
        %v951 = vmul.f32 %v944, 0.5
        %v952 = vtanh.pop %v951
        %v953 = vmul.f32 %v952, 0.5
        %v954 = vadd.f32 %v953, 0.5
        %v955 = vtanh.pop %v945
        %v956 = vmul.f32 %v946, 0.5
        %v957 = vtanh.pop %v956
        %v958 = vmul.f32 %v957, 0.5
        %v959 = vadd.f32 %v958, 0.5
        %v960 = vmul.f32 %v954, %v789
        %v961 = vmul.f32 %v950, %v955
        %v962 = vadd.f32 %v960, %v961
        %v963 = vtanh.pop %v962
        %v964 = vmul.f32 %v959, %v963
        %s965 = scalar_lea.vmem [#allocation12], 1024
        %v966 = vld [vmem:[%s965] sm:$0xff]
        %v967 = vld [vmem:[%s965 + $0x8] sm:$0xff]
        %v968 = vld [vmem:[%s965 + $0x10] sm:$0xff]
        %v969 = vld [vmem:[%s965 + $0x18] sm:$0xff]
        %v970 = vld [vmem:[%s965 + $0x20] sm:$0xff]
        %v971 = vld [vmem:[%s965 + $0x28] sm:$0xff]
        %v972 = vld [vmem:[%s965 + $0x30] sm:$0xff]
        %v973 = vld [vmem:[%s965 + $0x38] sm:$0xff]
        %v974 = vld [vmem:[%s965 + $0x40] sm:$0xff]
        %v975 = vld [vmem:[%s965 + $0x48] sm:$0xff]
        %v976 = vld [vmem:[%s965 + $0x50] sm:$0xff]
        %v977 = vld [vmem:[%s965 + $0x58] sm:$0xff]
        %v978 = vld [vmem:[%s965 + $0x60] sm:$0xff]
        %v979 = vld [vmem:[%s965 + $0x68] sm:$0xff]
        %v980 = vld [vmem:[%s965 + $0x70] sm:$0xff]
        %v981 = vld [vmem:[%s965 + $0x78] sm:$0xff]
        %v982 = vld [vmem:[%s965 + $0x80] sm:$0xff]
        %v983 = vld [vmem:[%s965 + $0x88] sm:$0xff]
        %v984 = vld [vmem:[%s965 + $0x90] sm:$0xff]
        %v985 = vld [vmem:[%s965 + $0x98] sm:$0xff]
        %v986 = vld [vmem:[%s965 + $0xa0] sm:$0xff]
        %v987 = vld [vmem:[%s965 + $0xa8] sm:$0xff]
        %v988 = vld [vmem:[%s965 + $0xb0] sm:$0xff]
        %v989 = vld [vmem:[%s965 + $0xb8] sm:$0xff]
        %v990 = vld [vmem:[%s965 + $0xc0] sm:$0xff]
        %v991 = vld [vmem:[%s965 + $0xc8] sm:$0xff]
        %v992 = vld [vmem:[%s965 + $0xd0] sm:$0xff]
        %v993 = vld [vmem:[%s965 + $0xd8] sm:$0xff]
        %v994 = vld [vmem:[%s965 + $0xe0] sm:$0xff]
        %v995 = vld [vmem:[%s965 + $0xe8] sm:$0xff]
        %v996 = vld [vmem:[%s965 + $0xf0] sm:$0xff]
        %v997 = vld [vmem:[%s965 + $0xf8] sm:$0xff]
        %v998 = vld [vmem:[%s965 + $0x100] sm:$0xff]
        %v999 = vld [vmem:[%s965 + $0x108] sm:$0xff]
        %v1000 = vld [vmem:[%s965 + $0x110] sm:$0xff]
        %v1001 = vld [vmem:[%s965 + $0x118] sm:$0xff]
        %v1002 = vld [vmem:[%s965 + $0x120] sm:$0xff]
        %v1003 = vld [vmem:[%s965 + $0x128] sm:$0xff]
        %v1004 = vld [vmem:[%s965 + $0x130] sm:$0xff]
        %v1005 = vld [vmem:[%s965 + $0x138] sm:$0xff]
        %v1006 = vld [vmem:[%s965 + $0x140] sm:$0xff]
        %v1007 = vld [vmem:[%s965 + $0x148] sm:$0xff]
        %v1008 = vld [vmem:[%s965 + $0x150] sm:$0xff]
        %v1009 = vld [vmem:[%s965 + $0x158] sm:$0xff]
        %v1010 = vld [vmem:[%s965 + $0x160] sm:$0xff]
        %v1011 = vld [vmem:[%s965 + $0x168] sm:$0xff]
        %v1012 = vld [vmem:[%s965 + $0x170] sm:$0xff]
        %v1013 = vld [vmem:[%s965 + $0x178] sm:$0xff]
        %v1014 = vld [vmem:[%s965 + $0x180] sm:$0xff]
        %v1015 = vld [vmem:[%s965 + $0x188] sm:$0xff]
        %v1016 = vld [vmem:[%s965 + $0x190] sm:$0xff]
        %v1017 = vld [vmem:[%s965 + $0x198] sm:$0xff]
        %v1018 = vld [vmem:[%s965 + $0x1a0] sm:$0xff]
        %v1019 = vld [vmem:[%s965 + $0x1a8] sm:$0xff]
        %v1020 = vld [vmem:[%s965 + $0x1b0] sm:$0xff]
        %v1021 = vld [vmem:[%s965 + $0x1b8] sm:$0xff]
        %v1022 = vld [vmem:[%s965 + $0x1c0] sm:$0xff]
        %v1023 = vld [vmem:[%s965 + $0x1c8] sm:$0xff]
        %v1024 = vld [vmem:[%s965 + $0x1d0] sm:$0xff]
        %v1025 = vld [vmem:[%s965 + $0x1d8] sm:$0xff]
        %v1026 = vld [vmem:[%s965 + $0x1e0] sm:$0xff]
        %v1027 = vld [vmem:[%s965 + $0x1e8] sm:$0xff]
        %v1028 = vld [vmem:[%s965 + $0x1f0] sm:$0xff]
        %v1029 = vld [vmem:[%s965 + $0x1f8] sm:$0xff]
        %v1030 = vld [vmem:[%s965 + $0x200] sm:$0xff]
        %v1031 = vld [vmem:[%s965 + $0x208] sm:$0xff]
        %v1032 = vld [vmem:[%s965 + $0x210] sm:$0xff]
        %v1033 = vld [vmem:[%s965 + $0x218] sm:$0xff]
        %v1034 = vld [vmem:[%s965 + $0x220] sm:$0xff]
        %v1035 = vld [vmem:[%s965 + $0x228] sm:$0xff]
        %v1036 = vld [vmem:[%s965 + $0x230] sm:$0xff]
        %v1037 = vld [vmem:[%s965 + $0x238] sm:$0xff]
        %v1038 = vld [vmem:[%s965 + $0x240] sm:$0xff]
        %v1039 = vld [vmem:[%s965 + $0x248] sm:$0xff]
        %v1040 = vld [vmem:[%s965 + $0x250] sm:$0xff]
        %v1041 = vld [vmem:[%s965 + $0x258] sm:$0xff]
        %v1042 = vld [vmem:[%s965 + $0x260] sm:$0xff]
        %v1043 = vld [vmem:[%s965 + $0x268] sm:$0xff]
        %v1044 = vld [vmem:[%s965 + $0x270] sm:$0xff]
        %v1045 = vld [vmem:[%s965 + $0x278] sm:$0xff]
        %v1046 = vld [vmem:[%s965 + $0x280] sm:$0xff]
        %v1047 = vld [vmem:[%s965 + $0x288] sm:$0xff]
        %v1048 = vld [vmem:[%s965 + $0x290] sm:$0xff]
        %v1049 = vld [vmem:[%s965 + $0x298] sm:$0xff]
        %v1050 = vld [vmem:[%s965 + $0x2a0] sm:$0xff]
        %v1051 = vld [vmem:[%s965 + $0x2a8] sm:$0xff]
        %v1052 = vld [vmem:[%s965 + $0x2b0] sm:$0xff]
        %v1053 = vld [vmem:[%s965 + $0x2b8] sm:$0xff]
        %v1054 = vld [vmem:[%s965 + $0x2c0] sm:$0xff]
        %v1055 = vld [vmem:[%s965 + $0x2c8] sm:$0xff]
        %v1056 = vld [vmem:[%s965 + $0x2d0] sm:$0xff]
        %v1057 = vld [vmem:[%s965 + $0x2d8] sm:$0xff]
        %v1058 = vld [vmem:[%s965 + $0x2e0] sm:$0xff]
        %v1059 = vld [vmem:[%s965 + $0x2e8] sm:$0xff]
        %v1060 = vld [vmem:[%s965 + $0x2f0] sm:$0xff]
        %v1061 = vld [vmem:[%s965 + $0x2f8] sm:$0xff]
        %v1062 = vld [vmem:[%s965 + $0x300] sm:$0xff]
        %v1063 = vld [vmem:[%s965 + $0x308] sm:$0xff]
        %v1064 = vld [vmem:[%s965 + $0x310] sm:$0xff]
        %v1065 = vld [vmem:[%s965 + $0x318] sm:$0xff]
        %v1066 = vld [vmem:[%s965 + $0x320] sm:$0xff]
        %v1067 = vld [vmem:[%s965 + $0x328] sm:$0xff]
        %v1068 = vld [vmem:[%s965 + $0x330] sm:$0xff]
        %v1069 = vld [vmem:[%s965 + $0x338] sm:$0xff]
        %v1070 = vld [vmem:[%s965 + $0x340] sm:$0xff]
        %v1071 = vld [vmem:[%s965 + $0x348] sm:$0xff]
        %v1072 = vld [vmem:[%s965 + $0x350] sm:$0xff]
        %v1073 = vld [vmem:[%s965 + $0x358] sm:$0xff]
        %v1074 = vld [vmem:[%s965 + $0x360] sm:$0xff]
        %v1075 = vld [vmem:[%s965 + $0x368] sm:$0xff]
        %v1076 = vld [vmem:[%s965 + $0x370] sm:$0xff]
        %v1077 = vld [vmem:[%s965 + $0x378] sm:$0xff]
        %v1078 = vld [vmem:[%s965 + $0x380] sm:$0xff]
        %v1079 = vld [vmem:[%s965 + $0x388] sm:$0xff]
        %v1080 = vld [vmem:[%s965 + $0x390] sm:$0xff]
        %v1081 = vld [vmem:[%s965 + $0x398] sm:$0xff]
        %v1082 = vld [vmem:[%s965 + $0x3a0] sm:$0xff]
        %v1083 = vld [vmem:[%s965 + $0x3a8] sm:$0xff]
        %v1084 = vld [vmem:[%s965 + $0x3b0] sm:$0xff]
        %v1085 = vld [vmem:[%s965 + $0x3b8] sm:$0xff]
        %v1086 = vld [vmem:[%s965 + $0x3c0] sm:$0xff]
        %v1087 = vld [vmem:[%s965 + $0x3c8] sm:$0xff]
        %v1088 = vld [vmem:[%s965 + $0x3d0] sm:$0xff]
        %v1089 = vld [vmem:[%s965 + $0x3d8] sm:$0xff]
        %v1090 = vld [vmem:[%s965 + $0x3e0] sm:$0xff]
        %v1091 = vld [vmem:[%s965 + $0x3e8] sm:$0xff]
        %v1092 = vld [vmem:[%s965 + $0x3f0] sm:$0xff]
        %v1093 = vld [vmem:[%s965 + $0x3f8] sm:$0xff]
        %1094 = vmatpush.msra.mxu0 %v1026
        %1095 = vmatpush.msra.mxu0 %v1022
        %1096 = vmatpush.msra.mxu0 %v1018
        %1097 = vmatpush.msra.mxu0 %v1014
        %1098 = vmatpush.msra.mxu0 %v1010
        %1099 = vmatpush.msra.mxu0 %v1006
        %1100 = vmatpush.msra.mxu0 %v1002
        %1101 = vmatpush.msra.mxu0 %v998
        %1102 = vmatpush.msra.mxu0 %v994
        %1103 = vmatpush.msra.mxu0 %v990
        %1104 = vmatpush.msra.mxu0 %v986
        %1105 = vmatpush.msra.mxu0 %v982
        %1106 = vmatpush.msra.mxu0 %v978
        %1107 = vmatpush.msra.mxu0 %v974
        %1108 = vmatpush.msra.mxu0 %v970
        %1109 = vmatpush.msra.mxu0 %v966
        %1110 = vmatmul.f32.gmra.mxu0 %v964
        %v1111 = vpop.f32.mrf.mxu0
        %v1112 = vadd.f32 %v778, %v1111
        %1113 = vdwg.mxu0
        %1114 = vmatpush.msra.mxu0 %v1090
        %1115 = vmatpush.msra.mxu0 %v1086
        %1116 = vmatpush.msra.mxu0 %v1082
        %1117 = vmatpush.msra.mxu0 %v1078
        %1118 = vmatpush.msra.mxu0 %v1074
        %1119 = vmatpush.msra.mxu0 %v1070
        %1120 = vmatpush.msra.mxu0 %v1066
        %1121 = vmatpush.msra.mxu0 %v1062
        %1122 = vmatpush.msra.mxu0 %v1058
        %1123 = vmatpush.msra.mxu0 %v1054
        %1124 = vmatpush.msra.mxu0 %v1050
        %1125 = vmatpush.msra.mxu0 %v1046
        %1126 = vmatpush.msra.mxu0 %v1042
        %1127 = vmatpush.msra.mxu0 %v1038
        %1128 = vmatpush.msra.mxu0 %v1034
        %1129 = vmatpush.msra.mxu0 %v1030
        %1130 = vmatmul.f32.gmra.mxu0 %v788
        %v1131 = vpop.f32.mrf.mxu0
        %v1132 = vadd.f32 %v1112, %v1131
        %1133 = vdwg.mxu0
        %1134 = vmatpush.msra.mxu0 %v1027
        %1135 = vmatpush.msra.mxu0 %v1023
        %1136 = vmatpush.msra.mxu0 %v1019
        %1137 = vmatpush.msra.mxu0 %v1015
        %1138 = vmatpush.msra.mxu0 %v1011
        %1139 = vmatpush.msra.mxu0 %v1007
        %1140 = vmatpush.msra.mxu0 %v1003
        %1141 = vmatpush.msra.mxu0 %v999
        %1142 = vmatpush.msra.mxu0 %v995
        %1143 = vmatpush.msra.mxu0 %v991
        %1144 = vmatpush.msra.mxu0 %v987
        %1145 = vmatpush.msra.mxu0 %v983
        %1146 = vmatpush.msra.mxu0 %v979
        %1147 = vmatpush.msra.mxu0 %v975
        %1148 = vmatpush.msra.mxu0 %v971
        %1149 = vmatpush.msra.mxu0 %v967
        %1150 = vmatmul.f32.gmra.mxu0 %v964
        %v1151 = vpop.f32.mrf.mxu0
        %v1152 = vadd.f32 %v779, %v1151
        %1153 = vdwg.mxu0
        %1154 = vmatpush.msra.mxu0 %v1091
        %1155 = vmatpush.msra.mxu0 %v1087
        %1156 = vmatpush.msra.mxu0 %v1083
        %1157 = vmatpush.msra.mxu0 %v1079
        %1158 = vmatpush.msra.mxu0 %v1075
        %1159 = vmatpush.msra.mxu0 %v1071
        %1160 = vmatpush.msra.mxu0 %v1067
        %1161 = vmatpush.msra.mxu0 %v1063
        %1162 = vmatpush.msra.mxu0 %v1059
        %1163 = vmatpush.msra.mxu0 %v1055
        %1164 = vmatpush.msra.mxu0 %v1051
        %1165 = vmatpush.msra.mxu0 %v1047
        %1166 = vmatpush.msra.mxu0 %v1043
        %1167 = vmatpush.msra.mxu0 %v1039
        %1168 = vmatpush.msra.mxu0 %v1035
        %1169 = vmatpush.msra.mxu0 %v1031
        %1170 = vmatmul.f32.gmra.mxu0 %v788
        %v1171 = vpop.f32.mrf.mxu0
        %v1172 = vadd.f32 %v1152, %v1171
        %1173 = vdwg.mxu0
        %1174 = vmatpush.msra.mxu0 %v1028
        %1175 = vmatpush.msra.mxu0 %v1024
        %1176 = vmatpush.msra.mxu0 %v1020
        %1177 = vmatpush.msra.mxu0 %v1016
        %1178 = vmatpush.msra.mxu0 %v1012
        %1179 = vmatpush.msra.mxu0 %v1008
        %1180 = vmatpush.msra.mxu0 %v1004
        %1181 = vmatpush.msra.mxu0 %v1000
        %1182 = vmatpush.msra.mxu0 %v996
        %1183 = vmatpush.msra.mxu0 %v992
        %1184 = vmatpush.msra.mxu0 %v988
        %1185 = vmatpush.msra.mxu0 %v984
        %1186 = vmatpush.msra.mxu0 %v980
        %1187 = vmatpush.msra.mxu0 %v976
        %1188 = vmatpush.msra.mxu0 %v972
        %1189 = vmatpush.msra.mxu0 %v968
        %1190 = vmatmul.f32.gmra.mxu0 %v964
        %v1191 = vpop.f32.mrf.mxu0
        %v1192 = vadd.f32 %v780, %v1191
        %1193 = vdwg.mxu0
        %1194 = vmatpush.msra.mxu0 %v1092
        %1195 = vmatpush.msra.mxu0 %v1088
        %1196 = vmatpush.msra.mxu0 %v1084
        %1197 = vmatpush.msra.mxu0 %v1080
        %1198 = vmatpush.msra.mxu0 %v1076
        %1199 = vmatpush.msra.mxu0 %v1072
        %1200 = vmatpush.msra.mxu0 %v1068
        %1201 = vmatpush.msra.mxu0 %v1064
        %1202 = vmatpush.msra.mxu0 %v1060
        %1203 = vmatpush.msra.mxu0 %v1056
        %1204 = vmatpush.msra.mxu0 %v1052
        %1205 = vmatpush.msra.mxu0 %v1048
        %1206 = vmatpush.msra.mxu0 %v1044
        %1207 = vmatpush.msra.mxu0 %v1040
        %1208 = vmatpush.msra.mxu0 %v1036
        %1209 = vmatpush.msra.mxu0 %v1032
        %1210 = vmatmul.f32.gmra.mxu0 %v788
        %v1211 = vpop.f32.mrf.mxu0
        %v1212 = vadd.f32 %v1192, %v1211
        %1213 = vdwg.mxu0
        %1214 = vmatpush.msra.mxu0 %v1029
        %1215 = vmatpush.msra.mxu0 %v1025
        %1216 = vmatpush.msra.mxu0 %v1021
        %1217 = vmatpush.msra.mxu0 %v1017
        %1218 = vmatpush.msra.mxu0 %v1013
        %1219 = vmatpush.msra.mxu0 %v1009
        %1220 = vmatpush.msra.mxu0 %v1005
        %1221 = vmatpush.msra.mxu0 %v1001
        %1222 = vmatpush.msra.mxu0 %v997
        %1223 = vmatpush.msra.mxu0 %v993
        %1224 = vmatpush.msra.mxu0 %v989
        %1225 = vmatpush.msra.mxu0 %v985
        %1226 = vmatpush.msra.mxu0 %v981
        %1227 = vmatpush.msra.mxu0 %v977
        %1228 = vmatpush.msra.mxu0 %v973
        %1229 = vmatpush.msra.mxu0 %v969
        %1230 = vmatmul.f32.gmra.mxu0 %v964
        %v1231 = vpop.f32.mrf.mxu0
        %v1232 = vadd.f32 %v781, %v1231
        %1233 = vdwg.mxu0
        %1234 = vmatpush.msra.mxu0 %v1093
        %1235 = vmatpush.msra.mxu0 %v1089
        %1236 = vmatpush.msra.mxu0 %v1085
        %1237 = vmatpush.msra.mxu0 %v1081
        %1238 = vmatpush.msra.mxu0 %v1077
        %1239 = vmatpush.msra.mxu0 %v1073
        %1240 = vmatpush.msra.mxu0 %v1069
        %1241 = vmatpush.msra.mxu0 %v1065
        %1242 = vmatpush.msra.mxu0 %v1061
        %1243 = vmatpush.msra.mxu0 %v1057
        %1244 = vmatpush.msra.mxu0 %v1053
        %1245 = vmatpush.msra.mxu0 %v1049
        %1246 = vmatpush.msra.mxu0 %v1045
        %1247 = vmatpush.msra.mxu0 %v1041
        %1248 = vmatpush.msra.mxu0 %v1037
        %1249 = vmatpush.msra.mxu0 %v1033
        %1250 = vmatmul.f32.gmra.mxu0 %v788
        %v1251 = vpop.f32.mrf.mxu0
        %v1252 = vadd.f32 %v1232, %v1251
        %1253 = vdwg.mxu0
        %v1254 = vmul.f32 %v1132, 0.5
        %v1255 = vtanh.pop %v1254
        %v1256 = vmul.f32 %v1255, 0.5
        %v1257 = vadd.f32 %v1256, 0.5
        %v1258 = vmul.f32 %v1172, 0.5
        %v1259 = vtanh.pop %v1258
        %v1260 = vmul.f32 %v1259, 0.5
        %v1261 = vadd.f32 %v1260, 0.5
        %v1262 = vtanh.pop %v1212
        %v1263 = vmul.f32 %v1252, 0.5
        %v1264 = vtanh.pop %v1263
        %v1265 = vmul.f32 %v1264, 0.5
        %v1266 = vadd.f32 %v1265, 0.5
        %v1267 = vmul.f32 %v1261, %v791
        %v1268 = vmul.f32 %v1257, %v1262
        %v1269 = vadd.f32 %v1267, %v1268
        %v1270 = vtanh.pop %v1269
        %v1271 = vmul.f32 %v1266, %v1270
        %1272 = vst [vmem:[#allocation3] sm:$0xff] %v1271
        %s1273 = smul.u32 1, 4
        %s1274 = smul.addr %s1273, 8
        %s1275 = scalar_lea.vmem [#allocation2], %s1274
        %v1276 = vld [vmem:[%s1275] sm:$0xff]
        %v1277 = vld [vmem:[%s1275 + $0x8] sm:$0xff]
        %v1278 = vld [vmem:[%s1275 + $0x10] sm:$0xff]
        %v1279 = vld [vmem:[%s1275 + $0x18] sm:$0xff]
        %v1280 = vld [vmem:[#allocation12 + $0x200] sm:$0xff]
        %v1281 = vld [vmem:[#allocation12 + $0x208] sm:$0xff]
        %v1282 = vld [vmem:[#allocation12 + $0x210] sm:$0xff]
        %v1283 = vld [vmem:[#allocation12 + $0x218] sm:$0xff]
        %v1284 = vld [vmem:[#allocation12 + $0x220] sm:$0xff]
        %v1285 = vld [vmem:[#allocation12 + $0x228] sm:$0xff]
        %v1286 = vld [vmem:[#allocation12 + $0x230] sm:$0xff]
        %v1287 = vld [vmem:[#allocation12 + $0x238] sm:$0xff]
        %v1288 = vld [vmem:[#allocation12 + $0x240] sm:$0xff]
        %v1289 = vld [vmem:[#allocation12 + $0x248] sm:$0xff]
        %v1290 = vld [vmem:[#allocation12 + $0x250] sm:$0xff]
        %v1291 = vld [vmem:[#allocation12 + $0x258] sm:$0xff]
        %v1292 = vld [vmem:[#allocation12 + $0x260] sm:$0xff]
        %v1293 = vld [vmem:[#allocation12 + $0x268] sm:$0xff]
        %v1294 = vld [vmem:[#allocation12 + $0x270] sm:$0xff]
        %v1295 = vld [vmem:[#allocation12 + $0x278] sm:$0xff]
        %v1296 = vld [vmem:[#allocation12 + $0x280] sm:$0xff]
        %v1297 = vld [vmem:[#allocation12 + $0x288] sm:$0xff]
        %v1298 = vld [vmem:[#allocation12 + $0x290] sm:$0xff]
        %v1299 = vld [vmem:[#allocation12 + $0x298] sm:$0xff]
        %v1300 = vld [vmem:[#allocation12 + $0x2a0] sm:$0xff]
        %v1301 = vld [vmem:[#allocation12 + $0x2a8] sm:$0xff]
        %v1302 = vld [vmem:[#allocation12 + $0x2b0] sm:$0xff]
        %v1303 = vld [vmem:[#allocation12 + $0x2b8] sm:$0xff]
        %v1304 = vld [vmem:[#allocation12 + $0x2c0] sm:$0xff]
        %v1305 = vld [vmem:[#allocation12 + $0x2c8] sm:$0xff]
        %v1306 = vld [vmem:[#allocation12 + $0x2d0] sm:$0xff]
        %v1307 = vld [vmem:[#allocation12 + $0x2d8] sm:$0xff]
        %v1308 = vld [vmem:[#allocation12 + $0x2e0] sm:$0xff]
        %v1309 = vld [vmem:[#allocation12 + $0x2e8] sm:$0xff]
        %v1310 = vld [vmem:[#allocation12 + $0x2f0] sm:$0xff]
        %v1311 = vld [vmem:[#allocation12 + $0x2f8] sm:$0xff]
        %v1312 = vld [vmem:[#allocation12 + $0x300] sm:$0xff]
        %v1313 = vld [vmem:[#allocation12 + $0x308] sm:$0xff]
        %v1314 = vld [vmem:[#allocation12 + $0x310] sm:$0xff]
        %v1315 = vld [vmem:[#allocation12 + $0x318] sm:$0xff]
        %v1316 = vld [vmem:[#allocation12 + $0x320] sm:$0xff]
        %v1317 = vld [vmem:[#allocation12 + $0x328] sm:$0xff]
        %v1318 = vld [vmem:[#allocation12 + $0x330] sm:$0xff]
        %v1319 = vld [vmem:[#allocation12 + $0x338] sm:$0xff]
        %v1320 = vld [vmem:[#allocation12 + $0x340] sm:$0xff]
        %v1321 = vld [vmem:[#allocation12 + $0x348] sm:$0xff]
        %v1322 = vld [vmem:[#allocation12 + $0x350] sm:$0xff]
        %v1323 = vld [vmem:[#allocation12 + $0x358] sm:$0xff]
        %v1324 = vld [vmem:[#allocation12 + $0x360] sm:$0xff]
        %v1325 = vld [vmem:[#allocation12 + $0x368] sm:$0xff]
        %v1326 = vld [vmem:[#allocation12 + $0x370] sm:$0xff]
        %v1327 = vld [vmem:[#allocation12 + $0x378] sm:$0xff]
        %v1328 = vld [vmem:[#allocation12 + $0x380] sm:$0xff]
        %v1329 = vld [vmem:[#allocation12 + $0x388] sm:$0xff]
        %v1330 = vld [vmem:[#allocation12 + $0x390] sm:$0xff]
        %v1331 = vld [vmem:[#allocation12 + $0x398] sm:$0xff]
        %v1332 = vld [vmem:[#allocation12 + $0x3a0] sm:$0xff]
        %v1333 = vld [vmem:[#allocation12 + $0x3a8] sm:$0xff]
        %v1334 = vld [vmem:[#allocation12 + $0x3b0] sm:$0xff]
        %v1335 = vld [vmem:[#allocation12 + $0x3b8] sm:$0xff]
        %v1336 = vld [vmem:[#allocation12 + $0x3c0] sm:$0xff]
        %v1337 = vld [vmem:[#allocation12 + $0x3c8] sm:$0xff]
        %v1338 = vld [vmem:[#allocation12 + $0x3d0] sm:$0xff]
        %v1339 = vld [vmem:[#allocation12 + $0x3d8] sm:$0xff]
        %v1340 = vld [vmem:[#allocation12 + $0x3e0] sm:$0xff]
        %v1341 = vld [vmem:[#allocation12 + $0x3e8] sm:$0xff]
        %v1342 = vld [vmem:[#allocation12 + $0x3f0] sm:$0xff]
        %v1343 = vld [vmem:[#allocation12 + $0x3f8] sm:$0xff]
        %1344 = vmatpush.msra.mxu0 %v1340
        %1345 = vmatpush.msra.mxu0 %v1336
        %1346 = vmatpush.msra.mxu0 %v1332
        %1347 = vmatpush.msra.mxu0 %v1328
        %1348 = vmatpush.msra.mxu0 %v1324
        %1349 = vmatpush.msra.mxu0 %v1320
        %1350 = vmatpush.msra.mxu0 %v1316
        %1351 = vmatpush.msra.mxu0 %v1312
        %1352 = vmatpush.msra.mxu0 %v1308
        %1353 = vmatpush.msra.mxu0 %v1304
        %1354 = vmatpush.msra.mxu0 %v1300
        %1355 = vmatpush.msra.mxu0 %v1296
        %1356 = vmatpush.msra.mxu0 %v1292
        %1357 = vmatpush.msra.mxu0 %v1288
        %1358 = vmatpush.msra.mxu0 %v1284
        %1359 = vmatpush.msra.mxu0 %v1280
        %1360 = vmatmul.f32.gmra.mxu0 %v964
        %v1361 = vpop.f32.mrf.mxu0
        %v1362 = vadd.f32 0.0, %v1361
        %1363 = vdwg.mxu0
        %1364 = vmatpush.msra.mxu0 %v1341
        %1365 = vmatpush.msra.mxu0 %v1337
        %1366 = vmatpush.msra.mxu0 %v1333
        %1367 = vmatpush.msra.mxu0 %v1329
        %1368 = vmatpush.msra.mxu0 %v1325
        %1369 = vmatpush.msra.mxu0 %v1321
        %1370 = vmatpush.msra.mxu0 %v1317
        %1371 = vmatpush.msra.mxu0 %v1313
        %1372 = vmatpush.msra.mxu0 %v1309
        %1373 = vmatpush.msra.mxu0 %v1305
        %1374 = vmatpush.msra.mxu0 %v1301
        %1375 = vmatpush.msra.mxu0 %v1297
        %1376 = vmatpush.msra.mxu0 %v1293
        %1377 = vmatpush.msra.mxu0 %v1289
        %1378 = vmatpush.msra.mxu0 %v1285
        %1379 = vmatpush.msra.mxu0 %v1281
        %1380 = vmatmul.f32.gmra.mxu0 %v964
        %v1381 = vpop.f32.mrf.mxu0
        %v1382 = vadd.f32 0.0, %v1381
        %1383 = vdwg.mxu0
        %1384 = vmatpush.msra.mxu0 %v1342
        %1385 = vmatpush.msra.mxu0 %v1338
        %1386 = vmatpush.msra.mxu0 %v1334
        %1387 = vmatpush.msra.mxu0 %v1330
        %1388 = vmatpush.msra.mxu0 %v1326
        %1389 = vmatpush.msra.mxu0 %v1322
        %1390 = vmatpush.msra.mxu0 %v1318
        %1391 = vmatpush.msra.mxu0 %v1314
        %1392 = vmatpush.msra.mxu0 %v1310
        %1393 = vmatpush.msra.mxu0 %v1306
        %1394 = vmatpush.msra.mxu0 %v1302
        %1395 = vmatpush.msra.mxu0 %v1298
        %1396 = vmatpush.msra.mxu0 %v1294
        %1397 = vmatpush.msra.mxu0 %v1290
        %1398 = vmatpush.msra.mxu0 %v1286
        %1399 = vmatpush.msra.mxu0 %v1282
        %1400 = vmatmul.f32.gmra.mxu0 %v964
        %v1401 = vpop.f32.mrf.mxu0
        %v1402 = vadd.f32 0.0, %v1401
        %1403 = vdwg.mxu0
        %1404 = vmatpush.msra.mxu0 %v1343
        %1405 = vmatpush.msra.mxu0 %v1339
        %1406 = vmatpush.msra.mxu0 %v1335
        %1407 = vmatpush.msra.mxu0 %v1331
        %1408 = vmatpush.msra.mxu0 %v1327
        %1409 = vmatpush.msra.mxu0 %v1323
        %1410 = vmatpush.msra.mxu0 %v1319
        %1411 = vmatpush.msra.mxu0 %v1315
        %1412 = vmatpush.msra.mxu0 %v1311
        %1413 = vmatpush.msra.mxu0 %v1307
        %1414 = vmatpush.msra.mxu0 %v1303
        %1415 = vmatpush.msra.mxu0 %v1299
        %1416 = vmatpush.msra.mxu0 %v1295
        %1417 = vmatpush.msra.mxu0 %v1291
        %1418 = vmatpush.msra.mxu0 %v1287
        %1419 = vmatpush.msra.mxu0 %v1283
        %1420 = vmatmul.f32.gmra.mxu0 %v964
        %v1421 = vpop.f32.mrf.mxu0
        %v1422 = vadd.f32 0.0, %v1421
        %1423 = vdwg.mxu0
        %v1424 = vadd.f32 %v1276, %v1362
        %v1425 = vadd.f32 %v1277, %v1382
        %v1426 = vadd.f32 %v1278, %v1402
        %v1427 = vadd.f32 %v1279, %v1422
        %v1428 = vmul.f32 %v1424, 0.5
        %v1429 = vtanh.pop %v1428
        %v1430 = vmul.f32 %v1429, 0.5
        %v1431 = vadd.f32 %v1430, 0.5
        %v1432 = vmul.f32 %v1425, 0.5
        %v1433 = vtanh.pop %v1432
        %v1434 = vmul.f32 %v1433, 0.5
        %v1435 = vadd.f32 %v1434, 0.5
        %v1436 = vtanh.pop %v1426
        %v1437 = vmul.f32 %v1427, 0.5
        %v1438 = vtanh.pop %v1437
        %v1439 = vmul.f32 %v1438, 0.5
        %v1440 = vadd.f32 %v1439, 0.5
        %v1441 = vmul.f32 %v1435, %v962
        %v1442 = vmul.f32 %v1431, %v1436
        %v1443 = vadd.f32 %v1441, %v1442
        %v1444 = vtanh.pop %v1443
        %v1445 = vmul.f32 %v1440, %v1444
        %v1446 = vld [vmem:[%s965] sm:$0xff]
        %v1447 = vld [vmem:[%s965 + $0x8] sm:$0xff]
        %v1448 = vld [vmem:[%s965 + $0x10] sm:$0xff]
        %v1449 = vld [vmem:[%s965 + $0x18] sm:$0xff]
        %v1450 = vld [vmem:[%s965 + $0x20] sm:$0xff]
        %v1451 = vld [vmem:[%s965 + $0x28] sm:$0xff]
        %v1452 = vld [vmem:[%s965 + $0x30] sm:$0xff]
        %v1453 = vld [vmem:[%s965 + $0x38] sm:$0xff]
        %v1454 = vld [vmem:[%s965 + $0x40] sm:$0xff]
        %v1455 = vld [vmem:[%s965 + $0x48] sm:$0xff]
        %v1456 = vld [vmem:[%s965 + $0x50] sm:$0xff]
        %v1457 = vld [vmem:[%s965 + $0x58] sm:$0xff]
        %v1458 = vld [vmem:[%s965 + $0x60] sm:$0xff]
        %v1459 = vld [vmem:[%s965 + $0x68] sm:$0xff]
        %v1460 = vld [vmem:[%s965 + $0x70] sm:$0xff]
        %v1461 = vld [vmem:[%s965 + $0x78] sm:$0xff]
        %v1462 = vld [vmem:[%s965 + $0x80] sm:$0xff]
        %v1463 = vld [vmem:[%s965 + $0x88] sm:$0xff]
        %v1464 = vld [vmem:[%s965 + $0x90] sm:$0xff]
        %v1465 = vld [vmem:[%s965 + $0x98] sm:$0xff]
        %v1466 = vld [vmem:[%s965 + $0xa0] sm:$0xff]
        %v1467 = vld [vmem:[%s965 + $0xa8] sm:$0xff]
        %v1468 = vld [vmem:[%s965 + $0xb0] sm:$0xff]
        %v1469 = vld [vmem:[%s965 + $0xb8] sm:$0xff]
        %v1470 = vld [vmem:[%s965 + $0xc0] sm:$0xff]
        %v1471 = vld [vmem:[%s965 + $0xc8] sm:$0xff]
        %v1472 = vld [vmem:[%s965 + $0xd0] sm:$0xff]
        %v1473 = vld [vmem:[%s965 + $0xd8] sm:$0xff]
        %v1474 = vld [vmem:[%s965 + $0xe0] sm:$0xff]
        %v1475 = vld [vmem:[%s965 + $0xe8] sm:$0xff]
        %v1476 = vld [vmem:[%s965 + $0xf0] sm:$0xff]
        %v1477 = vld [vmem:[%s965 + $0xf8] sm:$0xff]
        %v1478 = vld [vmem:[%s965 + $0x100] sm:$0xff]
        %v1479 = vld [vmem:[%s965 + $0x108] sm:$0xff]
        %v1480 = vld [vmem:[%s965 + $0x110] sm:$0xff]
        %v1481 = vld [vmem:[%s965 + $0x118] sm:$0xff]
        %v1482 = vld [vmem:[%s965 + $0x120] sm:$0xff]
        %v1483 = vld [vmem:[%s965 + $0x128] sm:$0xff]
        %v1484 = vld [vmem:[%s965 + $0x130] sm:$0xff]
        %v1485 = vld [vmem:[%s965 + $0x138] sm:$0xff]
        %v1486 = vld [vmem:[%s965 + $0x140] sm:$0xff]
        %v1487 = vld [vmem:[%s965 + $0x148] sm:$0xff]
        %v1488 = vld [vmem:[%s965 + $0x150] sm:$0xff]
        %v1489 = vld [vmem:[%s965 + $0x158] sm:$0xff]
        %v1490 = vld [vmem:[%s965 + $0x160] sm:$0xff]
        %v1491 = vld [vmem:[%s965 + $0x168] sm:$0xff]
        %v1492 = vld [vmem:[%s965 + $0x170] sm:$0xff]
        %v1493 = vld [vmem:[%s965 + $0x178] sm:$0xff]
        %v1494 = vld [vmem:[%s965 + $0x180] sm:$0xff]
        %v1495 = vld [vmem:[%s965 + $0x188] sm:$0xff]
        %v1496 = vld [vmem:[%s965 + $0x190] sm:$0xff]
        %v1497 = vld [vmem:[%s965 + $0x198] sm:$0xff]
        %v1498 = vld [vmem:[%s965 + $0x1a0] sm:$0xff]
        %v1499 = vld [vmem:[%s965 + $0x1a8] sm:$0xff]
        %v1500 = vld [vmem:[%s965 + $0x1b0] sm:$0xff]
        %v1501 = vld [vmem:[%s965 + $0x1b8] sm:$0xff]
        %v1502 = vld [vmem:[%s965 + $0x1c0] sm:$0xff]
        %v1503 = vld [vmem:[%s965 + $0x1c8] sm:$0xff]
        %v1504 = vld [vmem:[%s965 + $0x1d0] sm:$0xff]
        %v1505 = vld [vmem:[%s965 + $0x1d8] sm:$0xff]
        %v1506 = vld [vmem:[%s965 + $0x1e0] sm:$0xff]
        %v1507 = vld [vmem:[%s965 + $0x1e8] sm:$0xff]
        %v1508 = vld [vmem:[%s965 + $0x1f0] sm:$0xff]
        %v1509 = vld [vmem:[%s965 + $0x1f8] sm:$0xff]
        %v1510 = vld [vmem:[%s965 + $0x200] sm:$0xff]
        %v1511 = vld [vmem:[%s965 + $0x208] sm:$0xff]
        %v1512 = vld [vmem:[%s965 + $0x210] sm:$0xff]
        %v1513 = vld [vmem:[%s965 + $0x218] sm:$0xff]
        %v1514 = vld [vmem:[%s965 + $0x220] sm:$0xff]
        %v1515 = vld [vmem:[%s965 + $0x228] sm:$0xff]
        %v1516 = vld [vmem:[%s965 + $0x230] sm:$0xff]
        %v1517 = vld [vmem:[%s965 + $0x238] sm:$0xff]
        %v1518 = vld [vmem:[%s965 + $0x240] sm:$0xff]
        %v1519 = vld [vmem:[%s965 + $0x248] sm:$0xff]
        %v1520 = vld [vmem:[%s965 + $0x250] sm:$0xff]
        %v1521 = vld [vmem:[%s965 + $0x258] sm:$0xff]
        %v1522 = vld [vmem:[%s965 + $0x260] sm:$0xff]
        %v1523 = vld [vmem:[%s965 + $0x268] sm:$0xff]
        %v1524 = vld [vmem:[%s965 + $0x270] sm:$0xff]
        %v1525 = vld [vmem:[%s965 + $0x278] sm:$0xff]
        %v1526 = vld [vmem:[%s965 + $0x280] sm:$0xff]
        %v1527 = vld [vmem:[%s965 + $0x288] sm:$0xff]
        %v1528 = vld [vmem:[%s965 + $0x290] sm:$0xff]
        %v1529 = vld [vmem:[%s965 + $0x298] sm:$0xff]
        %v1530 = vld [vmem:[%s965 + $0x2a0] sm:$0xff]
        %v1531 = vld [vmem:[%s965 + $0x2a8] sm:$0xff]
        %v1532 = vld [vmem:[%s965 + $0x2b0] sm:$0xff]
        %v1533 = vld [vmem:[%s965 + $0x2b8] sm:$0xff]
        %v1534 = vld [vmem:[%s965 + $0x2c0] sm:$0xff]
        %v1535 = vld [vmem:[%s965 + $0x2c8] sm:$0xff]
        %v1536 = vld [vmem:[%s965 + $0x2d0] sm:$0xff]
        %v1537 = vld [vmem:[%s965 + $0x2d8] sm:$0xff]
        %v1538 = vld [vmem:[%s965 + $0x2e0] sm:$0xff]
        %v1539 = vld [vmem:[%s965 + $0x2e8] sm:$0xff]
        %v1540 = vld [vmem:[%s965 + $0x2f0] sm:$0xff]
        %v1541 = vld [vmem:[%s965 + $0x2f8] sm:$0xff]
        %v1542 = vld [vmem:[%s965 + $0x300] sm:$0xff]
        %v1543 = vld [vmem:[%s965 + $0x308] sm:$0xff]
        %v1544 = vld [vmem:[%s965 + $0x310] sm:$0xff]
        %v1545 = vld [vmem:[%s965 + $0x318] sm:$0xff]
        %v1546 = vld [vmem:[%s965 + $0x320] sm:$0xff]
        %v1547 = vld [vmem:[%s965 + $0x328] sm:$0xff]
        %v1548 = vld [vmem:[%s965 + $0x330] sm:$0xff]
        %v1549 = vld [vmem:[%s965 + $0x338] sm:$0xff]
        %v1550 = vld [vmem:[%s965 + $0x340] sm:$0xff]
        %v1551 = vld [vmem:[%s965 + $0x348] sm:$0xff]
        %v1552 = vld [vmem:[%s965 + $0x350] sm:$0xff]
        %v1553 = vld [vmem:[%s965 + $0x358] sm:$0xff]
        %v1554 = vld [vmem:[%s965 + $0x360] sm:$0xff]
        %v1555 = vld [vmem:[%s965 + $0x368] sm:$0xff]
        %v1556 = vld [vmem:[%s965 + $0x370] sm:$0xff]
        %v1557 = vld [vmem:[%s965 + $0x378] sm:$0xff]
        %v1558 = vld [vmem:[%s965 + $0x380] sm:$0xff]
        %v1559 = vld [vmem:[%s965 + $0x388] sm:$0xff]
        %v1560 = vld [vmem:[%s965 + $0x390] sm:$0xff]
        %v1561 = vld [vmem:[%s965 + $0x398] sm:$0xff]
        %v1562 = vld [vmem:[%s965 + $0x3a0] sm:$0xff]
        %v1563 = vld [vmem:[%s965 + $0x3a8] sm:$0xff]
        %v1564 = vld [vmem:[%s965 + $0x3b0] sm:$0xff]
        %v1565 = vld [vmem:[%s965 + $0x3b8] sm:$0xff]
        %v1566 = vld [vmem:[%s965 + $0x3c0] sm:$0xff]
        %v1567 = vld [vmem:[%s965 + $0x3c8] sm:$0xff]
        %v1568 = vld [vmem:[%s965 + $0x3d0] sm:$0xff]
        %v1569 = vld [vmem:[%s965 + $0x3d8] sm:$0xff]
        %v1570 = vld [vmem:[%s965 + $0x3e0] sm:$0xff]
        %v1571 = vld [vmem:[%s965 + $0x3e8] sm:$0xff]
        %v1572 = vld [vmem:[%s965 + $0x3f0] sm:$0xff]
        %v1573 = vld [vmem:[%s965 + $0x3f8] sm:$0xff]
        %1574 = vmatpush.msra.mxu0 %v1506
        %1575 = vmatpush.msra.mxu0 %v1502
        %1576 = vmatpush.msra.mxu0 %v1498
        %1577 = vmatpush.msra.mxu0 %v1494
        %1578 = vmatpush.msra.mxu0 %v1490
        %1579 = vmatpush.msra.mxu0 %v1486
        %1580 = vmatpush.msra.mxu0 %v1482
        %1581 = vmatpush.msra.mxu0 %v1478
        %1582 = vmatpush.msra.mxu0 %v1474
        %1583 = vmatpush.msra.mxu0 %v1470
        %1584 = vmatpush.msra.mxu0 %v1466
        %1585 = vmatpush.msra.mxu0 %v1462
        %1586 = vmatpush.msra.mxu0 %v1458
        %1587 = vmatpush.msra.mxu0 %v1454
        %1588 = vmatpush.msra.mxu0 %v1450
        %1589 = vmatpush.msra.mxu0 %v1446
        %1590 = vmatmul.f32.gmra.mxu0 %v1445
        %v1591 = vpop.f32.mrf.mxu0
        %v1592 = vadd.f32 %v778, %v1591
        %1593 = vdwg.mxu0
        %1594 = vmatpush.msra.mxu0 %v1570
        %1595 = vmatpush.msra.mxu0 %v1566
        %1596 = vmatpush.msra.mxu0 %v1562
        %1597 = vmatpush.msra.mxu0 %v1558
        %1598 = vmatpush.msra.mxu0 %v1554
        %1599 = vmatpush.msra.mxu0 %v1550
        %1600 = vmatpush.msra.mxu0 %v1546
        %1601 = vmatpush.msra.mxu0 %v1542
        %1602 = vmatpush.msra.mxu0 %v1538
        %1603 = vmatpush.msra.mxu0 %v1534
        %1604 = vmatpush.msra.mxu0 %v1530
        %1605 = vmatpush.msra.mxu0 %v1526
        %1606 = vmatpush.msra.mxu0 %v1522
        %1607 = vmatpush.msra.mxu0 %v1518
        %1608 = vmatpush.msra.mxu0 %v1514
        %1609 = vmatpush.msra.mxu0 %v1510
        %1610 = vmatmul.f32.gmra.mxu0 %v1271
        %v1611 = vpop.f32.mrf.mxu0
        %v1612 = vadd.f32 %v1592, %v1611
        %1613 = vdwg.mxu0
        %1614 = vmatpush.msra.mxu0 %v1507
        %1615 = vmatpush.msra.mxu0 %v1503
        %1616 = vmatpush.msra.mxu0 %v1499
        %1617 = vmatpush.msra.mxu0 %v1495
        %1618 = vmatpush.msra.mxu0 %v1491
        %1619 = vmatpush.msra.mxu0 %v1487
        %1620 = vmatpush.msra.mxu0 %v1483
        %1621 = vmatpush.msra.mxu0 %v1479
        %1622 = vmatpush.msra.mxu0 %v1475
        %1623 = vmatpush.msra.mxu0 %v1471
        %1624 = vmatpush.msra.mxu0 %v1467
        %1625 = vmatpush.msra.mxu0 %v1463
        %1626 = vmatpush.msra.mxu0 %v1459
        %1627 = vmatpush.msra.mxu0 %v1455
        %1628 = vmatpush.msra.mxu0 %v1451
        %1629 = vmatpush.msra.mxu0 %v1447
        %1630 = vmatmul.f32.gmra.mxu0 %v1445
        %v1631 = vpop.f32.mrf.mxu0
        %v1632 = vadd.f32 %v779, %v1631
        %1633 = vdwg.mxu0
        %1634 = vmatpush.msra.mxu0 %v1571
        %1635 = vmatpush.msra.mxu0 %v1567
        %1636 = vmatpush.msra.mxu0 %v1563
        %1637 = vmatpush.msra.mxu0 %v1559
        %1638 = vmatpush.msra.mxu0 %v1555
        %1639 = vmatpush.msra.mxu0 %v1551
        %1640 = vmatpush.msra.mxu0 %v1547
        %1641 = vmatpush.msra.mxu0 %v1543
        %1642 = vmatpush.msra.mxu0 %v1539
        %1643 = vmatpush.msra.mxu0 %v1535
        %1644 = vmatpush.msra.mxu0 %v1531
        %1645 = vmatpush.msra.mxu0 %v1527
        %1646 = vmatpush.msra.mxu0 %v1523
        %1647 = vmatpush.msra.mxu0 %v1519
        %1648 = vmatpush.msra.mxu0 %v1515
        %1649 = vmatpush.msra.mxu0 %v1511
        %1650 = vmatmul.f32.gmra.mxu0 %v1271
        %v1651 = vpop.f32.mrf.mxu0
        %v1652 = vadd.f32 %v1632, %v1651
        %1653 = vdwg.mxu0
        %1654 = vmatpush.msra.mxu0 %v1508
        %1655 = vmatpush.msra.mxu0 %v1504
        %1656 = vmatpush.msra.mxu0 %v1500
        %1657 = vmatpush.msra.mxu0 %v1496
        %1658 = vmatpush.msra.mxu0 %v1492
        %1659 = vmatpush.msra.mxu0 %v1488
        %1660 = vmatpush.msra.mxu0 %v1484
        %1661 = vmatpush.msra.mxu0 %v1480
        %1662 = vmatpush.msra.mxu0 %v1476
        %1663 = vmatpush.msra.mxu0 %v1472
        %1664 = vmatpush.msra.mxu0 %v1468
        %1665 = vmatpush.msra.mxu0 %v1464
        %1666 = vmatpush.msra.mxu0 %v1460
        %1667 = vmatpush.msra.mxu0 %v1456
        %1668 = vmatpush.msra.mxu0 %v1452
        %1669 = vmatpush.msra.mxu0 %v1448
        %1670 = vmatmul.f32.gmra.mxu0 %v1445
        %v1671 = vpop.f32.mrf.mxu0
        %v1672 = vadd.f32 %v780, %v1671
        %1673 = vdwg.mxu0
        %1674 = vmatpush.msra.mxu0 %v1572
        %1675 = vmatpush.msra.mxu0 %v1568
        %1676 = vmatpush.msra.mxu0 %v1564
        %1677 = vmatpush.msra.mxu0 %v1560
        %1678 = vmatpush.msra.mxu0 %v1556
        %1679 = vmatpush.msra.mxu0 %v1552
        %1680 = vmatpush.msra.mxu0 %v1548
        %1681 = vmatpush.msra.mxu0 %v1544
        %1682 = vmatpush.msra.mxu0 %v1540
        %1683 = vmatpush.msra.mxu0 %v1536
        %1684 = vmatpush.msra.mxu0 %v1532
        %1685 = vmatpush.msra.mxu0 %v1528
        %1686 = vmatpush.msra.mxu0 %v1524
        %1687 = vmatpush.msra.mxu0 %v1520
        %1688 = vmatpush.msra.mxu0 %v1516
        %1689 = vmatpush.msra.mxu0 %v1512
        %1690 = vmatmul.f32.gmra.mxu0 %v1271
        %v1691 = vpop.f32.mrf.mxu0
        %v1692 = vadd.f32 %v1672, %v1691
        %1693 = vdwg.mxu0
        %1694 = vmatpush.msra.mxu0 %v1509
        %1695 = vmatpush.msra.mxu0 %v1505
        %1696 = vmatpush.msra.mxu0 %v1501
        %1697 = vmatpush.msra.mxu0 %v1497
        %1698 = vmatpush.msra.mxu0 %v1493
        %1699 = vmatpush.msra.mxu0 %v1489
        %1700 = vmatpush.msra.mxu0 %v1485
        %1701 = vmatpush.msra.mxu0 %v1481
        %1702 = vmatpush.msra.mxu0 %v1477
        %1703 = vmatpush.msra.mxu0 %v1473
        %1704 = vmatpush.msra.mxu0 %v1469
        %1705 = vmatpush.msra.mxu0 %v1465
        %1706 = vmatpush.msra.mxu0 %v1461
        %1707 = vmatpush.msra.mxu0 %v1457
        %1708 = vmatpush.msra.mxu0 %v1453
        %1709 = vmatpush.msra.mxu0 %v1449
        %1710 = vmatmul.f32.gmra.mxu0 %v1445
        %v1711 = vpop.f32.mrf.mxu0
        %v1712 = vadd.f32 %v781, %v1711
        %1713 = vdwg.mxu0
        %1714 = vmatpush.msra.mxu0 %v1573
        %1715 = vmatpush.msra.mxu0 %v1569
        %1716 = vmatpush.msra.mxu0 %v1565
        %1717 = vmatpush.msra.mxu0 %v1561
        %1718 = vmatpush.msra.mxu0 %v1557
        %1719 = vmatpush.msra.mxu0 %v1553
        %1720 = vmatpush.msra.mxu0 %v1549
        %1721 = vmatpush.msra.mxu0 %v1545
        %1722 = vmatpush.msra.mxu0 %v1541
        %1723 = vmatpush.msra.mxu0 %v1537
        %1724 = vmatpush.msra.mxu0 %v1533
        %1725 = vmatpush.msra.mxu0 %v1529
        %1726 = vmatpush.msra.mxu0 %v1525
        %1727 = vmatpush.msra.mxu0 %v1521
        %1728 = vmatpush.msra.mxu0 %v1517
        %1729 = vmatpush.msra.mxu0 %v1513
        %1730 = vmatmul.f32.gmra.mxu0 %v1271
        %v1731 = vpop.f32.mrf.mxu0
        %v1732 = vadd.f32 %v1712, %v1731
        %1733 = vdwg.mxu0
        %v1734 = vmul.f32 %v1612, 0.5
        %v1735 = vtanh.pop %v1734
        %v1736 = vmul.f32 %v1735, 0.5
        %v1737 = vadd.f32 %v1736, 0.5
        %v1738 = vmul.f32 %v1652, 0.5
        %v1739 = vtanh.pop %v1738
        %v1740 = vmul.f32 %v1739, 0.5
        %v1741 = vadd.f32 %v1740, 0.5
        %v1742 = vtanh.pop %v1692
        %v1743 = vmul.f32 %v1732, 0.5
        %v1744 = vtanh.pop %v1743
        %v1745 = vmul.f32 %v1744, 0.5
        %v1746 = vadd.f32 %v1745, 0.5
        %v1747 = vmul.f32 %v1741, %v1269
        %v1748 = vmul.f32 %v1737, %v1742
        %v1749 = vadd.f32 %v1747, %v1748
        %v1750 = vtanh.pop %v1749
        %v1751 = vmul.f32 %v1746, %v1750
        %s1752 = scalar_lea.vmem [#allocation3], 8
        %1753 = vst [vmem:[%s1752] sm:$0xff] %v1751
        %s1754 = smul.u32 2, 4
        %s1755 = smul.addr %s1754, 8
        %s1756 = scalar_lea.vmem [#allocation2], %s1755
        %v1757 = vld [vmem:[%s1756] sm:$0xff]
        %v1758 = vld [vmem:[%s1756 + $0x8] sm:$0xff]
        %v1759 = vld [vmem:[%s1756 + $0x10] sm:$0xff]
        %v1760 = vld [vmem:[%s1756 + $0x18] sm:$0xff]
        %v1761 = vld [vmem:[#allocation12 + $0x200] sm:$0xff]
        %v1762 = vld [vmem:[#allocation12 + $0x208] sm:$0xff]
        %v1763 = vld [vmem:[#allocation12 + $0x210] sm:$0xff]
        %v1764 = vld [vmem:[#allocation12 + $0x218] sm:$0xff]
        %v1765 = vld [vmem:[#allocation12 + $0x220] sm:$0xff]
        %v1766 = vld [vmem:[#allocation12 + $0x228] sm:$0xff]
        %v1767 = vld [vmem:[#allocation12 + $0x230] sm:$0xff]
        %v1768 = vld [vmem:[#allocation12 + $0x238] sm:$0xff]
        %v1769 = vld [vmem:[#allocation12 + $0x240] sm:$0xff]
        %v1770 = vld [vmem:[#allocation12 + $0x248] sm:$0xff]
        %v1771 = vld [vmem:[#allocation12 + $0x250] sm:$0xff]
        %v1772 = vld [vmem:[#allocation12 + $0x258] sm:$0xff]
        %v1773 = vld [vmem:[#allocation12 + $0x260] sm:$0xff]
        %v1774 = vld [vmem:[#allocation12 + $0x268] sm:$0xff]
        %v1775 = vld [vmem:[#allocation12 + $0x270] sm:$0xff]
        %v1776 = vld [vmem:[#allocation12 + $0x278] sm:$0xff]
        %v1777 = vld [vmem:[#allocation12 + $0x280] sm:$0xff]
        %v1778 = vld [vmem:[#allocation12 + $0x288] sm:$0xff]
        %v1779 = vld [vmem:[#allocation12 + $0x290] sm:$0xff]
        %v1780 = vld [vmem:[#allocation12 + $0x298] sm:$0xff]
        %v1781 = vld [vmem:[#allocation12 + $0x2a0] sm:$0xff]
        %v1782 = vld [vmem:[#allocation12 + $0x2a8] sm:$0xff]
        %v1783 = vld [vmem:[#allocation12 + $0x2b0] sm:$0xff]
        %v1784 = vld [vmem:[#allocation12 + $0x2b8] sm:$0xff]
        %v1785 = vld [vmem:[#allocation12 + $0x2c0] sm:$0xff]
        %v1786 = vld [vmem:[#allocation12 + $0x2c8] sm:$0xff]
        %v1787 = vld [vmem:[#allocation12 + $0x2d0] sm:$0xff]
        %v1788 = vld [vmem:[#allocation12 + $0x2d8] sm:$0xff]
        %v1789 = vld [vmem:[#allocation12 + $0x2e0] sm:$0xff]
        %v1790 = vld [vmem:[#allocation12 + $0x2e8] sm:$0xff]
        %v1791 = vld [vmem:[#allocation12 + $0x2f0] sm:$0xff]
        %v1792 = vld [vmem:[#allocation12 + $0x2f8] sm:$0xff]
        %v1793 = vld [vmem:[#allocation12 + $0x300] sm:$0xff]
        %v1794 = vld [vmem:[#allocation12 + $0x308] sm:$0xff]
        %v1795 = vld [vmem:[#allocation12 + $0x310] sm:$0xff]
        %v1796 = vld [vmem:[#allocation12 + $0x318] sm:$0xff]
        %v1797 = vld [vmem:[#allocation12 + $0x320] sm:$0xff]
        %v1798 = vld [vmem:[#allocation12 + $0x328] sm:$0xff]
        %v1799 = vld [vmem:[#allocation12 + $0x330] sm:$0xff]
        %v1800 = vld [vmem:[#allocation12 + $0x338] sm:$0xff]
        %v1801 = vld [vmem:[#allocation12 + $0x340] sm:$0xff]
        %v1802 = vld [vmem:[#allocation12 + $0x348] sm:$0xff]
        %v1803 = vld [vmem:[#allocation12 + $0x350] sm:$0xff]
        %v1804 = vld [vmem:[#allocation12 + $0x358] sm:$0xff]
        %v1805 = vld [vmem:[#allocation12 + $0x360] sm:$0xff]
        %v1806 = vld [vmem:[#allocation12 + $0x368] sm:$0xff]
        %v1807 = vld [vmem:[#allocation12 + $0x370] sm:$0xff]
        %v1808 = vld [vmem:[#allocation12 + $0x378] sm:$0xff]
        %v1809 = vld [vmem:[#allocation12 + $0x380] sm:$0xff]
        %v1810 = vld [vmem:[#allocation12 + $0x388] sm:$0xff]
        %v1811 = vld [vmem:[#allocation12 + $0x390] sm:$0xff]
        %v1812 = vld [vmem:[#allocation12 + $0x398] sm:$0xff]
        %v1813 = vld [vmem:[#allocation12 + $0x3a0] sm:$0xff]
        %v1814 = vld [vmem:[#allocation12 + $0x3a8] sm:$0xff]
        %v1815 = vld [vmem:[#allocation12 + $0x3b0] sm:$0xff]
        %v1816 = vld [vmem:[#allocation12 + $0x3b8] sm:$0xff]
        %v1817 = vld [vmem:[#allocation12 + $0x3c0] sm:$0xff]
        %v1818 = vld [vmem:[#allocation12 + $0x3c8] sm:$0xff]
        %v1819 = vld [vmem:[#allocation12 + $0x3d0] sm:$0xff]
        %v1820 = vld [vmem:[#allocation12 + $0x3d8] sm:$0xff]
        %v1821 = vld [vmem:[#allocation12 + $0x3e0] sm:$0xff]
        %v1822 = vld [vmem:[#allocation12 + $0x3e8] sm:$0xff]
        %v1823 = vld [vmem:[#allocation12 + $0x3f0] sm:$0xff]
        %v1824 = vld [vmem:[#allocation12 + $0x3f8] sm:$0xff]
        %1825 = vmatpush.msra.mxu0 %v1821
        %1826 = vmatpush.msra.mxu0 %v1817
        %1827 = vmatpush.msra.mxu0 %v1813
        %1828 = vmatpush.msra.mxu0 %v1809
        %1829 = vmatpush.msra.mxu0 %v1805
        %1830 = vmatpush.msra.mxu0 %v1801
        %1831 = vmatpush.msra.mxu0 %v1797
        %1832 = vmatpush.msra.mxu0 %v1793
        %1833 = vmatpush.msra.mxu0 %v1789
        %1834 = vmatpush.msra.mxu0 %v1785
        %1835 = vmatpush.msra.mxu0 %v1781
        %1836 = vmatpush.msra.mxu0 %v1777
        %1837 = vmatpush.msra.mxu0 %v1773
        %1838 = vmatpush.msra.mxu0 %v1769
        %1839 = vmatpush.msra.mxu0 %v1765
        %1840 = vmatpush.msra.mxu0 %v1761
        %1841 = vmatmul.f32.gmra.mxu0 %v1445
        %v1842 = vpop.f32.mrf.mxu0
        %v1843 = vadd.f32 0.0, %v1842
        %1844 = vdwg.mxu0
        %1845 = vmatpush.msra.mxu0 %v1822
        %1846 = vmatpush.msra.mxu0 %v1818
        %1847 = vmatpush.msra.mxu0 %v1814
        %1848 = vmatpush.msra.mxu0 %v1810
        %1849 = vmatpush.msra.mxu0 %v1806
        %1850 = vmatpush.msra.mxu0 %v1802
        %1851 = vmatpush.msra.mxu0 %v1798
        %1852 = vmatpush.msra.mxu0 %v1794
        %1853 = vmatpush.msra.mxu0 %v1790
        %1854 = vmatpush.msra.mxu0 %v1786
        %1855 = vmatpush.msra.mxu0 %v1782
        %1856 = vmatpush.msra.mxu0 %v1778
        %1857 = vmatpush.msra.mxu0 %v1774
        %1858 = vmatpush.msra.mxu0 %v1770
        %1859 = vmatpush.msra.mxu0 %v1766
        %1860 = vmatpush.msra.mxu0 %v1762
        %1861 = vmatmul.f32.gmra.mxu0 %v1445
        %v1862 = vpop.f32.mrf.mxu0
        %v1863 = vadd.f32 0.0, %v1862
        %1864 = vdwg.mxu0
        %1865 = vmatpush.msra.mxu0 %v1823
        %1866 = vmatpush.msra.mxu0 %v1819
        %1867 = vmatpush.msra.mxu0 %v1815
        %1868 = vmatpush.msra.mxu0 %v1811
        %1869 = vmatpush.msra.mxu0 %v1807
        %1870 = vmatpush.msra.mxu0 %v1803
        %1871 = vmatpush.msra.mxu0 %v1799
        %1872 = vmatpush.msra.mxu0 %v1795
        %1873 = vmatpush.msra.mxu0 %v1791
        %1874 = vmatpush.msra.mxu0 %v1787
        %1875 = vmatpush.msra.mxu0 %v1783
        %1876 = vmatpush.msra.mxu0 %v1779
        %1877 = vmatpush.msra.mxu0 %v1775
        %1878 = vmatpush.msra.mxu0 %v1771
        %1879 = vmatpush.msra.mxu0 %v1767
        %1880 = vmatpush.msra.mxu0 %v1763
        %1881 = vmatmul.f32.gmra.mxu0 %v1445
        %v1882 = vpop.f32.mrf.mxu0
        %v1883 = vadd.f32 0.0, %v1882
        %1884 = vdwg.mxu0
        %1885 = vmatpush.msra.mxu0 %v1824
        %1886 = vmatpush.msra.mxu0 %v1820
        %1887 = vmatpush.msra.mxu0 %v1816
        %1888 = vmatpush.msra.mxu0 %v1812
        %1889 = vmatpush.msra.mxu0 %v1808
        %1890 = vmatpush.msra.mxu0 %v1804
        %1891 = vmatpush.msra.mxu0 %v1800
        %1892 = vmatpush.msra.mxu0 %v1796
        %1893 = vmatpush.msra.mxu0 %v1792
        %1894 = vmatpush.msra.mxu0 %v1788
        %1895 = vmatpush.msra.mxu0 %v1784
        %1896 = vmatpush.msra.mxu0 %v1780
        %1897 = vmatpush.msra.mxu0 %v1776
        %1898 = vmatpush.msra.mxu0 %v1772
        %1899 = vmatpush.msra.mxu0 %v1768
        %1900 = vmatpush.msra.mxu0 %v1764
        %1901 = vmatmul.f32.gmra.mxu0 %v1445
        %v1902 = vpop.f32.mrf.mxu0
        %v1903 = vadd.f32 0.0, %v1902
        %1904 = vdwg.mxu0
        %v1905 = vadd.f32 %v1757, %v1843
        %v1906 = vadd.f32 %v1758, %v1863
        %v1907 = vadd.f32 %v1759, %v1883
        %v1908 = vadd.f32 %v1760, %v1903
        %v1909 = vmul.f32 %v1905, 0.5
        %v1910 = vtanh.pop %v1909
        %v1911 = vmul.f32 %v1910, 0.5
        %v1912 = vadd.f32 %v1911, 0.5
        %v1913 = vmul.f32 %v1906, 0.5
        %v1914 = vtanh.pop %v1913
        %v1915 = vmul.f32 %v1914, 0.5
        %v1916 = vadd.f32 %v1915, 0.5
        %v1917 = vtanh.pop %v1907
        %v1918 = vmul.f32 %v1908, 0.5
        %v1919 = vtanh.pop %v1918
        %v1920 = vmul.f32 %v1919, 0.5
        %v1921 = vadd.f32 %v1920, 0.5
        %v1922 = vmul.f32 %v1916, %v1443
        %v1923 = vmul.f32 %v1912, %v1917
        %v1924 = vadd.f32 %v1922, %v1923
        %v1925 = vtanh.pop %v1924
        %v1926 = vmul.f32 %v1921, %v1925
        %v1927 = vld [vmem:[%s965] sm:$0xff]
        %v1928 = vld [vmem:[%s965 + $0x8] sm:$0xff]
        %v1929 = vld [vmem:[%s965 + $0x10] sm:$0xff]
        %v1930 = vld [vmem:[%s965 + $0x18] sm:$0xff]
        %v1931 = vld [vmem:[%s965 + $0x20] sm:$0xff]
        %v1932 = vld [vmem:[%s965 + $0x28] sm:$0xff]
        %v1933 = vld [vmem:[%s965 + $0x30] sm:$0xff]
        %v1934 = vld [vmem:[%s965 + $0x38] sm:$0xff]
        %v1935 = vld [vmem:[%s965 + $0x40] sm:$0xff]
        %v1936 = vld [vmem:[%s965 + $0x48] sm:$0xff]
        %v1937 = vld [vmem:[%s965 + $0x50] sm:$0xff]
        %v1938 = vld [vmem:[%s965 + $0x58] sm:$0xff]
        %v1939 = vld [vmem:[%s965 + $0x60] sm:$0xff]
        %v1940 = vld [vmem:[%s965 + $0x68] sm:$0xff]
        %v1941 = vld [vmem:[%s965 + $0x70] sm:$0xff]
        %v1942 = vld [vmem:[%s965 + $0x78] sm:$0xff]
        %v1943 = vld [vmem:[%s965 + $0x80] sm:$0xff]
        %v1944 = vld [vmem:[%s965 + $0x88] sm:$0xff]
        %v1945 = vld [vmem:[%s965 + $0x90] sm:$0xff]
        %v1946 = vld [vmem:[%s965 + $0x98] sm:$0xff]
        %v1947 = vld [vmem:[%s965 + $0xa0] sm:$0xff]
        %v1948 = vld [vmem:[%s965 + $0xa8] sm:$0xff]
        %v1949 = vld [vmem:[%s965 + $0xb0] sm:$0xff]
        %v1950 = vld [vmem:[%s965 + $0xb8] sm:$0xff]
        %v1951 = vld [vmem:[%s965 + $0xc0] sm:$0xff]
        %v1952 = vld [vmem:[%s965 + $0xc8] sm:$0xff]
        %v1953 = vld [vmem:[%s965 + $0xd0] sm:$0xff]
        %v1954 = vld [vmem:[%s965 + $0xd8] sm:$0xff]
        %v1955 = vld [vmem:[%s965 + $0xe0] sm:$0xff]
        %v1956 = vld [vmem:[%s965 + $0xe8] sm:$0xff]
        %v1957 = vld [vmem:[%s965 + $0xf0] sm:$0xff]
        %v1958 = vld [vmem:[%s965 + $0xf8] sm:$0xff]
        %v1959 = vld [vmem:[%s965 + $0x100] sm:$0xff]
        %v1960 = vld [vmem:[%s965 + $0x108] sm:$0xff]
        %v1961 = vld [vmem:[%s965 + $0x110] sm:$0xff]
        %v1962 = vld [vmem:[%s965 + $0x118] sm:$0xff]
        %v1963 = vld [vmem:[%s965 + $0x120] sm:$0xff]
        %v1964 = vld [vmem:[%s965 + $0x128] sm:$0xff]
        %v1965 = vld [vmem:[%s965 + $0x130] sm:$0xff]
        %v1966 = vld [vmem:[%s965 + $0x138] sm:$0xff]
        %v1967 = vld [vmem:[%s965 + $0x140] sm:$0xff]
        %v1968 = vld [vmem:[%s965 + $0x148] sm:$0xff]
        %v1969 = vld [vmem:[%s965 + $0x150] sm:$0xff]
        %v1970 = vld [vmem:[%s965 + $0x158] sm:$0xff]
        %v1971 = vld [vmem:[%s965 + $0x160] sm:$0xff]
        %v1972 = vld [vmem:[%s965 + $0x168] sm:$0xff]
        %v1973 = vld [vmem:[%s965 + $0x170] sm:$0xff]
        %v1974 = vld [vmem:[%s965 + $0x178] sm:$0xff]
        %v1975 = vld [vmem:[%s965 + $0x180] sm:$0xff]
        %v1976 = vld [vmem:[%s965 + $0x188] sm:$0xff]
        %v1977 = vld [vmem:[%s965 + $0x190] sm:$0xff]
        %v1978 = vld [vmem:[%s965 + $0x198] sm:$0xff]
        %v1979 = vld [vmem:[%s965 + $0x1a0] sm:$0xff]
        %v1980 = vld [vmem:[%s965 + $0x1a8] sm:$0xff]
        %v1981 = vld [vmem:[%s965 + $0x1b0] sm:$0xff]
        %v1982 = vld [vmem:[%s965 + $0x1b8] sm:$0xff]
        %v1983 = vld [vmem:[%s965 + $0x1c0] sm:$0xff]
        %v1984 = vld [vmem:[%s965 + $0x1c8] sm:$0xff]
        %v1985 = vld [vmem:[%s965 + $0x1d0] sm:$0xff]
        %v1986 = vld [vmem:[%s965 + $0x1d8] sm:$0xff]
        %v1987 = vld [vmem:[%s965 + $0x1e0] sm:$0xff]
        %v1988 = vld [vmem:[%s965 + $0x1e8] sm:$0xff]
        %v1989 = vld [vmem:[%s965 + $0x1f0] sm:$0xff]
        %v1990 = vld [vmem:[%s965 + $0x1f8] sm:$0xff]
        %v1991 = vld [vmem:[%s965 + $0x200] sm:$0xff]
        %v1992 = vld [vmem:[%s965 + $0x208] sm:$0xff]
        %v1993 = vld [vmem:[%s965 + $0x210] sm:$0xff]
        %v1994 = vld [vmem:[%s965 + $0x218] sm:$0xff]
        %v1995 = vld [vmem:[%s965 + $0x220] sm:$0xff]
        %v1996 = vld [vmem:[%s965 + $0x228] sm:$0xff]
        %v1997 = vld [vmem:[%s965 + $0x230] sm:$0xff]
        %v1998 = vld [vmem:[%s965 + $0x238] sm:$0xff]
        %v1999 = vld [vmem:[%s965 + $0x240] sm:$0xff]
        %v2000 = vld [vmem:[%s965 + $0x248] sm:$0xff]
        %v2001 = vld [vmem:[%s965 + $0x250] sm:$0xff]
        %v2002 = vld [vmem:[%s965 + $0x258] sm:$0xff]
        %v2003 = vld [vmem:[%s965 + $0x260] sm:$0xff]
        %v2004 = vld [vmem:[%s965 + $0x268] sm:$0xff]
        %v2005 = vld [vmem:[%s965 + $0x270] sm:$0xff]
        %v2006 = vld [vmem:[%s965 + $0x278] sm:$0xff]
        %v2007 = vld [vmem:[%s965 + $0x280] sm:$0xff]
        %v2008 = vld [vmem:[%s965 + $0x288] sm:$0xff]
        %v2009 = vld [vmem:[%s965 + $0x290] sm:$0xff]
        %v2010 = vld [vmem:[%s965 + $0x298] sm:$0xff]
        %v2011 = vld [vmem:[%s965 + $0x2a0] sm:$0xff]
        %v2012 = vld [vmem:[%s965 + $0x2a8] sm:$0xff]
        %v2013 = vld [vmem:[%s965 + $0x2b0] sm:$0xff]
        %v2014 = vld [vmem:[%s965 + $0x2b8] sm:$0xff]
        %v2015 = vld [vmem:[%s965 + $0x2c0] sm:$0xff]
        %v2016 = vld [vmem:[%s965 + $0x2c8] sm:$0xff]
        %v2017 = vld [vmem:[%s965 + $0x2d0] sm:$0xff]
        %v2018 = vld [vmem:[%s965 + $0x2d8] sm:$0xff]
        %v2019 = vld [vmem:[%s965 + $0x2e0] sm:$0xff]
        %v2020 = vld [vmem:[%s965 + $0x2e8] sm:$0xff]
        %v2021 = vld [vmem:[%s965 + $0x2f0] sm:$0xff]
        %v2022 = vld [vmem:[%s965 + $0x2f8] sm:$0xff]
        %v2023 = vld [vmem:[%s965 + $0x300] sm:$0xff]
        %v2024 = vld [vmem:[%s965 + $0x308] sm:$0xff]
        %v2025 = vld [vmem:[%s965 + $0x310] sm:$0xff]
        %v2026 = vld [vmem:[%s965 + $0x318] sm:$0xff]
        %v2027 = vld [vmem:[%s965 + $0x320] sm:$0xff]
        %v2028 = vld [vmem:[%s965 + $0x328] sm:$0xff]
        %v2029 = vld [vmem:[%s965 + $0x330] sm:$0xff]
        %v2030 = vld [vmem:[%s965 + $0x338] sm:$0xff]
        %v2031 = vld [vmem:[%s965 + $0x340] sm:$0xff]
        %v2032 = vld [vmem:[%s965 + $0x348] sm:$0xff]
        %v2033 = vld [vmem:[%s965 + $0x350] sm:$0xff]
        %v2034 = vld [vmem:[%s965 + $0x358] sm:$0xff]
        %v2035 = vld [vmem:[%s965 + $0x360] sm:$0xff]
        %v2036 = vld [vmem:[%s965 + $0x368] sm:$0xff]
        %v2037 = vld [vmem:[%s965 + $0x370] sm:$0xff]
        %v2038 = vld [vmem:[%s965 + $0x378] sm:$0xff]
        %v2039 = vld [vmem:[%s965 + $0x380] sm:$0xff]
        %v2040 = vld [vmem:[%s965 + $0x388] sm:$0xff]
        %v2041 = vld [vmem:[%s965 + $0x390] sm:$0xff]
        %v2042 = vld [vmem:[%s965 + $0x398] sm:$0xff]
        %v2043 = vld [vmem:[%s965 + $0x3a0] sm:$0xff]
        %v2044 = vld [vmem:[%s965 + $0x3a8] sm:$0xff]
        %v2045 = vld [vmem:[%s965 + $0x3b0] sm:$0xff]
        %v2046 = vld [vmem:[%s965 + $0x3b8] sm:$0xff]
        %v2047 = vld [vmem:[%s965 + $0x3c0] sm:$0xff]
        %v2048 = vld [vmem:[%s965 + $0x3c8] sm:$0xff]
        %v2049 = vld [vmem:[%s965 + $0x3d0] sm:$0xff]
        %v2050 = vld [vmem:[%s965 + $0x3d8] sm:$0xff]
        %v2051 = vld [vmem:[%s965 + $0x3e0] sm:$0xff]
        %v2052 = vld [vmem:[%s965 + $0x3e8] sm:$0xff]
        %v2053 = vld [vmem:[%s965 + $0x3f0] sm:$0xff]
        %v2054 = vld [vmem:[%s965 + $0x3f8] sm:$0xff]
        %2055 = vmatpush.msra.mxu0 %v1987
        %2056 = vmatpush.msra.mxu0 %v1983
        %2057 = vmatpush.msra.mxu0 %v1979
        %2058 = vmatpush.msra.mxu0 %v1975
        %2059 = vmatpush.msra.mxu0 %v1971
        %2060 = vmatpush.msra.mxu0 %v1967
        %2061 = vmatpush.msra.mxu0 %v1963
        %2062 = vmatpush.msra.mxu0 %v1959
        %2063 = vmatpush.msra.mxu0 %v1955
        %2064 = vmatpush.msra.mxu0 %v1951
        %2065 = vmatpush.msra.mxu0 %v1947
        %2066 = vmatpush.msra.mxu0 %v1943
        %2067 = vmatpush.msra.mxu0 %v1939
        %2068 = vmatpush.msra.mxu0 %v1935
        %2069 = vmatpush.msra.mxu0 %v1931
        %2070 = vmatpush.msra.mxu0 %v1927
        %2071 = vmatmul.f32.gmra.mxu0 %v1926
        %v2072 = vpop.f32.mrf.mxu0
        %v2073 = vadd.f32 %v778, %v2072
        %2074 = vdwg.mxu0
        %2075 = vmatpush.msra.mxu0 %v2051
        %2076 = vmatpush.msra.mxu0 %v2047
        %2077 = vmatpush.msra.mxu0 %v2043
        %2078 = vmatpush.msra.mxu0 %v2039
        %2079 = vmatpush.msra.mxu0 %v2035
        %2080 = vmatpush.msra.mxu0 %v2031
        %2081 = vmatpush.msra.mxu0 %v2027
        %2082 = vmatpush.msra.mxu0 %v2023
        %2083 = vmatpush.msra.mxu0 %v2019
        %2084 = vmatpush.msra.mxu0 %v2015
        %2085 = vmatpush.msra.mxu0 %v2011
        %2086 = vmatpush.msra.mxu0 %v2007
        %2087 = vmatpush.msra.mxu0 %v2003
        %2088 = vmatpush.msra.mxu0 %v1999
        %2089 = vmatpush.msra.mxu0 %v1995
        %2090 = vmatpush.msra.mxu0 %v1991
        %2091 = vmatmul.f32.gmra.mxu0 %v1751
        %v2092 = vpop.f32.mrf.mxu0
        %v2093 = vadd.f32 %v2073, %v2092
        %2094 = vdwg.mxu0
        %2095 = vmatpush.msra.mxu0 %v1988
        %2096 = vmatpush.msra.mxu0 %v1984
        %2097 = vmatpush.msra.mxu0 %v1980
        %2098 = vmatpush.msra.mxu0 %v1976
        %2099 = vmatpush.msra.mxu0 %v1972
        %2100 = vmatpush.msra.mxu0 %v1968
        %2101 = vmatpush.msra.mxu0 %v1964
        %2102 = vmatpush.msra.mxu0 %v1960
        %2103 = vmatpush.msra.mxu0 %v1956
        %2104 = vmatpush.msra.mxu0 %v1952
        %2105 = vmatpush.msra.mxu0 %v1948
        %2106 = vmatpush.msra.mxu0 %v1944
        %2107 = vmatpush.msra.mxu0 %v1940
        %2108 = vmatpush.msra.mxu0 %v1936
        %2109 = vmatpush.msra.mxu0 %v1932
        %2110 = vmatpush.msra.mxu0 %v1928
        %2111 = vmatmul.f32.gmra.mxu0 %v1926
        %v2112 = vpop.f32.mrf.mxu0
        %v2113 = vadd.f32 %v779, %v2112
        %2114 = vdwg.mxu0
        %2115 = vmatpush.msra.mxu0 %v2052
        %2116 = vmatpush.msra.mxu0 %v2048
        %2117 = vmatpush.msra.mxu0 %v2044
        %2118 = vmatpush.msra.mxu0 %v2040
        %2119 = vmatpush.msra.mxu0 %v2036
        %2120 = vmatpush.msra.mxu0 %v2032
        %2121 = vmatpush.msra.mxu0 %v2028
        %2122 = vmatpush.msra.mxu0 %v2024
        %2123 = vmatpush.msra.mxu0 %v2020
        %2124 = vmatpush.msra.mxu0 %v2016
        %2125 = vmatpush.msra.mxu0 %v2012
        %2126 = vmatpush.msra.mxu0 %v2008
        %2127 = vmatpush.msra.mxu0 %v2004
        %2128 = vmatpush.msra.mxu0 %v2000
        %2129 = vmatpush.msra.mxu0 %v1996
        %2130 = vmatpush.msra.mxu0 %v1992
        %2131 = vmatmul.f32.gmra.mxu0 %v1751
        %v2132 = vpop.f32.mrf.mxu0
        %v2133 = vadd.f32 %v2113, %v2132
        %2134 = vdwg.mxu0
        %2135 = vmatpush.msra.mxu0 %v1989
        %2136 = vmatpush.msra.mxu0 %v1985
        %2137 = vmatpush.msra.mxu0 %v1981
        %2138 = vmatpush.msra.mxu0 %v1977
        %2139 = vmatpush.msra.mxu0 %v1973
        %2140 = vmatpush.msra.mxu0 %v1969
        %2141 = vmatpush.msra.mxu0 %v1965
        %2142 = vmatpush.msra.mxu0 %v1961
        %2143 = vmatpush.msra.mxu0 %v1957
        %2144 = vmatpush.msra.mxu0 %v1953
        %2145 = vmatpush.msra.mxu0 %v1949
        %2146 = vmatpush.msra.mxu0 %v1945
        %2147 = vmatpush.msra.mxu0 %v1941
        %2148 = vmatpush.msra.mxu0 %v1937
        %2149 = vmatpush.msra.mxu0 %v1933
        %2150 = vmatpush.msra.mxu0 %v1929
        %2151 = vmatmul.f32.gmra.mxu0 %v1926
        %v2152 = vpop.f32.mrf.mxu0
        %v2153 = vadd.f32 %v780, %v2152
        %2154 = vdwg.mxu0
        %2155 = vmatpush.msra.mxu0 %v2053
        %2156 = vmatpush.msra.mxu0 %v2049
        %2157 = vmatpush.msra.mxu0 %v2045
        %2158 = vmatpush.msra.mxu0 %v2041
        %2159 = vmatpush.msra.mxu0 %v2037
        %2160 = vmatpush.msra.mxu0 %v2033
        %2161 = vmatpush.msra.mxu0 %v2029
        %2162 = vmatpush.msra.mxu0 %v2025
        %2163 = vmatpush.msra.mxu0 %v2021
        %2164 = vmatpush.msra.mxu0 %v2017
        %2165 = vmatpush.msra.mxu0 %v2013
        %2166 = vmatpush.msra.mxu0 %v2009
        %2167 = vmatpush.msra.mxu0 %v2005
        %2168 = vmatpush.msra.mxu0 %v2001
        %2169 = vmatpush.msra.mxu0 %v1997
        %2170 = vmatpush.msra.mxu0 %v1993
        %2171 = vmatmul.f32.gmra.mxu0 %v1751
        %v2172 = vpop.f32.mrf.mxu0
        %v2173 = vadd.f32 %v2153, %v2172
        %2174 = vdwg.mxu0
        %2175 = vmatpush.msra.mxu0 %v1990
        %2176 = vmatpush.msra.mxu0 %v1986
        %2177 = vmatpush.msra.mxu0 %v1982
        %2178 = vmatpush.msra.mxu0 %v1978
        %2179 = vmatpush.msra.mxu0 %v1974
        %2180 = vmatpush.msra.mxu0 %v1970
        %2181 = vmatpush.msra.mxu0 %v1966
        %2182 = vmatpush.msra.mxu0 %v1962
        %2183 = vmatpush.msra.mxu0 %v1958
        %2184 = vmatpush.msra.mxu0 %v1954
        %2185 = vmatpush.msra.mxu0 %v1950
        %2186 = vmatpush.msra.mxu0 %v1946
        %2187 = vmatpush.msra.mxu0 %v1942
        %2188 = vmatpush.msra.mxu0 %v1938
        %2189 = vmatpush.msra.mxu0 %v1934
        %2190 = vmatpush.msra.mxu0 %v1930
        %2191 = vmatmul.f32.gmra.mxu0 %v1926
        %v2192 = vpop.f32.mrf.mxu0
        %v2193 = vadd.f32 %v781, %v2192
        %2194 = vdwg.mxu0
        %2195 = vmatpush.msra.mxu0 %v2054
        %2196 = vmatpush.msra.mxu0 %v2050
        %2197 = vmatpush.msra.mxu0 %v2046
        %2198 = vmatpush.msra.mxu0 %v2042
        %2199 = vmatpush.msra.mxu0 %v2038
        %2200 = vmatpush.msra.mxu0 %v2034
        %2201 = vmatpush.msra.mxu0 %v2030
        %2202 = vmatpush.msra.mxu0 %v2026
        %2203 = vmatpush.msra.mxu0 %v2022
        %2204 = vmatpush.msra.mxu0 %v2018
        %2205 = vmatpush.msra.mxu0 %v2014
        %2206 = vmatpush.msra.mxu0 %v2010
        %2207 = vmatpush.msra.mxu0 %v2006
        %2208 = vmatpush.msra.mxu0 %v2002
        %2209 = vmatpush.msra.mxu0 %v1998
        %2210 = vmatpush.msra.mxu0 %v1994
        %2211 = vmatmul.f32.gmra.mxu0 %v1751
        %v2212 = vpop.f32.mrf.mxu0
        %v2213 = vadd.f32 %v2193, %v2212
        %2214 = vdwg.mxu0
        %v2215 = vmul.f32 %v2093, 0.5
        %v2216 = vtanh.pop %v2215
        %v2217 = vmul.f32 %v2216, 0.5
        %v2218 = vadd.f32 %v2217, 0.5
        %v2219 = vmul.f32 %v2133, 0.5
        %v2220 = vtanh.pop %v2219
        %v2221 = vmul.f32 %v2220, 0.5
        %v2222 = vadd.f32 %v2221, 0.5
        %v2223 = vtanh.pop %v2173
        %v2224 = vmul.f32 %v2213, 0.5
        %v2225 = vtanh.pop %v2224
        %v2226 = vmul.f32 %v2225, 0.5
        %v2227 = vadd.f32 %v2226, 0.5
        %v2228 = vmul.f32 %v2222, %v1749
        %v2229 = vmul.f32 %v2218, %v2223
        %v2230 = vadd.f32 %v2228, %v2229
        %v2231 = vtanh.pop %v2230
        %v2232 = vmul.f32 %v2227, %v2231
        %s2233 = scalar_lea.vmem [#allocation3], 16
        %2234 = vst [vmem:[%s2233] sm:$0xff] %v2232
        %s2235 = smul.u32 3, 4
        %s2236 = smul.addr %s2235, 8
        %s2237 = scalar_lea.vmem [#allocation2], %s2236
        %v2238 = vld [vmem:[%s2237] sm:$0xff]
        %v2239 = vld [vmem:[%s2237 + $0x8] sm:$0xff]
        %v2240 = vld [vmem:[%s2237 + $0x10] sm:$0xff]
        %v2241 = vld [vmem:[%s2237 + $0x18] sm:$0xff]
        %v2242 = vld [vmem:[#allocation12 + $0x200] sm:$0xff]
        %v2243 = vld [vmem:[#allocation12 + $0x208] sm:$0xff]
        %v2244 = vld [vmem:[#allocation12 + $0x210] sm:$0xff]
        %v2245 = vld [vmem:[#allocation12 + $0x218] sm:$0xff]
        %v2246 = vld [vmem:[#allocation12 + $0x220] sm:$0xff]
        %v2247 = vld [vmem:[#allocation12 + $0x228] sm:$0xff]
        %v2248 = vld [vmem:[#allocation12 + $0x230] sm:$0xff]
        %v2249 = vld [vmem:[#allocation12 + $0x238] sm:$0xff]
        %v2250 = vld [vmem:[#allocation12 + $0x240] sm:$0xff]
        %v2251 = vld [vmem:[#allocation12 + $0x248] sm:$0xff]
        %v2252 = vld [vmem:[#allocation12 + $0x250] sm:$0xff]
        %v2253 = vld [vmem:[#allocation12 + $0x258] sm:$0xff]
        %v2254 = vld [vmem:[#allocation12 + $0x260] sm:$0xff]
        %v2255 = vld [vmem:[#allocation12 + $0x268] sm:$0xff]
        %v2256 = vld [vmem:[#allocation12 + $0x270] sm:$0xff]
        %v2257 = vld [vmem:[#allocation12 + $0x278] sm:$0xff]
        %v2258 = vld [vmem:[#allocation12 + $0x280] sm:$0xff]
        %v2259 = vld [vmem:[#allocation12 + $0x288] sm:$0xff]
        %v2260 = vld [vmem:[#allocation12 + $0x290] sm:$0xff]
        %v2261 = vld [vmem:[#allocation12 + $0x298] sm:$0xff]
        %v2262 = vld [vmem:[#allocation12 + $0x2a0] sm:$0xff]
        %v2263 = vld [vmem:[#allocation12 + $0x2a8] sm:$0xff]
        %v2264 = vld [vmem:[#allocation12 + $0x2b0] sm:$0xff]
        %v2265 = vld [vmem:[#allocation12 + $0x2b8] sm:$0xff]
        %v2266 = vld [vmem:[#allocation12 + $0x2c0] sm:$0xff]
        %v2267 = vld [vmem:[#allocation12 + $0x2c8] sm:$0xff]
        %v2268 = vld [vmem:[#allocation12 + $0x2d0] sm:$0xff]
        %v2269 = vld [vmem:[#allocation12 + $0x2d8] sm:$0xff]
        %v2270 = vld [vmem:[#allocation12 + $0x2e0] sm:$0xff]
        %v2271 = vld [vmem:[#allocation12 + $0x2e8] sm:$0xff]
        %v2272 = vld [vmem:[#allocation12 + $0x2f0] sm:$0xff]
        %v2273 = vld [vmem:[#allocation12 + $0x2f8] sm:$0xff]
        %v2274 = vld [vmem:[#allocation12 + $0x300] sm:$0xff]
        %v2275 = vld [vmem:[#allocation12 + $0x308] sm:$0xff]
        %v2276 = vld [vmem:[#allocation12 + $0x310] sm:$0xff]
        %v2277 = vld [vmem:[#allocation12 + $0x318] sm:$0xff]
        %v2278 = vld [vmem:[#allocation12 + $0x320] sm:$0xff]
        %v2279 = vld [vmem:[#allocation12 + $0x328] sm:$0xff]
        %v2280 = vld [vmem:[#allocation12 + $0x330] sm:$0xff]
        %v2281 = vld [vmem:[#allocation12 + $0x338] sm:$0xff]
        %v2282 = vld [vmem:[#allocation12 + $0x340] sm:$0xff]
        %v2283 = vld [vmem:[#allocation12 + $0x348] sm:$0xff]
        %v2284 = vld [vmem:[#allocation12 + $0x350] sm:$0xff]
        %v2285 = vld [vmem:[#allocation12 + $0x358] sm:$0xff]
        %v2286 = vld [vmem:[#allocation12 + $0x360] sm:$0xff]
        %v2287 = vld [vmem:[#allocation12 + $0x368] sm:$0xff]
        %v2288 = vld [vmem:[#allocation12 + $0x370] sm:$0xff]
        %v2289 = vld [vmem:[#allocation12 + $0x378] sm:$0xff]
        %v2290 = vld [vmem:[#allocation12 + $0x380] sm:$0xff]
        %v2291 = vld [vmem:[#allocation12 + $0x388] sm:$0xff]
        %v2292 = vld [vmem:[#allocation12 + $0x390] sm:$0xff]
        %v2293 = vld [vmem:[#allocation12 + $0x398] sm:$0xff]
        %v2294 = vld [vmem:[#allocation12 + $0x3a0] sm:$0xff]
        %v2295 = vld [vmem:[#allocation12 + $0x3a8] sm:$0xff]
        %v2296 = vld [vmem:[#allocation12 + $0x3b0] sm:$0xff]
        %v2297 = vld [vmem:[#allocation12 + $0x3b8] sm:$0xff]
        %v2298 = vld [vmem:[#allocation12 + $0x3c0] sm:$0xff]
        %v2299 = vld [vmem:[#allocation12 + $0x3c8] sm:$0xff]
        %v2300 = vld [vmem:[#allocation12 + $0x3d0] sm:$0xff]
        %v2301 = vld [vmem:[#allocation12 + $0x3d8] sm:$0xff]
        %v2302 = vld [vmem:[#allocation12 + $0x3e0] sm:$0xff]
        %v2303 = vld [vmem:[#allocation12 + $0x3e8] sm:$0xff]
        %v2304 = vld [vmem:[#allocation12 + $0x3f0] sm:$0xff]
        %v2305 = vld [vmem:[#allocation12 + $0x3f8] sm:$0xff]
        %2306 = vmatpush.msra.mxu0 %v2302
        %2307 = vmatpush.msra.mxu0 %v2298
        %2308 = vmatpush.msra.mxu0 %v2294
        %2309 = vmatpush.msra.mxu0 %v2290
        %2310 = vmatpush.msra.mxu0 %v2286
        %2311 = vmatpush.msra.mxu0 %v2282
        %2312 = vmatpush.msra.mxu0 %v2278
        %2313 = vmatpush.msra.mxu0 %v2274
        %2314 = vmatpush.msra.mxu0 %v2270
        %2315 = vmatpush.msra.mxu0 %v2266
        %2316 = vmatpush.msra.mxu0 %v2262
        %2317 = vmatpush.msra.mxu0 %v2258
        %2318 = vmatpush.msra.mxu0 %v2254
        %2319 = vmatpush.msra.mxu0 %v2250
        %2320 = vmatpush.msra.mxu0 %v2246
        %2321 = vmatpush.msra.mxu0 %v2242
        %2322 = vmatmul.f32.gmra.mxu0 %v1926
        %v2323 = vpop.f32.mrf.mxu0
        %v2324 = vadd.f32 0.0, %v2323
        %2325 = vdwg.mxu0
        %2326 = vmatpush.msra.mxu0 %v2303
        %2327 = vmatpush.msra.mxu0 %v2299
        %2328 = vmatpush.msra.mxu0 %v2295
        %2329 = vmatpush.msra.mxu0 %v2291
        %2330 = vmatpush.msra.mxu0 %v2287
        %2331 = vmatpush.msra.mxu0 %v2283
        %2332 = vmatpush.msra.mxu0 %v2279
        %2333 = vmatpush.msra.mxu0 %v2275
        %2334 = vmatpush.msra.mxu0 %v2271
        %2335 = vmatpush.msra.mxu0 %v2267
        %2336 = vmatpush.msra.mxu0 %v2263
        %2337 = vmatpush.msra.mxu0 %v2259
        %2338 = vmatpush.msra.mxu0 %v2255
        %2339 = vmatpush.msra.mxu0 %v2251
        %2340 = vmatpush.msra.mxu0 %v2247
        %2341 = vmatpush.msra.mxu0 %v2243
        %2342 = vmatmul.f32.gmra.mxu0 %v1926
        %v2343 = vpop.f32.mrf.mxu0
        %v2344 = vadd.f32 0.0, %v2343
        %2345 = vdwg.mxu0
        %2346 = vmatpush.msra.mxu0 %v2304
        %2347 = vmatpush.msra.mxu0 %v2300
        %2348 = vmatpush.msra.mxu0 %v2296
        %2349 = vmatpush.msra.mxu0 %v2292
        %2350 = vmatpush.msra.mxu0 %v2288
        %2351 = vmatpush.msra.mxu0 %v2284
        %2352 = vmatpush.msra.mxu0 %v2280
        %2353 = vmatpush.msra.mxu0 %v2276
        %2354 = vmatpush.msra.mxu0 %v2272
        %2355 = vmatpush.msra.mxu0 %v2268
        %2356 = vmatpush.msra.mxu0 %v2264
        %2357 = vmatpush.msra.mxu0 %v2260
        %2358 = vmatpush.msra.mxu0 %v2256
        %2359 = vmatpush.msra.mxu0 %v2252
        %2360 = vmatpush.msra.mxu0 %v2248
        %2361 = vmatpush.msra.mxu0 %v2244
        %2362 = vmatmul.f32.gmra.mxu0 %v1926
        %v2363 = vpop.f32.mrf.mxu0
        %v2364 = vadd.f32 0.0, %v2363
        %2365 = vdwg.mxu0
        %2366 = vmatpush.msra.mxu0 %v2305
        %2367 = vmatpush.msra.mxu0 %v2301
        %2368 = vmatpush.msra.mxu0 %v2297
        %2369 = vmatpush.msra.mxu0 %v2293
        %2370 = vmatpush.msra.mxu0 %v2289
        %2371 = vmatpush.msra.mxu0 %v2285
        %2372 = vmatpush.msra.mxu0 %v2281
        %2373 = vmatpush.msra.mxu0 %v2277
        %2374 = vmatpush.msra.mxu0 %v2273
        %2375 = vmatpush.msra.mxu0 %v2269
        %2376 = vmatpush.msra.mxu0 %v2265
        %2377 = vmatpush.msra.mxu0 %v2261
        %2378 = vmatpush.msra.mxu0 %v2257
        %2379 = vmatpush.msra.mxu0 %v2253
        %2380 = vmatpush.msra.mxu0 %v2249
        %2381 = vmatpush.msra.mxu0 %v2245
        %2382 = vmatmul.f32.gmra.mxu0 %v1926
        %v2383 = vpop.f32.mrf.mxu0
        %v2384 = vadd.f32 0.0, %v2383
        %2385 = vdwg.mxu0
        %v2386 = vadd.f32 %v2238, %v2324
        %v2387 = vadd.f32 %v2239, %v2344
        %v2388 = vadd.f32 %v2240, %v2364
        %v2389 = vadd.f32 %v2241, %v2384
        %v2390 = vmul.f32 %v2386, 0.5
        %v2391 = vtanh.pop %v2390
        %v2392 = vmul.f32 %v2391, 0.5
        %v2393 = vadd.f32 %v2392, 0.5
        %v2394 = vmul.f32 %v2387, 0.5
        %v2395 = vtanh.pop %v2394
        %v2396 = vmul.f32 %v2395, 0.5
        %v2397 = vadd.f32 %v2396, 0.5
        %v2398 = vtanh.pop %v2388
        %v2399 = vmul.f32 %v2389, 0.5
        %v2400 = vtanh.pop %v2399
        %v2401 = vmul.f32 %v2400, 0.5
        %v2402 = vadd.f32 %v2401, 0.5
        %v2403 = vmul.f32 %v2397, %v1924
        %v2404 = vmul.f32 %v2393, %v2398
        %v2405 = vadd.f32 %v2403, %v2404
        %v2406 = vtanh.pop %v2405
        %v2407 = vmul.f32 %v2402, %v2406
        %v2408 = vld [vmem:[%s965] sm:$0xff]
        %v2409 = vld [vmem:[%s965 + $0x8] sm:$0xff]
        %v2410 = vld [vmem:[%s965 + $0x10] sm:$0xff]
        %v2411 = vld [vmem:[%s965 + $0x18] sm:$0xff]
        %v2412 = vld [vmem:[%s965 + $0x20] sm:$0xff]
        %v2413 = vld [vmem:[%s965 + $0x28] sm:$0xff]
        %v2414 = vld [vmem:[%s965 + $0x30] sm:$0xff]
        %v2415 = vld [vmem:[%s965 + $0x38] sm:$0xff]
        %v2416 = vld [vmem:[%s965 + $0x40] sm:$0xff]
        %v2417 = vld [vmem:[%s965 + $0x48] sm:$0xff]
        %v2418 = vld [vmem:[%s965 + $0x50] sm:$0xff]
        %v2419 = vld [vmem:[%s965 + $0x58] sm:$0xff]
        %v2420 = vld [vmem:[%s965 + $0x60] sm:$0xff]
        %v2421 = vld [vmem:[%s965 + $0x68] sm:$0xff]
        %v2422 = vld [vmem:[%s965 + $0x70] sm:$0xff]
        %v2423 = vld [vmem:[%s965 + $0x78] sm:$0xff]
        %v2424 = vld [vmem:[%s965 + $0x80] sm:$0xff]
        %v2425 = vld [vmem:[%s965 + $0x88] sm:$0xff]
        %v2426 = vld [vmem:[%s965 + $0x90] sm:$0xff]
        %v2427 = vld [vmem:[%s965 + $0x98] sm:$0xff]
        %v2428 = vld [vmem:[%s965 + $0xa0] sm:$0xff]
        %v2429 = vld [vmem:[%s965 + $0xa8] sm:$0xff]
        %v2430 = vld [vmem:[%s965 + $0xb0] sm:$0xff]
        %v2431 = vld [vmem:[%s965 + $0xb8] sm:$0xff]
        %v2432 = vld [vmem:[%s965 + $0xc0] sm:$0xff]
        %v2433 = vld [vmem:[%s965 + $0xc8] sm:$0xff]
        %v2434 = vld [vmem:[%s965 + $0xd0] sm:$0xff]
        %v2435 = vld [vmem:[%s965 + $0xd8] sm:$0xff]
        %v2436 = vld [vmem:[%s965 + $0xe0] sm:$0xff]
        %v2437 = vld [vmem:[%s965 + $0xe8] sm:$0xff]
        %v2438 = vld [vmem:[%s965 + $0xf0] sm:$0xff]
        %v2439 = vld [vmem:[%s965 + $0xf8] sm:$0xff]
        %v2440 = vld [vmem:[%s965 + $0x100] sm:$0xff]
        %v2441 = vld [vmem:[%s965 + $0x108] sm:$0xff]
        %v2442 = vld [vmem:[%s965 + $0x110] sm:$0xff]
        %v2443 = vld [vmem:[%s965 + $0x118] sm:$0xff]
        %v2444 = vld [vmem:[%s965 + $0x120] sm:$0xff]
        %v2445 = vld [vmem:[%s965 + $0x128] sm:$0xff]
        %v2446 = vld [vmem:[%s965 + $0x130] sm:$0xff]
        %v2447 = vld [vmem:[%s965 + $0x138] sm:$0xff]
        %v2448 = vld [vmem:[%s965 + $0x140] sm:$0xff]
        %v2449 = vld [vmem:[%s965 + $0x148] sm:$0xff]
        %v2450 = vld [vmem:[%s965 + $0x150] sm:$0xff]
        %v2451 = vld [vmem:[%s965 + $0x158] sm:$0xff]
        %v2452 = vld [vmem:[%s965 + $0x160] sm:$0xff]
        %v2453 = vld [vmem:[%s965 + $0x168] sm:$0xff]
        %v2454 = vld [vmem:[%s965 + $0x170] sm:$0xff]
        %v2455 = vld [vmem:[%s965 + $0x178] sm:$0xff]
        %v2456 = vld [vmem:[%s965 + $0x180] sm:$0xff]
        %v2457 = vld [vmem:[%s965 + $0x188] sm:$0xff]
        %v2458 = vld [vmem:[%s965 + $0x190] sm:$0xff]
        %v2459 = vld [vmem:[%s965 + $0x198] sm:$0xff]
        %v2460 = vld [vmem:[%s965 + $0x1a0] sm:$0xff]
        %v2461 = vld [vmem:[%s965 + $0x1a8] sm:$0xff]
        %v2462 = vld [vmem:[%s965 + $0x1b0] sm:$0xff]
        %v2463 = vld [vmem:[%s965 + $0x1b8] sm:$0xff]
        %v2464 = vld [vmem:[%s965 + $0x1c0] sm:$0xff]
        %v2465 = vld [vmem:[%s965 + $0x1c8] sm:$0xff]
        %v2466 = vld [vmem:[%s965 + $0x1d0] sm:$0xff]
        %v2467 = vld [vmem:[%s965 + $0x1d8] sm:$0xff]
        %v2468 = vld [vmem:[%s965 + $0x1e0] sm:$0xff]
        %v2469 = vld [vmem:[%s965 + $0x1e8] sm:$0xff]
        %v2470 = vld [vmem:[%s965 + $0x1f0] sm:$0xff]
        %v2471 = vld [vmem:[%s965 + $0x1f8] sm:$0xff]
        %v2472 = vld [vmem:[%s965 + $0x200] sm:$0xff]
        %v2473 = vld [vmem:[%s965 + $0x208] sm:$0xff]
        %v2474 = vld [vmem:[%s965 + $0x210] sm:$0xff]
        %v2475 = vld [vmem:[%s965 + $0x218] sm:$0xff]
        %v2476 = vld [vmem:[%s965 + $0x220] sm:$0xff]
        %v2477 = vld [vmem:[%s965 + $0x228] sm:$0xff]
        %v2478 = vld [vmem:[%s965 + $0x230] sm:$0xff]
        %v2479 = vld [vmem:[%s965 + $0x238] sm:$0xff]
        %v2480 = vld [vmem:[%s965 + $0x240] sm:$0xff]
        %v2481 = vld [vmem:[%s965 + $0x248] sm:$0xff]
        %v2482 = vld [vmem:[%s965 + $0x250] sm:$0xff]
        %v2483 = vld [vmem:[%s965 + $0x258] sm:$0xff]
        %v2484 = vld [vmem:[%s965 + $0x260] sm:$0xff]
        %v2485 = vld [vmem:[%s965 + $0x268] sm:$0xff]
        %v2486 = vld [vmem:[%s965 + $0x270] sm:$0xff]
        %v2487 = vld [vmem:[%s965 + $0x278] sm:$0xff]
        %v2488 = vld [vmem:[%s965 + $0x280] sm:$0xff]
        %v2489 = vld [vmem:[%s965 + $0x288] sm:$0xff]
        %v2490 = vld [vmem:[%s965 + $0x290] sm:$0xff]
        %v2491 = vld [vmem:[%s965 + $0x298] sm:$0xff]
        %v2492 = vld [vmem:[%s965 + $0x2a0] sm:$0xff]
        %v2493 = vld [vmem:[%s965 + $0x2a8] sm:$0xff]
        %v2494 = vld [vmem:[%s965 + $0x2b0] sm:$0xff]
        %v2495 = vld [vmem:[%s965 + $0x2b8] sm:$0xff]
        %v2496 = vld [vmem:[%s965 + $0x2c0] sm:$0xff]
        %v2497 = vld [vmem:[%s965 + $0x2c8] sm:$0xff]
        %v2498 = vld [vmem:[%s965 + $0x2d0] sm:$0xff]
        %v2499 = vld [vmem:[%s965 + $0x2d8] sm:$0xff]
        %v2500 = vld [vmem:[%s965 + $0x2e0] sm:$0xff]
        %v2501 = vld [vmem:[%s965 + $0x2e8] sm:$0xff]
        %v2502 = vld [vmem:[%s965 + $0x2f0] sm:$0xff]
        %v2503 = vld [vmem:[%s965 + $0x2f8] sm:$0xff]
        %v2504 = vld [vmem:[%s965 + $0x300] sm:$0xff]
        %v2505 = vld [vmem:[%s965 + $0x308] sm:$0xff]
        %v2506 = vld [vmem:[%s965 + $0x310] sm:$0xff]
        %v2507 = vld [vmem:[%s965 + $0x318] sm:$0xff]
        %v2508 = vld [vmem:[%s965 + $0x320] sm:$0xff]
        %v2509 = vld [vmem:[%s965 + $0x328] sm:$0xff]
        %v2510 = vld [vmem:[%s965 + $0x330] sm:$0xff]
        %v2511 = vld [vmem:[%s965 + $0x338] sm:$0xff]
        %v2512 = vld [vmem:[%s965 + $0x340] sm:$0xff]
        %v2513 = vld [vmem:[%s965 + $0x348] sm:$0xff]
        %v2514 = vld [vmem:[%s965 + $0x350] sm:$0xff]
        %v2515 = vld [vmem:[%s965 + $0x358] sm:$0xff]
        %v2516 = vld [vmem:[%s965 + $0x360] sm:$0xff]
        %v2517 = vld [vmem:[%s965 + $0x368] sm:$0xff]
        %v2518 = vld [vmem:[%s965 + $0x370] sm:$0xff]
        %v2519 = vld [vmem:[%s965 + $0x378] sm:$0xff]
        %v2520 = vld [vmem:[%s965 + $0x380] sm:$0xff]
        %v2521 = vld [vmem:[%s965 + $0x388] sm:$0xff]
        %v2522 = vld [vmem:[%s965 + $0x390] sm:$0xff]
        %v2523 = vld [vmem:[%s965 + $0x398] sm:$0xff]
        %v2524 = vld [vmem:[%s965 + $0x3a0] sm:$0xff]
        %v2525 = vld [vmem:[%s965 + $0x3a8] sm:$0xff]
        %v2526 = vld [vmem:[%s965 + $0x3b0] sm:$0xff]
        %v2527 = vld [vmem:[%s965 + $0x3b8] sm:$0xff]
        %v2528 = vld [vmem:[%s965 + $0x3c0] sm:$0xff]
        %v2529 = vld [vmem:[%s965 + $0x3c8] sm:$0xff]
        %v2530 = vld [vmem:[%s965 + $0x3d0] sm:$0xff]
        %v2531 = vld [vmem:[%s965 + $0x3d8] sm:$0xff]
        %v2532 = vld [vmem:[%s965 + $0x3e0] sm:$0xff]
        %v2533 = vld [vmem:[%s965 + $0x3e8] sm:$0xff]
        %v2534 = vld [vmem:[%s965 + $0x3f0] sm:$0xff]
        %v2535 = vld [vmem:[%s965 + $0x3f8] sm:$0xff]
        %2536 = vmatpush.msra.mxu0 %v2468
        %2537 = vmatpush.msra.mxu0 %v2464
        %2538 = vmatpush.msra.mxu0 %v2460
        %2539 = vmatpush.msra.mxu0 %v2456
        %2540 = vmatpush.msra.mxu0 %v2452
        %2541 = vmatpush.msra.mxu0 %v2448
        %2542 = vmatpush.msra.mxu0 %v2444
        %2543 = vmatpush.msra.mxu0 %v2440
        %2544 = vmatpush.msra.mxu0 %v2436
        %2545 = vmatpush.msra.mxu0 %v2432
        %2546 = vmatpush.msra.mxu0 %v2428
        %2547 = vmatpush.msra.mxu0 %v2424
        %2548 = vmatpush.msra.mxu0 %v2420
        %2549 = vmatpush.msra.mxu0 %v2416
        %2550 = vmatpush.msra.mxu0 %v2412
        %2551 = vmatpush.msra.mxu0 %v2408
        %2552 = vmatmul.f32.gmra.mxu0 %v2407
        %v2553 = vpop.f32.mrf.mxu0
        %v2554 = vadd.f32 %v778, %v2553
        %2555 = vdwg.mxu0
        %2556 = vmatpush.msra.mxu0 %v2532
        %2557 = vmatpush.msra.mxu0 %v2528
        %2558 = vmatpush.msra.mxu0 %v2524
        %2559 = vmatpush.msra.mxu0 %v2520
        %2560 = vmatpush.msra.mxu0 %v2516
        %2561 = vmatpush.msra.mxu0 %v2512
        %2562 = vmatpush.msra.mxu0 %v2508
        %2563 = vmatpush.msra.mxu0 %v2504
        %2564 = vmatpush.msra.mxu0 %v2500
        %2565 = vmatpush.msra.mxu0 %v2496
        %2566 = vmatpush.msra.mxu0 %v2492
        %2567 = vmatpush.msra.mxu0 %v2488
        %2568 = vmatpush.msra.mxu0 %v2484
        %2569 = vmatpush.msra.mxu0 %v2480
        %2570 = vmatpush.msra.mxu0 %v2476
        %2571 = vmatpush.msra.mxu0 %v2472
        %2572 = vmatmul.f32.gmra.mxu0 %v2232
        %v2573 = vpop.f32.mrf.mxu0
        %v2574 = vadd.f32 %v2554, %v2573
        %2575 = vdwg.mxu0
        %2576 = vmatpush.msra.mxu0 %v2469
        %2577 = vmatpush.msra.mxu0 %v2465
        %2578 = vmatpush.msra.mxu0 %v2461
        %2579 = vmatpush.msra.mxu0 %v2457
        %2580 = vmatpush.msra.mxu0 %v2453
        %2581 = vmatpush.msra.mxu0 %v2449
        %2582 = vmatpush.msra.mxu0 %v2445
        %2583 = vmatpush.msra.mxu0 %v2441
        %2584 = vmatpush.msra.mxu0 %v2437
        %2585 = vmatpush.msra.mxu0 %v2433
        %2586 = vmatpush.msra.mxu0 %v2429
        %2587 = vmatpush.msra.mxu0 %v2425
        %2588 = vmatpush.msra.mxu0 %v2421
        %2589 = vmatpush.msra.mxu0 %v2417
        %2590 = vmatpush.msra.mxu0 %v2413
        %2591 = vmatpush.msra.mxu0 %v2409
        %2592 = vmatmul.f32.gmra.mxu0 %v2407
        %v2593 = vpop.f32.mrf.mxu0
        %v2594 = vadd.f32 %v779, %v2593
        %2595 = vdwg.mxu0
        %2596 = vmatpush.msra.mxu0 %v2533
        %2597 = vmatpush.msra.mxu0 %v2529
        %2598 = vmatpush.msra.mxu0 %v2525
        %2599 = vmatpush.msra.mxu0 %v2521
        %2600 = vmatpush.msra.mxu0 %v2517
        %2601 = vmatpush.msra.mxu0 %v2513
        %2602 = vmatpush.msra.mxu0 %v2509
        %2603 = vmatpush.msra.mxu0 %v2505
        %2604 = vmatpush.msra.mxu0 %v2501
        %2605 = vmatpush.msra.mxu0 %v2497
        %2606 = vmatpush.msra.mxu0 %v2493
        %2607 = vmatpush.msra.mxu0 %v2489
        %2608 = vmatpush.msra.mxu0 %v2485
        %2609 = vmatpush.msra.mxu0 %v2481
        %2610 = vmatpush.msra.mxu0 %v2477
        %2611 = vmatpush.msra.mxu0 %v2473
        %2612 = vmatmul.f32.gmra.mxu0 %v2232
        %v2613 = vpop.f32.mrf.mxu0
        %v2614 = vadd.f32 %v2594, %v2613
        %2615 = vdwg.mxu0
        %2616 = vmatpush.msra.mxu0 %v2470
        %2617 = vmatpush.msra.mxu0 %v2466
        %2618 = vmatpush.msra.mxu0 %v2462
        %2619 = vmatpush.msra.mxu0 %v2458
        %2620 = vmatpush.msra.mxu0 %v2454
        %2621 = vmatpush.msra.mxu0 %v2450
        %2622 = vmatpush.msra.mxu0 %v2446
        %2623 = vmatpush.msra.mxu0 %v2442
        %2624 = vmatpush.msra.mxu0 %v2438
        %2625 = vmatpush.msra.mxu0 %v2434
        %2626 = vmatpush.msra.mxu0 %v2430
        %2627 = vmatpush.msra.mxu0 %v2426
        %2628 = vmatpush.msra.mxu0 %v2422
        %2629 = vmatpush.msra.mxu0 %v2418
        %2630 = vmatpush.msra.mxu0 %v2414
        %2631 = vmatpush.msra.mxu0 %v2410
        %2632 = vmatmul.f32.gmra.mxu0 %v2407
        %v2633 = vpop.f32.mrf.mxu0
        %v2634 = vadd.f32 %v780, %v2633
        %2635 = vdwg.mxu0
        %2636 = vmatpush.msra.mxu0 %v2534
        %2637 = vmatpush.msra.mxu0 %v2530
        %2638 = vmatpush.msra.mxu0 %v2526
        %2639 = vmatpush.msra.mxu0 %v2522
        %2640 = vmatpush.msra.mxu0 %v2518
        %2641 = vmatpush.msra.mxu0 %v2514
        %2642 = vmatpush.msra.mxu0 %v2510
        %2643 = vmatpush.msra.mxu0 %v2506
        %2644 = vmatpush.msra.mxu0 %v2502
        %2645 = vmatpush.msra.mxu0 %v2498
        %2646 = vmatpush.msra.mxu0 %v2494
        %2647 = vmatpush.msra.mxu0 %v2490
        %2648 = vmatpush.msra.mxu0 %v2486
        %2649 = vmatpush.msra.mxu0 %v2482
        %2650 = vmatpush.msra.mxu0 %v2478
        %2651 = vmatpush.msra.mxu0 %v2474
        %2652 = vmatmul.f32.gmra.mxu0 %v2232
        %v2653 = vpop.f32.mrf.mxu0
        %v2654 = vadd.f32 %v2634, %v2653
        %2655 = vdwg.mxu0
        %2656 = vmatpush.msra.mxu0 %v2471
        %2657 = vmatpush.msra.mxu0 %v2467
        %2658 = vmatpush.msra.mxu0 %v2463
        %2659 = vmatpush.msra.mxu0 %v2459
        %2660 = vmatpush.msra.mxu0 %v2455
        %2661 = vmatpush.msra.mxu0 %v2451
        %2662 = vmatpush.msra.mxu0 %v2447
        %2663 = vmatpush.msra.mxu0 %v2443
        %2664 = vmatpush.msra.mxu0 %v2439
        %2665 = vmatpush.msra.mxu0 %v2435
        %2666 = vmatpush.msra.mxu0 %v2431
        %2667 = vmatpush.msra.mxu0 %v2427
        %2668 = vmatpush.msra.mxu0 %v2423
        %2669 = vmatpush.msra.mxu0 %v2419
        %2670 = vmatpush.msra.mxu0 %v2415
        %2671 = vmatpush.msra.mxu0 %v2411
        %2672 = vmatmul.f32.gmra.mxu0 %v2407
        %v2673 = vpop.f32.mrf.mxu0
        %v2674 = vadd.f32 %v781, %v2673
        %2675 = vdwg.mxu0
        %2676 = vmatpush.msra.mxu0 %v2535
        %2677 = vmatpush.msra.mxu0 %v2531
        %2678 = vmatpush.msra.mxu0 %v2527
        %2679 = vmatpush.msra.mxu0 %v2523
        %2680 = vmatpush.msra.mxu0 %v2519
        %2681 = vmatpush.msra.mxu0 %v2515
        %2682 = vmatpush.msra.mxu0 %v2511
        %2683 = vmatpush.msra.mxu0 %v2507
        %2684 = vmatpush.msra.mxu0 %v2503
        %2685 = vmatpush.msra.mxu0 %v2499
        %2686 = vmatpush.msra.mxu0 %v2495
        %2687 = vmatpush.msra.mxu0 %v2491
        %2688 = vmatpush.msra.mxu0 %v2487
        %2689 = vmatpush.msra.mxu0 %v2483
        %2690 = vmatpush.msra.mxu0 %v2479
        %2691 = vmatpush.msra.mxu0 %v2475
        %2692 = vmatmul.f32.gmra.mxu0 %v2232
        %v2693 = vpop.f32.mrf.mxu0
        %v2694 = vadd.f32 %v2674, %v2693
        %2695 = vdwg.mxu0
        %v2696 = vmul.f32 %v2574, 0.5
        %v2697 = vtanh.pop %v2696
        %v2698 = vmul.f32 %v2697, 0.5
        %v2699 = vadd.f32 %v2698, 0.5
        %v2700 = vmul.f32 %v2614, 0.5
        %v2701 = vtanh.pop %v2700
        %v2702 = vmul.f32 %v2701, 0.5
        %v2703 = vadd.f32 %v2702, 0.5
        %v2704 = vtanh.pop %v2654
        %v2705 = vmul.f32 %v2694, 0.5
        %v2706 = vtanh.pop %v2705
        %v2707 = vmul.f32 %v2706, 0.5
        %v2708 = vadd.f32 %v2707, 0.5
        %v2709 = vmul.f32 %v2703, %v2230
        %v2710 = vmul.f32 %v2699, %v2704
        %v2711 = vadd.f32 %v2709, %v2710
        %v2712 = vtanh.pop %v2711
        %v2713 = vmul.f32 %v2708, %v2712
        %s2714 = scalar_lea.vmem [#allocation3], 24
        %2715 = vst [vmem:[%s2714] sm:$0xff] %v2713
        %2716 = vst [vmem:[#allocation17] sm:$0xff] %v2407
        %2717 = vst [vmem:[#allocation19] sm:$0xff] %v2405
        %2718 = vst [vmem:[%s787] sm:$0xff] %v2713
        %2719 = vst [vmem:[%s790] sm:$0xff] %v2711
        %v2720 = vld [vmem:[#allocation3] sm:$0xff]
        %v2721 = vld [vmem:[#allocation3 + $0x8] sm:$0xff]
        %v2722 = vld [vmem:[#allocation3 + $0x10] sm:$0xff]
        %v2723 = vld [vmem:[#allocation3 + $0x18] sm:$0xff]
        %v2724 = vld [vmem:[#allocation15] sm:$0xff]
        %v2725 = vld [vmem:[#allocation15 + $0x8] sm:$0xff]
        %v2726 = vld [vmem:[#allocation15 + $0x10] sm:$0xff]
        %v2727 = vld [vmem:[#allocation15 + $0x18] sm:$0xff]
        %v2728 = vld [vmem:[#allocation15 + $0x20] sm:$0xff]
        %v2729 = vld [vmem:[#allocation15 + $0x28] sm:$0xff]
        %v2730 = vld [vmem:[#allocation15 + $0x30] sm:$0xff]
        %v2731 = vld [vmem:[#allocation15 + $0x38] sm:$0xff]
        %v2732 = vld [vmem:[#allocation15 + $0x40] sm:$0xff]
        %v2733 = vld [vmem:[#allocation15 + $0x48] sm:$0xff]
        %v2734 = vld [vmem:[#allocation15 + $0x50] sm:$0xff]
        %v2735 = vld [vmem:[#allocation15 + $0x58] sm:$0xff]
        %v2736 = vld [vmem:[#allocation15 + $0x60] sm:$0xff]
        %v2737 = vld [vmem:[#allocation15 + $0x68] sm:$0xff]
        %v2738 = vld [vmem:[#allocation15 + $0x70] sm:$0xff]
        %v2739 = vld [vmem:[#allocation15 + $0x78] sm:$0xff]
        %v2740 = vld [vmem:[%s8] sm:$0x1]
        %v2742 = vperm.slane %v2740, 0
        %2744 = vmatpush.msra.mxu0 %v2739
        %2745 = vmatpush.msra.mxu0 %v2738
        %2746 = vmatpush.msra.mxu0 %v2737
        %2747 = vmatpush.msra.mxu0 %v2736
        %2748 = vmatpush.msra.mxu0 %v2735
        %2749 = vmatpush.msra.mxu0 %v2734
        %2750 = vmatpush.msra.mxu0 %v2733
        %2751 = vmatpush.msra.mxu0 %v2732
        %2752 = vmatpush.msra.mxu0 %v2731
        %2753 = vmatpush.msra.mxu0 %v2730
        %2754 = vmatpush.msra.mxu0 %v2729
        %2755 = vmatpush.msra.mxu0 %v2728
        %2756 = vmatpush.msra.mxu0 %v2727
        %2757 = vmatpush.msra.mxu0 %v2726
        %2758 = vmatpush.msra.mxu0 %v2725
        %2759 = vmatpush.msra.mxu0 %v2724
        %2760 = vmatmul.f32.gmra.mxu0 %v2720
        %v2761 = vpop.f32.mrf.mxu0
        %v2762 = vadd.f32 %v2742, %v2761
        %2763 = vmatmul.f32.gmra.mxu0 %v2721
        %v2764 = vpop.f32.mrf.mxu0
        %v2765 = vadd.f32 %v2742, %v2764
        %2766 = vmatmul.f32.gmra.mxu0 %v2722
        %v2767 = vpop.f32.mrf.mxu0
        %v2768 = vadd.f32 %v2742, %v2767
        %2769 = vmatmul.f32.gmra.mxu0 %v2723
        %v2770 = vpop.f32.mrf.mxu0
        %v2771 = vadd.f32 %v2742, %v2770
        %2772 = vdwg.mxu0
        %2773 = vst [vmem:[%s497] sm:$0xff] %v2762
        %2774 = vst [vmem:[%s497 + $0x8] sm:$0xff] %v2765
        %2775 = vst [vmem:[%s497 + $0x10] sm:$0xff] %v2768
        %2776 = vst [vmem:[%s497 + $0x18] sm:$0xff] %v2771
        %s2777 = sand.u32 %s235, 1
        %s2778 = scalar_lea.sflag [#allocation6], %s2777
        %s2779 = sand.u32 %s235, 1
        %s2780 = smul.addr %s2779, 32
        %s2781 = scalar_lea.vmem [#allocation16], %s2780
        // Predicated region
        $region89: #{tpu_custom_call.1} parent=55 // pred_check
          %p2782 = pneg %p245
        $region90: #{tpu_custom_call.1} parent=55 // pred_check_branch
          %2784 = sbr.rel (%p2782) target = $region92
        $region91: #{tpu_custom_call.1} parent=55 // pred_region
          %s2785 = smul.u32 4, %s33
          %2787 = vsyncadd %s2778, 0
          %s2788 = smul.addr %s2785, 8
          %s2789 = scalar_lea.hbm %s9, %s2788
          %s2790 = sshll.u32 %s2781, 4
          %s2791 = int_to_ptr.vmem [resolvable:$true] %s2790
          %s2792 = sshll.u32 %s2789, 4
          %s2793 = int_to_ptr.hbm [resolvable:$true] %s2792
          %2798 = dma.vmem_to_hbm [thread:$0]  %s2791, 512, %s2793, %s2778, 128, 128, 8
        $region92: #{tpu_custom_call.1} parent=55 // pred_fallthru
          _
        // Predicated region
        $region93: #{tpu_custom_call.1} parent=55 // pred_check
          %p2799 = pneg %p266
        $region94: #{tpu_custom_call.1} parent=55 // pred_check_branch
          %2801 = sbr.rel (%p2799) target = $region96
        $region95: #{tpu_custom_call.1} parent=55 // pred_region
          %2803 = vsyncadd [#allocation18], 0
          %s2804 = sshll.u32 [#allocation17], 4
          %s2805 = int_to_ptr.vmem [resolvable:$true] %s2804
          %s2806 = sshll.u32 %s10, 4
          %s2807 = int_to_ptr.hbm [resolvable:$true] %s2806
          %2812 = dma.vmem_to_hbm [thread:$0]  %s2805, 256, %s2807, [#allocation18], 128, 128, 8
        $region96: #{tpu_custom_call.1} parent=55 // pred_fallthru
          _
        // Predicated region
        $region97: #{tpu_custom_call.1} parent=55 // pred_check
          %p2813 = pneg %p287
        $region98: #{tpu_custom_call.1} parent=55 // pred_check_branch
          %2815 = sbr.rel (%p2813) target = $region100
        $region99: #{tpu_custom_call.1} parent=55 // pred_region
          %2817 = vsyncadd [#allocation18], 0
          %s2818 = sshll.u32 [#allocation19], 4
          %s2819 = int_to_ptr.vmem [resolvable:$true] %s2818
          %s2820 = sshll.u32 %s11, 4
          %s2821 = int_to_ptr.hbm [resolvable:$true] %s2820
          %2826 = dma.vmem_to_hbm [thread:$0]  %s2819, 256, %s2821, [#allocation18], 128, 128, 8
        $region100: #{tpu_custom_call.1} parent=55 // pred_fallthru
          _
        // Predicated region
        $region101: #{tpu_custom_call.1} parent=55 // pred_check
          %p2827 = pneg %p266
        $region102: #{tpu_custom_call.1} parent=55 // pred_check_branch
          %2829 = sbr.rel (%p2827) target = $region104
        $region103: #{tpu_custom_call.1} parent=55 // pred_region
          %2831 = dma.done [#allocation18], 256
        $region104: #{tpu_custom_call.1} parent=55 // pred_fallthru
          _
        // Predicated region
        $region105: #{tpu_custom_call.1} parent=55 // pred_check
          %p2832 = pneg %p287
        $region106: #{tpu_custom_call.1} parent=55 // pred_check_branch
          %2834 = sbr.rel (%p2832) target = $region108
        $region107: #{tpu_custom_call.1} parent=55 // pred_region
          %2836 = dma.done [#allocation18], 256
        $region108: #{tpu_custom_call.1} parent=55 // pred_fallthru
          _
      $region56: #{tpu_custom_call.1} parent=5 // pred_fallthru
        _
      %p2837 = scmp.le.s32.totalorder 2, %s28
      // Predicated region
      $region109: #{tpu_custom_call.1} parent=5 // pred_check
        %p2838 = pneg %p2837
      $region110: #{tpu_custom_call.1} parent=5 // pred_check_branch
        %2840 = sbr.rel (%p2838) target = $region112
      $region111: #{tpu_custom_call.1} parent=5 // pred_region
        %s2841 = ssub.s32 %s28, 2
        // Predicated region
        $region113: #{tpu_custom_call.1} parent=111 // pred_check
          %p2842 = pneg %p251
        $region114: #{tpu_custom_call.1} parent=111 // pred_check_branch
          %2844 = sbr.rel (%p2842) target = $region116
        $region115: #{tpu_custom_call.1} parent=111 // pred_region
          %s2845 = sand.u32 %s236, 1
          %s2846 = scalar_lea.sflag [#allocation6], %s2845
          %s2847 = sand.u32 %s236, 1
          %s2848 = smul.addr %s2847, 32
          %s2849 = scalar_lea.vmem [#allocation16], %s2848
          %2851 = dma.done %s2846, 512
        $region116: #{tpu_custom_call.1} parent=111 // pred_fallthru
          _
      $region112: #{tpu_custom_call.1} parent=5 // pred_fallthru
        _
    $region6: #{tpu_custom_call.1} parent=1 // loop_footer
      %s32 = sadd.s32 1, %s28
    $region7: #{tpu_custom_call.1} parent=1 // loop_footer_branch
      %27 = sbr.rel target = $region3
    $region8: #{tpu_custom_call.1} parent=1 // loop_exit
      _
    %2852 = vsyncpa [#allocation5], 1
    %s2853 = scalar_lea.sflag [#allocation5], 1
    %2854 = vsyncpa %s2853, 1
    %2855 = vsyncpa [#allocation8], 1
    %2856 = vsyncpa [#allocation11], 1
    %2857 = vsyncpa [#allocation14], 1
    %2858 = vsyncpa [#allocation6], 1
    %s2859 = scalar_lea.sflag [#allocation6], 1
    %2860 = vsyncpa %s2859, 1
    %2861 = vsyncpa [#allocation18], 1

</llo_original>
